<compile_context>
chip_gen: v5e
topology: v5e:2x2
jax: 0.10.0
libtpu: 0.0.40
codegen_flags: <defaults>
</compile_context>

<pallas_src>
import functools

import jax
import jax.numpy as jnp
from jax import lax
from jax.experimental import pallas as pl
from jax.experimental.pallas import tpu as pltpu


def _round_up(x, m):
    return (x + m - 1) // m * m


def _vmem_limit_bytes():
    """Generation-aware VMEM limit: ~3/4 of physical VMEM, capped at 100 MiB."""
    cap = None
    try:
        info = pltpu.get_tpu_info()
        for name in ("vmem_capacity_bytes", "vmem_size_bytes", "vmem_bytes"):
            cap = getattr(info, name, None)
            if cap:
                break
    except Exception:
        cap = None
    if not cap:
        cap = 64 * 1024 * 1024  # conservative (v7x-sized) fallback
    return int(max(32 * 1024 * 1024, min(cap * 3 // 4, 100 * 1024 * 1024)))


def _auto_time_chunk(T, B_pad, hidden, gi_itemsize, vmem_limit_bytes):
    """Largest time chunk whose double-buffered, time-varying blocks
    (gi_f, gi_b, out_f, out_b) fit within ~half the VMEM budget (cap 64)."""
    per_step = 2 * B_pad * (2 * 3 * hidden * gi_itemsize + 2 * hidden * 4)
    budget = vmem_limit_bytes // 2
    tc = int(max(8, min(64, budget // max(per_step, 1))))
    tc = min(tc, _round_up(T, 8))
    return max(8, (tc // 8) * 8)


def _const_spec(block_shape, index_map):
    """BlockSpec for a grid-constant block; single-buffered when supported
    (no re-DMA across grid steps, half the VMEM of the default double buffer)."""
    if hasattr(pl, "Buffered"):
        try:
            return pl.BlockSpec(block_shape, index_map,
                                pipeline_mode=pl.Buffered(1))
        except TypeError:
            pass
    return pl.BlockSpec(block_shape, index_map)


def _gru_cell(gi, gh, bhh_n, h_prev, H):
    """PyTorch gate order r|z|n; gi already contains b_ih (all gates) and the
    folded b_hh for r,z; the n-gate hidden bias is applied inside r*(...)."""
    r = jax.nn.sigmoid(gi[:, 0:H] + gh[:, 0:H])
    z = jax.nn.sigmoid(gi[:, H:2 * H] + gh[:, H:2 * H])
    n = jnp.tanh(gi[:, 2 * H:3 * H] + r * (gh[:, 2 * H:3 * H] + bhh_n))
    return (1.0 - z) * n + z * h_prev


# ----------------------------------------------------------------------------
# Fused bidirectional GRU recurrence kernel.
# Grid axis = time chunk (sequential carry -> "arbitrary").  Each grid step
# runs `time_chunk` recurrence steps for BOTH directions (forward reads chunk
# c, backward reads chunk nc-1-c via its index_map).  Hidden states live in a
# [2, B, H] VMEM scratch that persists across grid iterations.  Each step
# issues a single block-diagonal MXU matmul that serves both directions.
# ----------------------------------------------------------------------------
def _bigru_chunk_kernel(len_ref, gif_ref, gib_ref, whh_ref, bhhn_ref,
                        of_ref, ob_ref, h_ref, *, hidden, time_chunk, unroll):
    H = hidden
    c = pl.program_id(0)
    T_pad = pl.num_programs(0) * time_chunk

    @pl.when(c == 0)
    def _():
        h_ref[...] = jnp.zeros_like(h_ref)

    lengths = len_ref[...]                              # [B, 1] int32
    whh_bd = whh_ref[...]                               # [2H, 6H] block-diag
    bhh_n_f = bhhn_ref[:, :H].astype(jnp.float32)       # [1, H]
    bhh_n_b = bhhn_ref[:, H:].astype(jnp.float32)
    rec_dtype = whh_ref.dtype

    def step(s, carry):
        h_f, h_b = carry                                # f32 [B, H] each

        # One fused block-diagonal MXU push per step for BOTH directions.
        h_cat = jnp.concatenate([h_f, h_b], axis=1).astype(rec_dtype)      # [B, 2H]
        gh = jnp.dot(h_cat, whh_bd, preferred_element_type=jnp.float32)    # [B, 6H]
        gh_f = gh[:, :3 * H]
        gh_b = gh[:, 3 * H:]

        # ---- forward direction: global time t = c*TC + s ----
        t_f = c * time_chunk + s
        gi_f = gif_ref[s].astype(jnp.float32)                              # [B, 3H]
        cand_f = _gru_cell(gi_f, gh_f, bhh_n_f, h_f, H)
        m_f = t_f < lengths                                                # [B, 1] bool
        h_f = jnp.where(m_f, cand_f, h_f)                                  # freeze past length
        of_ref[s] = jnp.where(m_f, cand_f, 0.0).astype(of_ref.dtype)

        # ---- backward direction: local slot TC-1-s, time T_pad-1-(c*TC+s) ----
        s_b = time_chunk - 1 - s
        t_b = T_pad - 1 - (c * time_chunk + s)
        gi_b = gib_ref[s_b].astype(jnp.float32)
        cand_b = _gru_cell(gi_b, gh_b, bhh_n_b, h_b, H)
        m_b = t_b < lengths
        h_b = jnp.where(m_b, cand_b, h_b)
        ob_ref[s_b] = jnp.where(m_b, cand_b, 0.0).astype(ob_ref.dtype)

        return h_f, h_b

    h_f, h_b = lax.fori_loop(0, time_chunk, step, (h_ref[0], h_ref[1]),
                             unroll=unroll)
    h_ref[0] = h_f
    h_ref[1] = h_b


def _bigru_layer(gi_f, gi_b, whh_bd, bhh_n, lengths_col, *, hidden,
                 time_chunk, unroll, vmem_limit):
    """One bidirectional GRU layer.

    gi_f / gi_b : [T_pad, B_pad, 3H] — hoisted x @ W_ih + biases per direction
                  (gi_b indexed in natural time order; the kernel walks it
                  backward via its index_map).
    whh_bd      : [2H, 6H] block_diag(W_hh_fwd, W_hh_bwd) in the matmul dtype.
    bhh_n       : [1, 2H] f32, n-gate hidden biases (fwd | bwd).
    Returns (out_f, out_b), each [T_pad, B_pad, H] f32.
    """
    T_pad, B_pad, G = gi_f.shape
    nc = T_pad // time_chunk
    kernel = functools.partial(_bigru_chunk_kernel, hidden=hidden,
                               time_chunk=time_chunk, unroll=unroll)

    out_f, out_b = pl.pallas_call(
        kernel,
        out_shape=(jax.ShapeDtypeStruct((T_pad, B_pad, hidden), jnp.float32),
                   jax.ShapeDtypeStruct((T_pad, B_pad, hidden), jnp.float32)),
        grid_spec=pltpu.PrefetchScalarGridSpec(
            num_scalar_prefetch=0,
            grid=(nc,),
            in_specs=[
                _const_spec((B_pad, 1), lambda c: (0, 0)),                  # lengths (const)
                pl.BlockSpec((time_chunk, B_pad, G), lambda c: (c, 0, 0)),  # gi fwd chunk
                pl.BlockSpec((time_chunk, B_pad, G),
                             lambda c: (nc - 1 - c, 0, 0)),                 # gi bwd chunk
                _const_spec((2 * hidden, 6 * hidden), lambda c: (0, 0)),    # block-diag W_hh
                _const_spec((1, 2 * hidden), lambda c: (0, 0)),             # n-gate b_hh
            ],
            out_specs=[
                pl.BlockSpec((time_chunk, B_pad, hidden), lambda c: (c, 0, 0)),
                pl.BlockSpec((time_chunk, B_pad, hidden),
                             lambda c: (nc - 1 - c, 0, 0)),
            ],
            scratch_shapes=[pltpu.VMEM((2, B_pad, hidden), jnp.float32)],   # h carry (f/b)
        ),
        compiler_params=pltpu.CompilerParams(
            dimension_semantics=("arbitrary",),
            vmem_limit_bytes=vmem_limit,
        ),
    )(lengths_col, gi_f, gi_b, whh_bd, bhh_n)
    return out_f, out_b


# ----------------------------------------------------------------------------
# Parameter init (deterministic, mirrors nn.Embedding / nn.GRU shapes).
# Weights are pre-fused per direction: W_ih [Din, 3H], W_hh [H, 3H],
# biases [1, 3H]; gate order r|z|n.  Directions stacked along a leading dim.
# ----------------------------------------------------------------------------
def init_params(key, seq_dim1, seq_dim2, hidden, num_layers, edge_num):
    keys = iter(jax.random.split(key, 1 + num_layers * 8))
    emb = jax.random.normal(next(keys), (edge_num + 1, seq_dim1), jnp.float32)

    bound = float(1.0 / (hidden ** 0.5))  # PyTorch GRU uniform(-1/sqrt(H), 1/sqrt(H))

    def u(k, shape):
        return jax.random.uniform(k, shape, jnp.float32, -bound, bound)

    layers = []
    for layer in range(num_layers):
        din = seq_dim2 if layer == 0 else 2 * hidden   # bidirectional -> 2H after layer 0
        wih2 = jnp.stack([u(next(keys), (din, 3 * hidden)) for _ in range(2)])
        whh2 = jnp.stack([u(next(keys), (hidden, 3 * hidden)) for _ in range(2)])
        bih2 = jnp.stack([u(next(keys), (1, 3 * hidden)) for _ in range(2)])
        bhh2 = jnp.stack([u(next(keys), (1, 3 * hidden)) for _ in range(2)])
        layers.append((wih2, bih2, whh2, bhh2))
    return emb, layers


# ----------------------------------------------------------------------------
# Forward pass (matches PathConcatenation.forward on the 'path' node data).
# ----------------------------------------------------------------------------
def path_concatenation_forward(params, edge_ids, path_feat, pred_flow, *,
                               hidden, time_chunk=None,
                               matmul_dtype=jnp.bfloat16,
                               recurrence_dtype=jnp.float32):
    """
    edge_ids  : [B, T]    int32  (segmentId squeezed; 0 == padding)
    path_feat : [B, T, F] float  (pathSegmentFeat, F = seq_dim2 - seq_dim1)
    pred_flow : [B]       float  (od2pathNum(g_select) result, one flow per path)
    returns   : [B, T, 2*hidden] (node embedding written back to the graph)

    matmul_dtype     : operand/storage dtype of the hoisted x@W_ih matmul (gi).
    recurrence_dtype : operand dtype of the in-kernel h@W_hh matmul (carry is
                       always f32 so bf16 round-off does not accumulate).
    """
    emb, layers = params
    B, T = edge_ids.shape
    H = hidden
    lengths = jnp.sum(edge_ids != 0, axis=1).astype(jnp.int32)      # [B]

    # --- glue (plain XLA): embedding lookup, feature concat, flow injection ---
    path_emb = jnp.take(emb, edge_ids, axis=0)                               # [B, T, seq_dim1]
    x = jnp.concatenate([path_emb, path_feat.astype(jnp.float32)], axis=2)   # [B, T, seq_dim2]
    x = x.at[:, :, -1].set(
        jnp.broadcast_to(pred_flow[:, None].astype(jnp.float32), (B, T)))
    # TODO(synk): confirm that overwriting the last pathSegmentFeat column at
    # every timestep matches the original module's flow-injection semantics.

    use_bf16 = (matmul_dtype == jnp.bfloat16) or (recurrence_dtype == jnp.bfloat16)
    sublane = 16 if use_bf16 else 8                    # bf16 packs 16 rows/sublane group
    B_pad = _round_up(B, sublane)

    vmem_limit = _vmem_limit_bytes()
    gi_itemsize = jnp.dtype(matmul_dtype).itemsize
    if time_chunk is None:
        time_chunk = _auto_time_chunk(T, B_pad, H, gi_itemsize, vmem_limit)
    T_pad = _round_up(T, time_chunk)
    unroll = True if time_chunk <= 8 else 4            # partial unroll for big chunks

    x_t = jnp.transpose(x, (1, 0, 2))                                        # [T, B, D]
    x_t = jnp.pad(x_t, ((0, T_pad - T), (0, B_pad - B), (0, 0)))
    lengths_col = jnp.pad(lengths, (0, B_pad - B))[:, None]                  # [B_pad, 1]

    def precompute_gi(parts, wih, bias):
        # Hoisted input-gate matmul over ALL timesteps at once.  `parts` are the
        # pieces whose (virtual) concat along the feature axis is the layer
        # input; splitting W_ih by piece avoids materializing the concat.
        g = None
        off = 0
        for p in parts:
            w = wih[off:off + p.shape[-1]]
            term = jnp.einsum('tbd,dg->tbg',
                              p.astype(matmul_dtype), w.astype(matmul_dtype),
                              preferred_element_type=jnp.float32)
            g = term if g is None else g + term
            off += p.shape[-1]
        return (g + bias.astype(jnp.float32)).astype(matmul_dtype)

    parts = [x_t]
    for (wih2, bih2, whh2, bhh2) in layers:
        # Fold b_ih (all gates) + b_hh (r,z gates) into gi; the n-gate hidden
        # bias must stay inside r*(...) so it is passed to the kernel.
        zeros_n = jnp.zeros((1, H), jnp.float32)
        bias_f = bih2[0] + jnp.concatenate([bhh2[0][:, :2 * H], zeros_n], axis=1)
        bias_b = bih2[1] + jnp.concatenate([bhh2[1][:, :2 * H], zeros_n], axis=1)
        gi_f = precompute_gi(parts, wih2[0], bias_f)                 # [T_pad, B_pad, 3H]
        gi_b = precompute_gi(parts, wih2[1], bias_b)

        # Block-diagonal recurrence weight: [h_f | h_b] @ [[Wf, 0], [0, Wb]].
        zblk = jnp.zeros((H, 3 * H), jnp.float32)
        whh_bd = jnp.concatenate(
            [jnp.concatenate([whh2[0], zblk], axis=1),
             jnp.concatenate([zblk, whh2[1]], axis=1)],
            axis=0).astype(recurrence_dtype)                          # [2H, 6H]
        bhh_n = jnp.concatenate([bhh2[0][:, 2 * H:], bhh2[1][:, 2 * H:]], axis=1)

        out_f, out_b = _bigru_layer(gi_f, gi_b, whh_bd, bhh_n, lengths_col,
                                    hidden=H, time_chunk=time_chunk,
                                    unroll=unroll, vmem_limit=vmem_limit)
        parts = [out_f, out_b]

    out = jnp.concatenate(parts, axis=-1)                            # single concat, final layer
    out = out[:T, :B]
    return jnp.transpose(out, (1, 0, 2))                             # [B, T, 2H]


# ----------------------------------------------------------------------------
# Pure-JAX reference (same math, python loop over time) for a correctness check.
# ----------------------------------------------------------------------------
def forward_ref(params, edge_ids, path_feat, pred_flow, hidden):
    emb, layers = params
    B, T = edge_ids.shape
    H = hidden
    lengths = jnp.sum(edge_ids != 0, axis=1)
    x = jnp.concatenate([jnp.take(emb, edge_ids, axis=0),
                         path_feat.astype(jnp.float32)], axis=2)
    x = x.at[:, :, -1].set(
        jnp.broadcast_to(pred_flow[:, None].astype(jnp.float32), (B, T)))
    x_t = jnp.transpose(x, (1, 0, 2))
    mask = (jnp.arange(T)[:, None] < lengths[None, :]).astype(jnp.float32)[:, :, None]
    h_in = x_t
    for (wih2, bih2, whh2, bhh2) in layers:
        outs = []
        for d, reverse in ((0, False), (1, True)):
            wih, bih, whh, bhh = wih2[d], bih2[d], whh2[d], bhh2[d]
            order = range(T - 1, -1, -1) if reverse else range(T)
            h = jnp.zeros((B, H), jnp.float32)
            res = [None] * T
            for t in order:
                gi = h_in[t] @ wih + bih
                gh = h @ whh + bhh
                r = jax.nn.sigmoid(gi[:, :H] + gh[:, :H])
                z = jax.nn.sigmoid(gi[:, H:2 * H] + gh[:, H:2 * H])
                n = jnp.tanh(gi[:, 2 * H:] + r * gh[:, 2 * H:])
                cand = (1.0 - z) * n + z * h
                m = mask[t]
                h = m * cand + (1.0 - m) * h
                res[t] = m * cand
            outs.append(jnp.stack(res, axis=0))
        h_in = jnp.concatenate(outs, axis=-1)
    return jnp.transpose(h_in, (1, 0, 2))


if __name__ == "__main__":
    # small shapes consistent with the module constructor
    seq_dim1, seq_dim2 = 8, 16          # embedding dim + segment-feature dim = GRU input size
    hidden, num_layers = 32, 2
    edge_num, seq_max_len = 20, 10
    B = 6                               # number of 'path' nodes in the batch graph

    key = jax.random.PRNGKey(0)
    k_par, k_len, k_ids, k_feat, k_flow = jax.random.split(key, 5)

    params = init_params(k_par, seq_dim1, seq_dim2, hidden, num_layers, edge_num)

    lengths = jax.random.randint(k_len, (B,), 1, seq_max_len + 1)
    ids = jax.random.randint(k_ids, (B, seq_max_len), 1, edge_num + 1)
    ids = jnp.where(jnp.arange(seq_max_len)[None, :] < lengths[:, None], ids, 0).astype(jnp.int32)
    feat = jax.random.normal(k_feat, (B, seq_max_len, seq_dim2 - seq_dim1), jnp.float32)
    flow = jax.random.uniform(k_flow, (B,), jnp.float32, 0.0, 10.0)  # stands in for od2pathNum

    ref = forward_ref(params, ids, feat, flow, hidden)

    # 1) all-f32 path with an explicit time_chunk=8 -> two chunks: exercises
    #    the cross-chunk hidden carry and the reversed backward index_map.
    fwd_f32 = jax.jit(functools.partial(
        path_concatenation_forward, hidden=hidden, time_chunk=8,
        matmul_dtype=jnp.float32, recurrence_dtype=jnp.float32))
    out = jax.block_until_ready(fwd_f32(params, ids, feat, flow))
    assert out.shape == (B, seq_max_len, 2 * hidden)
    assert bool(jnp.all(jnp.isfinite(out)))
    err_f32 = float(jnp.max(jnp.abs(out - ref)))
    assert err_f32 < 2e-2, f"f32 mismatch vs reference: {err_f32}"

    # 2) default perf config: bf16 MXU operands + bf16 gi storage for the
    #    hoisted matmul, f32 recurrence matmul / carry, auto time_chunk.
    fwd_def = jax.jit(functools.partial(path_concatenation_forward, hidden=hidden))
    out_def = jax.block_until_ready(fwd_def(params, ids, feat, flow))
    assert out_def.shape == (B, seq_max_len, 2 * hidden)
    err_def = float(jnp.max(jnp.abs(out_def - ref)))
    assert err_def < 1.5e-1, f"default (bf16 gi) mismatch vs reference: {err_def}"

    # 3) all-bf16 MXU operands (hoisted + recurrence); carry/elementwise f32.
    fwd_bf16 = jax.jit(functools.partial(
        path_concatenation_forward, hidden=hidden,
        matmul_dtype=jnp.bfloat16, recurrence_dtype=jnp.bfloat16))
    out_bf16 = jax.block_until_ready(fwd_bf16(params, ids, feat, flow))
    assert out_bf16.shape == (B, seq_max_len, 2 * hidden)
    err_bf16 = float(jnp.max(jnp.abs(out_bf16 - ref)))
    assert err_bf16 < 2e-1, f"bf16 mismatch vs reference: {err_bf16}"

    print("KERNEL_OK")
</pallas_src>

<mosaic_0001>
module attributes {stable_mosaic.version = 11 : i64} {
  func.func @_bigru_chunk_kernel(%arg0: i32, %arg1: memref<8x1xi32, #tpu.memory_space<vmem>>, %arg2: memref<8x8x96xf32, #tpu.memory_space<vmem>>, %arg3: memref<8x8x96xf32, #tpu.memory_space<vmem>>, %arg4: memref<64x192xf32, #tpu.memory_space<vmem>>, %arg5: memref<1x64xf32, #tpu.memory_space<vmem>>, %arg6: memref<8x8x32xf32, #tpu.memory_space<vmem>>, %arg7: memref<8x8x32xf32, #tpu.memory_space<vmem>>, %arg8: memref<2x8x32xf32, #tpu.memory_space<vmem>>) attributes {dimension_semantics = [#tpu.dimension_semantics<arbitrary>], iteration_bounds = array<i64: 2>, scalar_prefetch = 0 : i64, scratch_operands = 1 : i64, tpu.core_type = #tpu.core_type<tc>, window_params = [{pipeline_mode = #tpu.pipeline_mode<synchronous>, transform_indices = @transform_0, window_bounds = array<i64: 8, 1>}, {transform_indices = @transform_1, window_bounds = array<i64: 8, 8, 96>}, {transform_indices = @transform_2, window_bounds = array<i64: 8, 8, 96>}, {pipeline_mode = #tpu.pipeline_mode<synchronous>, transform_indices = @transform_3, window_bounds = array<i64: 64, 192>}, {pipeline_mode = #tpu.pipeline_mode<synchronous>, transform_indices = @transform_4, window_bounds = array<i64: 1, 64>}, {transform_indices = @transform_5, window_bounds = array<i64: 8, 8, 32>}, {transform_indices = @transform_6, window_bounds = array<i64: 8, 8, 32>}]} {
    %c0_i32 = arith.constant 0 : i32
    %0 = arith.cmpi eq, %arg0, %c0_i32 : i32
    %1 = arith.extui %0 : i1 to i32
    %c0_i32_0 = arith.constant 0 : i32
    %2 = arith.cmpi ne, %1, %c0_i32_0 : i32
    scf.if %2 {
      %cst_185 = arith.constant 0.000000e+00 : f32
      %801 = vector.broadcast %cst_185 : f32 to vector<2x8x32xf32>
      %c0_186 = arith.constant 0 : index
      %c0_187 = arith.constant 0 : index
      %c0_188 = arith.constant 0 : index
      %802 = vector.load %arg8[%c0_186, %c0_187, %c0_188] : memref<2x8x32xf32, #tpu.memory_space<vmem>>, vector<2x8x32xf32>
      tpu.vector_store %arg8[%c0_186, %c0_187, %c0_188], %801 {strides = array<i32>} : memref<2x8x32xf32, #tpu.memory_space<vmem>>, vector<2x8x32xf32>,
    } else {
    }
    %c0 = arith.constant 0 : index
    %c0_1 = arith.constant 0 : index
    %3 = vector.load %arg1[%c0, %c0_1] : memref<8x1xi32, #tpu.memory_space<vmem>>, vector<8x1xi32>
    %c0_2 = arith.constant 0 : index
    %c0_3 = arith.constant 0 : index
    %4 = vector.load %arg4[%c0_2, %c0_3] : memref<64x192xf32, #tpu.memory_space<vmem>>, vector<64x192xf32>
    %c0_4 = arith.constant 0 : index
    %c0_5 = arith.constant 0 : index
    %5 = vector.load %arg5[%c0_4, %c0_5] : memref<1x64xf32, #tpu.memory_space<vmem>>, vector<1x32xf32>
    %c0_6 = arith.constant 0 : index
    %c32 = arith.constant 32 : index
    %6 = vector.load %arg5[%c0_6, %c32] : memref<1x64xf32, #tpu.memory_space<vmem>>, vector<1x32xf32>
    %c0_7 = arith.constant 0 : index
    %c0_8 = arith.constant 0 : index
    %c0_9 = arith.constant 0 : index
    %7 = vector.load %arg8[%c0_7, %c0_8, %c0_9] : memref<2x8x32xf32, #tpu.memory_space<vmem>>, vector<1x8x32xf32>
    %8 = vector.shape_cast %7 : vector<1x8x32xf32> to vector<8x32xf32>
    %c1 = arith.constant 1 : index
    %c0_10 = arith.constant 0 : index
    %c0_11 = arith.constant 0 : index
    %9 = vector.load %arg8[%c1, %c0_10, %c0_11] : memref<2x8x32xf32, #tpu.memory_space<vmem>>, vector<1x8x32xf32>
    %10 = vector.shape_cast %9 : vector<1x8x32xf32> to vector<8x32xf32>
    %c0_i32_12 = arith.constant 0 : i32
    %11 = tpu.concatenate %8, %10 in 1 : vector<8x32xf32>, vector<8x32xf32> -> vector<8x64xf32>
    %cst = arith.constant dense<0.000000e+00> : vector<8x192xf32>
    %12 = tpu.matmul %11, %4, %cst {dimension_numbers = #tpu.dot_dimension_numbers<[1], [0], [0], [1], [0, 0, 1, 1], [], []>} : vector<8x64xf32>, vector<64x192xf32>, vector<8x192xf32> -> vector<8x192xf32>
    %13 = vector.extract_strided_slice %12 {offsets = [0, 0], sizes = [8, 96], strides = [1, 1]} : vector<8x192xf32> to vector<8x96xf32>
    %14 = vector.extract_strided_slice %12 {offsets = [0, 96], sizes = [8, 96], strides = [1, 1]} : vector<8x192xf32> to vector<8x96xf32>
    %c8_i32 = arith.constant 8 : i32
    %15 = arith.muli %arg0, %c8_i32 : i32
    %16 = arith.addi %15, %c0_i32_12 : i32
    %17 = arith.index_cast %c0_i32_12 : i32 to index
    %c0_13 = arith.constant 0 : index
    %c0_14 = arith.constant 0 : index
    %18 = vector.load %arg2[%17, %c0_13, %c0_14] : memref<8x8x96xf32, #tpu.memory_space<vmem>>, vector<1x8x96xf32>
    %19 = vector.shape_cast %18 : vector<1x8x96xf32> to vector<8x96xf32>
    %20 = vector.extract_strided_slice %19 {offsets = [0, 0], sizes = [8, 32], strides = [1, 1]} : vector<8x96xf32> to vector<8x32xf32>
    %21 = vector.extract_strided_slice %13 {offsets = [0, 0], sizes = [8, 32], strides = [1, 1]} : vector<8x96xf32> to vector<8x32xf32>
    %22 = arith.addf %20, %21 : vector<8x32xf32>
    %23 = arith.negf %22 : vector<8x32xf32>
    %24 = math.exp %23 : vector<8x32xf32>
    %cst_15 = arith.constant 1.000000e+00 : f32
    %25 = vector.broadcast %cst_15 : f32 to vector<8x32xf32>
    %26 = arith.addf %25, %24 : vector<8x32xf32>
    %27 = arith.divf %25, %26 : vector<8x32xf32>
    %28 = vector.extract_strided_slice %19 {offsets = [0, 32], sizes = [8, 32], strides = [1, 1]} : vector<8x96xf32> to vector<8x32xf32>
    %29 = vector.extract_strided_slice %13 {offsets = [0, 32], sizes = [8, 32], strides = [1, 1]} : vector<8x96xf32> to vector<8x32xf32>
    %30 = arith.addf %28, %29 : vector<8x32xf32>
    %31 = arith.negf %30 : vector<8x32xf32>
    %32 = math.exp %31 : vector<8x32xf32>
    %cst_16 = arith.constant 1.000000e+00 : f32
    %33 = vector.broadcast %cst_16 : f32 to vector<8x32xf32>
    %34 = arith.addf %33, %32 : vector<8x32xf32>
    %35 = arith.divf %33, %34 : vector<8x32xf32>
    %36 = vector.extract_strided_slice %19 {offsets = [0, 64], sizes = [8, 32], strides = [1, 1]} : vector<8x96xf32> to vector<8x32xf32>
    %37 = vector.extract_strided_slice %13 {offsets = [0, 64], sizes = [8, 32], strides = [1, 1]} : vector<8x96xf32> to vector<8x32xf32>
    %38 = vector.broadcast %5 : vector<1x32xf32> to vector<8x32xf32>
    %39 = arith.addf %37, %38 : vector<8x32xf32>
    %40 = arith.mulf %27, %39 : vector<8x32xf32>
    %41 = arith.addf %36, %40 : vector<8x32xf32>
    %42 = math.tanh %41 : vector<8x32xf32>
    %cst_17 = arith.constant 1.000000e+00 : f32
    %43 = vector.broadcast %cst_17 : f32 to vector<8x32xf32>
    %44 = arith.subf %43, %35 : vector<8x32xf32>
    %45 = arith.mulf %44, %42 : vector<8x32xf32>
    %46 = arith.mulf %35, %8 : vector<8x32xf32>
    %47 = arith.addf %45, %46 : vector<8x32xf32>
    %48 = vector.broadcast %16 : i32 to vector<8x1xi32>
    %49 = arith.cmpi slt, %48, %3 : vector<8x1xi32>
    %50 = vector.shape_cast %49 : vector<8x1xi1> to vector<8x1xi1>
    %51 = vector.broadcast %50 : vector<8x1xi1> to vector<8x32xi1>
    %52 = arith.select %51, %47, %8 : vector<8x32xi1>, vector<8x32xf32>
    %cst_18 = arith.constant 0.000000e+00 : f32
    %53 = vector.shape_cast %49 : vector<8x1xi1> to vector<8x1xi1>
    %54 = vector.broadcast %53 : vector<8x1xi1> to vector<8x32xi1>
    %55 = vector.broadcast %cst_18 : f32 to vector<8x32xf32>
    %56 = arith.select %54, %47, %55 : vector<8x32xi1>, vector<8x32xf32>
    %57 = arith.index_cast %c0_i32_12 : i32 to index
    %c0_19 = arith.constant 0 : index
    %c0_20 = arith.constant 0 : index
    %58 = vector.load %arg6[%57, %c0_19, %c0_20] : memref<8x8x32xf32, #tpu.memory_space<vmem>>, vector<1x8x32xf32>
    %59 = vector.shape_cast %58 : vector<1x8x32xf32> to vector<8x32xf32>
    %60 = vector.shape_cast %56 : vector<8x32xf32> to vector<1x8x32xf32>
    tpu.vector_store %arg6[%57, %c0_19, %c0_20], %60 {strides = array<i32>} : memref<8x8x32xf32, #tpu.memory_space<vmem>>, vector<1x8x32xf32>,
    %c7_i32 = arith.constant 7 : i32
    %61 = arith.subi %c7_i32, %c0_i32_12 : i32
    %c8_i32_21 = arith.constant 8 : i32
    %62 = arith.muli %arg0, %c8_i32_21 : i32
    %63 = arith.addi %62, %c0_i32_12 : i32
    %c15_i32 = arith.constant 15 : i32
    %64 = arith.subi %c15_i32, %63 : i32
    %65 = arith.index_cast %61 : i32 to index
    %c0_22 = arith.constant 0 : index
    %c0_23 = arith.constant 0 : index
    %66 = vector.load %arg3[%65, %c0_22, %c0_23] : memref<8x8x96xf32, #tpu.memory_space<vmem>>, vector<1x8x96xf32>
    %67 = vector.shape_cast %66 : vector<1x8x96xf32> to vector<8x96xf32>
    %68 = vector.extract_strided_slice %67 {offsets = [0, 0], sizes = [8, 32], strides = [1, 1]} : vector<8x96xf32> to vector<8x32xf32>
    %69 = vector.extract_strided_slice %14 {offsets = [0, 0], sizes = [8, 32], strides = [1, 1]} : vector<8x96xf32> to vector<8x32xf32>
    %70 = arith.addf %68, %69 : vector<8x32xf32>
    %71 = arith.negf %70 : vector<8x32xf32>
    %72 = math.exp %71 : vector<8x32xf32>
    %cst_24 = arith.constant 1.000000e+00 : f32
    %73 = vector.broadcast %cst_24 : f32 to vector<8x32xf32>
    %74 = arith.addf %73, %72 : vector<8x32xf32>
    %75 = arith.divf %73, %74 : vector<8x32xf32>
    %76 = vector.extract_strided_slice %67 {offsets = [0, 32], sizes = [8, 32], strides = [1, 1]} : vector<8x96xf32> to vector<8x32xf32>
    %77 = vector.extract_strided_slice %14 {offsets = [0, 32], sizes = [8, 32], strides = [1, 1]} : vector<8x96xf32> to vector<8x32xf32>
    %78 = arith.addf %76, %77 : vector<8x32xf32>
    %79 = arith.negf %78 : vector<8x32xf32>
    %80 = math.exp %79 : vector<8x32xf32>
    %cst_25 = arith.constant 1.000000e+00 : f32
    %81 = vector.broadcast %cst_25 : f32 to vector<8x32xf32>
    %82 = arith.addf %81, %80 : vector<8x32xf32>
    %83 = arith.divf %81, %82 : vector<8x32xf32>
    %84 = vector.extract_strided_slice %67 {offsets = [0, 64], sizes = [8, 32], strides = [1, 1]} : vector<8x96xf32> to vector<8x32xf32>
    %85 = vector.extract_strided_slice %14 {offsets = [0, 64], sizes = [8, 32], strides = [1, 1]} : vector<8x96xf32> to vector<8x32xf32>
    %86 = vector.broadcast %6 : vector<1x32xf32> to vector<8x32xf32>
    %87 = arith.addf %85, %86 : vector<8x32xf32>
    %88 = arith.mulf %75, %87 : vector<8x32xf32>
    %89 = arith.addf %84, %88 : vector<8x32xf32>
    %90 = math.tanh %89 : vector<8x32xf32>
    %cst_26 = arith.constant 1.000000e+00 : f32
    %91 = vector.broadcast %cst_26 : f32 to vector<8x32xf32>
    %92 = arith.subf %91, %83 : vector<8x32xf32>
    %93 = arith.mulf %92, %90 : vector<8x32xf32>
    %94 = arith.mulf %83, %10 : vector<8x32xf32>
    %95 = arith.addf %93, %94 : vector<8x32xf32>
    %96 = vector.broadcast %64 : i32 to vector<8x1xi32>
    %97 = arith.cmpi slt, %96, %3 : vector<8x1xi32>
    %98 = vector.shape_cast %97 : vector<8x1xi1> to vector<8x1xi1>
    %99 = vector.broadcast %98 : vector<8x1xi1> to vector<8x32xi1>
    %100 = arith.select %99, %95, %10 : vector<8x32xi1>, vector<8x32xf32>
    %cst_27 = arith.constant 0.000000e+00 : f32
    %101 = vector.shape_cast %97 : vector<8x1xi1> to vector<8x1xi1>
    %102 = vector.broadcast %101 : vector<8x1xi1> to vector<8x32xi1>
    %103 = vector.broadcast %cst_27 : f32 to vector<8x32xf32>
    %104 = arith.select %102, %95, %103 : vector<8x32xi1>, vector<8x32xf32>
    %105 = arith.index_cast %61 : i32 to index
    %c0_28 = arith.constant 0 : index
    %c0_29 = arith.constant 0 : index
    %106 = vector.load %arg7[%105, %c0_28, %c0_29] : memref<8x8x32xf32, #tpu.memory_space<vmem>>, vector<1x8x32xf32>
    %107 = vector.shape_cast %106 : vector<1x8x32xf32> to vector<8x32xf32>
    %108 = vector.shape_cast %104 : vector<8x32xf32> to vector<1x8x32xf32>
    tpu.vector_store %arg7[%105, %c0_28, %c0_29], %108 {strides = array<i32>} : memref<8x8x32xf32, #tpu.memory_space<vmem>>, vector<1x8x32xf32>,
    %c1_i32 = arith.constant 1 : i32
    %109 = tpu.concatenate %52, %100 in 1 : vector<8x32xf32>, vector<8x32xf32> -> vector<8x64xf32>
    %cst_30 = arith.constant dense<0.000000e+00> : vector<8x192xf32>
    %110 = tpu.matmul %109, %4, %cst_30 {dimension_numbers = #tpu.dot_dimension_numbers<[1], [0], [0], [1], [0, 0, 1, 1], [], []>} : vector<8x64xf32>, vector<64x192xf32>, vector<8x192xf32> -> vector<8x192xf32>
    %111 = vector.extract_strided_slice %110 {offsets = [0, 0], sizes = [8, 96], strides = [1, 1]} : vector<8x192xf32> to vector<8x96xf32>
    %112 = vector.extract_strided_slice %110 {offsets = [0, 96], sizes = [8, 96], strides = [1, 1]} : vector<8x192xf32> to vector<8x96xf32>
    %c8_i32_31 = arith.constant 8 : i32
    %113 = arith.muli %arg0, %c8_i32_31 : i32
    %114 = arith.addi %113, %c1_i32 : i32
    %115 = arith.index_cast %c1_i32 : i32 to index
    %c0_32 = arith.constant 0 : index
    %c0_33 = arith.constant 0 : index
    %116 = vector.load %arg2[%115, %c0_32, %c0_33] : memref<8x8x96xf32, #tpu.memory_space<vmem>>, vector<1x8x96xf32>
    %117 = vector.shape_cast %116 : vector<1x8x96xf32> to vector<8x96xf32>
    %118 = vector.extract_strided_slice %117 {offsets = [0, 0], sizes = [8, 32], strides = [1, 1]} : vector<8x96xf32> to vector<8x32xf32>
    %119 = vector.extract_strided_slice %111 {offsets = [0, 0], sizes = [8, 32], strides = [1, 1]} : vector<8x96xf32> to vector<8x32xf32>
    %120 = arith.addf %118, %119 : vector<8x32xf32>
    %121 = arith.negf %120 : vector<8x32xf32>
    %122 = math.exp %121 : vector<8x32xf32>
    %cst_34 = arith.constant 1.000000e+00 : f32
    %123 = vector.broadcast %cst_34 : f32 to vector<8x32xf32>
    %124 = arith.addf %123, %122 : vector<8x32xf32>
    %125 = arith.divf %123, %124 : vector<8x32xf32>
    %126 = vector.extract_strided_slice %117 {offsets = [0, 32], sizes = [8, 32], strides = [1, 1]} : vector<8x96xf32> to vector<8x32xf32>
    %127 = vector.extract_strided_slice %111 {offsets = [0, 32], sizes = [8, 32], strides = [1, 1]} : vector<8x96xf32> to vector<8x32xf32>
    %128 = arith.addf %126, %127 : vector<8x32xf32>
    %129 = arith.negf %128 : vector<8x32xf32>
    %130 = math.exp %129 : vector<8x32xf32>
    %cst_35 = arith.constant 1.000000e+00 : f32
    %131 = vector.broadcast %cst_35 : f32 to vector<8x32xf32>
    %132 = arith.addf %131, %130 : vector<8x32xf32>
    %133 = arith.divf %131, %132 : vector<8x32xf32>
    %134 = vector.extract_strided_slice %117 {offsets = [0, 64], sizes = [8, 32], strides = [1, 1]} : vector<8x96xf32> to vector<8x32xf32>
    %135 = vector.extract_strided_slice %111 {offsets = [0, 64], sizes = [8, 32], strides = [1, 1]} : vector<8x96xf32> to vector<8x32xf32>
    %136 = vector.broadcast %5 : vector<1x32xf32> to vector<8x32xf32>
    %137 = arith.addf %135, %136 : vector<8x32xf32>
    %138 = arith.mulf %125, %137 : vector<8x32xf32>
    %139 = arith.addf %134, %138 : vector<8x32xf32>
    %140 = math.tanh %139 : vector<8x32xf32>
    %cst_36 = arith.constant 1.000000e+00 : f32
    %141 = vector.broadcast %cst_36 : f32 to vector<8x32xf32>
    %142 = arith.subf %141, %133 : vector<8x32xf32>
    %143 = arith.mulf %142, %140 : vector<8x32xf32>
    %144 = arith.mulf %133, %52 : vector<8x32xf32>
    %145 = arith.addf %143, %144 : vector<8x32xf32>
    %146 = vector.broadcast %114 : i32 to vector<8x1xi32>
    %147 = arith.cmpi slt, %146, %3 : vector<8x1xi32>
    %148 = vector.shape_cast %147 : vector<8x1xi1> to vector<8x1xi1>
    %149 = vector.broadcast %148 : vector<8x1xi1> to vector<8x32xi1>
    %150 = arith.select %149, %145, %52 : vector<8x32xi1>, vector<8x32xf32>
    %cst_37 = arith.constant 0.000000e+00 : f32
    %151 = vector.shape_cast %147 : vector<8x1xi1> to vector<8x1xi1>
    %152 = vector.broadcast %151 : vector<8x1xi1> to vector<8x32xi1>
    %153 = vector.broadcast %cst_37 : f32 to vector<8x32xf32>
    %154 = arith.select %152, %145, %153 : vector<8x32xi1>, vector<8x32xf32>
    %155 = arith.index_cast %c1_i32 : i32 to index
    %c0_38 = arith.constant 0 : index
    %c0_39 = arith.constant 0 : index
    %156 = vector.load %arg6[%155, %c0_38, %c0_39] : memref<8x8x32xf32, #tpu.memory_space<vmem>>, vector<1x8x32xf32>
    %157 = vector.shape_cast %156 : vector<1x8x32xf32> to vector<8x32xf32>
    %158 = vector.shape_cast %154 : vector<8x32xf32> to vector<1x8x32xf32>
    tpu.vector_store %arg6[%155, %c0_38, %c0_39], %158 {strides = array<i32>} : memref<8x8x32xf32, #tpu.memory_space<vmem>>, vector<1x8x32xf32>,
    %c7_i32_40 = arith.constant 7 : i32
    %159 = arith.subi %c7_i32_40, %c1_i32 : i32
    %c8_i32_41 = arith.constant 8 : i32
    %160 = arith.muli %arg0, %c8_i32_41 : i32
    %161 = arith.addi %160, %c1_i32 : i32
    %c15_i32_42 = arith.constant 15 : i32
    %162 = arith.subi %c15_i32_42, %161 : i32
    %163 = arith.index_cast %159 : i32 to index
    %c0_43 = arith.constant 0 : index
    %c0_44 = arith.constant 0 : index
    %164 = vector.load %arg3[%163, %c0_43, %c0_44] : memref<8x8x96xf32, #tpu.memory_space<vmem>>, vector<1x8x96xf32>
    %165 = vector.shape_cast %164 : vector<1x8x96xf32> to vector<8x96xf32>
    %166 = vector.extract_strided_slice %165 {offsets = [0, 0], sizes = [8, 32], strides = [1, 1]} : vector<8x96xf32> to vector<8x32xf32>
    %167 = vector.extract_strided_slice %112 {offsets = [0, 0], sizes = [8, 32], strides = [1, 1]} : vector<8x96xf32> to vector<8x32xf32>
    %168 = arith.addf %166, %167 : vector<8x32xf32>
    %169 = arith.negf %168 : vector<8x32xf32>
    %170 = math.exp %169 : vector<8x32xf32>
    %cst_45 = arith.constant 1.000000e+00 : f32
    %171 = vector.broadcast %cst_45 : f32 to vector<8x32xf32>
    %172 = arith.addf %171, %170 : vector<8x32xf32>
    %173 = arith.divf %171, %172 : vector<8x32xf32>
    %174 = vector.extract_strided_slice %165 {offsets = [0, 32], sizes = [8, 32], strides = [1, 1]} : vector<8x96xf32> to vector<8x32xf32>
    %175 = vector.extract_strided_slice %112 {offsets = [0, 32], sizes = [8, 32], strides = [1, 1]} : vector<8x96xf32> to vector<8x32xf32>
    %176 = arith.addf %174, %175 : vector<8x32xf32>
    %177 = arith.negf %176 : vector<8x32xf32>
    %178 = math.exp %177 : vector<8x32xf32>
    %cst_46 = arith.constant 1.000000e+00 : f32
    %179 = vector.broadcast %cst_46 : f32 to vector<8x32xf32>
    %180 = arith.addf %179, %178 : vector<8x32xf32>
    %181 = arith.divf %179, %180 : vector<8x32xf32>
    %182 = vector.extract_strided_slice %165 {offsets = [0, 64], sizes = [8, 32], strides = [1, 1]} : vector<8x96xf32> to vector<8x32xf32>
    %183 = vector.extract_strided_slice %112 {offsets = [0, 64], sizes = [8, 32], strides = [1, 1]} : vector<8x96xf32> to vector<8x32xf32>
    %184 = vector.broadcast %6 : vector<1x32xf32> to vector<8x32xf32>
    %185 = arith.addf %183, %184 : vector<8x32xf32>
    %186 = arith.mulf %173, %185 : vector<8x32xf32>
    %187 = arith.addf %182, %186 : vector<8x32xf32>
    %188 = math.tanh %187 : vector<8x32xf32>
    %cst_47 = arith.constant 1.000000e+00 : f32
    %189 = vector.broadcast %cst_47 : f32 to vector<8x32xf32>
    %190 = arith.subf %189, %181 : vector<8x32xf32>
    %191 = arith.mulf %190, %188 : vector<8x32xf32>
    %192 = arith.mulf %181, %100 : vector<8x32xf32>
    %193 = arith.addf %191, %192 : vector<8x32xf32>
    %194 = vector.broadcast %162 : i32 to vector<8x1xi32>
    %195 = arith.cmpi slt, %194, %3 : vector<8x1xi32>
    %196 = vector.shape_cast %195 : vector<8x1xi1> to vector<8x1xi1>
    %197 = vector.broadcast %196 : vector<8x1xi1> to vector<8x32xi1>
    %198 = arith.select %197, %193, %100 : vector<8x32xi1>, vector<8x32xf32>
    %cst_48 = arith.constant 0.000000e+00 : f32
    %199 = vector.shape_cast %195 : vector<8x1xi1> to vector<8x1xi1>
    %200 = vector.broadcast %199 : vector<8x1xi1> to vector<8x32xi1>
    %201 = vector.broadcast %cst_48 : f32 to vector<8x32xf32>
    %202 = arith.select %200, %193, %201 : vector<8x32xi1>, vector<8x32xf32>
    %203 = arith.index_cast %159 : i32 to index
    %c0_49 = arith.constant 0 : index
    %c0_50 = arith.constant 0 : index
    %204 = vector.load %arg7[%203, %c0_49, %c0_50] : memref<8x8x32xf32, #tpu.memory_space<vmem>>, vector<1x8x32xf32>
    %205 = vector.shape_cast %204 : vector<1x8x32xf32> to vector<8x32xf32>
    %206 = vector.shape_cast %202 : vector<8x32xf32> to vector<1x8x32xf32>
    tpu.vector_store %arg7[%203, %c0_49, %c0_50], %206 {strides = array<i32>} : memref<8x8x32xf32, #tpu.memory_space<vmem>>, vector<1x8x32xf32>,
    %c2_i32 = arith.constant 2 : i32
    %207 = tpu.concatenate %150, %198 in 1 : vector<8x32xf32>, vector<8x32xf32> -> vector<8x64xf32>
    %cst_51 = arith.constant dense<0.000000e+00> : vector<8x192xf32>
    %208 = tpu.matmul %207, %4, %cst_51 {dimension_numbers = #tpu.dot_dimension_numbers<[1], [0], [0], [1], [0, 0, 1, 1], [], []>} : vector<8x64xf32>, vector<64x192xf32>, vector<8x192xf32> -> vector<8x192xf32>
    %209 = vector.extract_strided_slice %208 {offsets = [0, 0], sizes = [8, 96], strides = [1, 1]} : vector<8x192xf32> to vector<8x96xf32>
    %210 = vector.extract_strided_slice %208 {offsets = [0, 96], sizes = [8, 96], strides = [1, 1]} : vector<8x192xf32> to vector<8x96xf32>
    %c8_i32_52 = arith.constant 8 : i32
    %211 = arith.muli %arg0, %c8_i32_52 : i32
    %212 = arith.addi %211, %c2_i32 : i32
    %213 = arith.index_cast %c2_i32 : i32 to index
    %c0_53 = arith.constant 0 : index
    %c0_54 = arith.constant 0 : index
    %214 = vector.load %arg2[%213, %c0_53, %c0_54] : memref<8x8x96xf32, #tpu.memory_space<vmem>>, vector<1x8x96xf32>
    %215 = vector.shape_cast %214 : vector<1x8x96xf32> to vector<8x96xf32>
    %216 = vector.extract_strided_slice %215 {offsets = [0, 0], sizes = [8, 32], strides = [1, 1]} : vector<8x96xf32> to vector<8x32xf32>
    %217 = vector.extract_strided_slice %209 {offsets = [0, 0], sizes = [8, 32], strides = [1, 1]} : vector<8x96xf32> to vector<8x32xf32>
    %218 = arith.addf %216, %217 : vector<8x32xf32>
    %219 = arith.negf %218 : vector<8x32xf32>
    %220 = math.exp %219 : vector<8x32xf32>
    %cst_55 = arith.constant 1.000000e+00 : f32
    %221 = vector.broadcast %cst_55 : f32 to vector<8x32xf32>
    %222 = arith.addf %221, %220 : vector<8x32xf32>
    %223 = arith.divf %221, %222 : vector<8x32xf32>
    %224 = vector.extract_strided_slice %215 {offsets = [0, 32], sizes = [8, 32], strides = [1, 1]} : vector<8x96xf32> to vector<8x32xf32>
    %225 = vector.extract_strided_slice %209 {offsets = [0, 32], sizes = [8, 32], strides = [1, 1]} : vector<8x96xf32> to vector<8x32xf32>
    %226 = arith.addf %224, %225 : vector<8x32xf32>
    %227 = arith.negf %226 : vector<8x32xf32>
    %228 = math.exp %227 : vector<8x32xf32>
    %cst_56 = arith.constant 1.000000e+00 : f32
    %229 = vector.broadcast %cst_56 : f32 to vector<8x32xf32>
    %230 = arith.addf %229, %228 : vector<8x32xf32>
    %231 = arith.divf %229, %230 : vector<8x32xf32>
    %232 = vector.extract_strided_slice %215 {offsets = [0, 64], sizes = [8, 32], strides = [1, 1]} : vector<8x96xf32> to vector<8x32xf32>
    %233 = vector.extract_strided_slice %209 {offsets = [0, 64], sizes = [8, 32], strides = [1, 1]} : vector<8x96xf32> to vector<8x32xf32>
    %234 = vector.broadcast %5 : vector<1x32xf32> to vector<8x32xf32>
    %235 = arith.addf %233, %234 : vector<8x32xf32>
    %236 = arith.mulf %223, %235 : vector<8x32xf32>
    %237 = arith.addf %232, %236 : vector<8x32xf32>
    %238 = math.tanh %237 : vector<8x32xf32>
    %cst_57 = arith.constant 1.000000e+00 : f32
    %239 = vector.broadcast %cst_57 : f32 to vector<8x32xf32>
    %240 = arith.subf %239, %231 : vector<8x32xf32>
    %241 = arith.mulf %240, %238 : vector<8x32xf32>
    %242 = arith.mulf %231, %150 : vector<8x32xf32>
    %243 = arith.addf %241, %242 : vector<8x32xf32>
    %244 = vector.broadcast %212 : i32 to vector<8x1xi32>
    %245 = arith.cmpi slt, %244, %3 : vector<8x1xi32>
    %246 = vector.shape_cast %245 : vector<8x1xi1> to vector<8x1xi1>
    %247 = vector.broadcast %246 : vector<8x1xi1> to vector<8x32xi1>
    %248 = arith.select %247, %243, %150 : vector<8x32xi1>, vector<8x32xf32>
    %cst_58 = arith.constant 0.000000e+00 : f32
    %249 = vector.shape_cast %245 : vector<8x1xi1> to vector<8x1xi1>
    %250 = vector.broadcast %249 : vector<8x1xi1> to vector<8x32xi1>
    %251 = vector.broadcast %cst_58 : f32 to vector<8x32xf32>
    %252 = arith.select %250, %243, %251 : vector<8x32xi1>, vector<8x32xf32>
    %253 = arith.index_cast %c2_i32 : i32 to index
    %c0_59 = arith.constant 0 : index
    %c0_60 = arith.constant 0 : index
    %254 = vector.load %arg6[%253, %c0_59, %c0_60] : memref<8x8x32xf32, #tpu.memory_space<vmem>>, vector<1x8x32xf32>
    %255 = vector.shape_cast %254 : vector<1x8x32xf32> to vector<8x32xf32>
    %256 = vector.shape_cast %252 : vector<8x32xf32> to vector<1x8x32xf32>
    tpu.vector_store %arg6[%253, %c0_59, %c0_60], %256 {strides = array<i32>} : memref<8x8x32xf32, #tpu.memory_space<vmem>>, vector<1x8x32xf32>,
    %c7_i32_61 = arith.constant 7 : i32
    %257 = arith.subi %c7_i32_61, %c2_i32 : i32
    %c8_i32_62 = arith.constant 8 : i32
    %258 = arith.muli %arg0, %c8_i32_62 : i32
    %259 = arith.addi %258, %c2_i32 : i32
    %c15_i32_63 = arith.constant 15 : i32
    %260 = arith.subi %c15_i32_63, %259 : i32
    %261 = arith.index_cast %257 : i32 to index
    %c0_64 = arith.constant 0 : index
    %c0_65 = arith.constant 0 : index
    %262 = vector.load %arg3[%261, %c0_64, %c0_65] : memref<8x8x96xf32, #tpu.memory_space<vmem>>, vector<1x8x96xf32>
    %263 = vector.shape_cast %262 : vector<1x8x96xf32> to vector<8x96xf32>
    %264 = vector.extract_strided_slice %263 {offsets = [0, 0], sizes = [8, 32], strides = [1, 1]} : vector<8x96xf32> to vector<8x32xf32>
    %265 = vector.extract_strided_slice %210 {offsets = [0, 0], sizes = [8, 32], strides = [1, 1]} : vector<8x96xf32> to vector<8x32xf32>
    %266 = arith.addf %264, %265 : vector<8x32xf32>
    %267 = arith.negf %266 : vector<8x32xf32>
    %268 = math.exp %267 : vector<8x32xf32>
    %cst_66 = arith.constant 1.000000e+00 : f32
    %269 = vector.broadcast %cst_66 : f32 to vector<8x32xf32>
    %270 = arith.addf %269, %268 : vector<8x32xf32>
    %271 = arith.divf %269, %270 : vector<8x32xf32>
    %272 = vector.extract_strided_slice %263 {offsets = [0, 32], sizes = [8, 32], strides = [1, 1]} : vector<8x96xf32> to vector<8x32xf32>
    %273 = vector.extract_strided_slice %210 {offsets = [0, 32], sizes = [8, 32], strides = [1, 1]} : vector<8x96xf32> to vector<8x32xf32>
    %274 = arith.addf %272, %273 : vector<8x32xf32>
    %275 = arith.negf %274 : vector<8x32xf32>
    %276 = math.exp %275 : vector<8x32xf32>
    %cst_67 = arith.constant 1.000000e+00 : f32
    %277 = vector.broadcast %cst_67 : f32 to vector<8x32xf32>
    %278 = arith.addf %277, %276 : vector<8x32xf32>
    %279 = arith.divf %277, %278 : vector<8x32xf32>
    %280 = vector.extract_strided_slice %263 {offsets = [0, 64], sizes = [8, 32], strides = [1, 1]} : vector<8x96xf32> to vector<8x32xf32>
    %281 = vector.extract_strided_slice %210 {offsets = [0, 64], sizes = [8, 32], strides = [1, 1]} : vector<8x96xf32> to vector<8x32xf32>
    %282 = vector.broadcast %6 : vector<1x32xf32> to vector<8x32xf32>
    %283 = arith.addf %281, %282 : vector<8x32xf32>
    %284 = arith.mulf %271, %283 : vector<8x32xf32>
    %285 = arith.addf %280, %284 : vector<8x32xf32>
    %286 = math.tanh %285 : vector<8x32xf32>
    %cst_68 = arith.constant 1.000000e+00 : f32
    %287 = vector.broadcast %cst_68 : f32 to vector<8x32xf32>
    %288 = arith.subf %287, %279 : vector<8x32xf32>
    %289 = arith.mulf %288, %286 : vector<8x32xf32>
    %290 = arith.mulf %279, %198 : vector<8x32xf32>
    %291 = arith.addf %289, %290 : vector<8x32xf32>
    %292 = vector.broadcast %260 : i32 to vector<8x1xi32>
    %293 = arith.cmpi slt, %292, %3 : vector<8x1xi32>
    %294 = vector.shape_cast %293 : vector<8x1xi1> to vector<8x1xi1>
    %295 = vector.broadcast %294 : vector<8x1xi1> to vector<8x32xi1>
    %296 = arith.select %295, %291, %198 : vector<8x32xi1>, vector<8x32xf32>
    %cst_69 = arith.constant 0.000000e+00 : f32
    %297 = vector.shape_cast %293 : vector<8x1xi1> to vector<8x1xi1>
    %298 = vector.broadcast %297 : vector<8x1xi1> to vector<8x32xi1>
    %299 = vector.broadcast %cst_69 : f32 to vector<8x32xf32>
    %300 = arith.select %298, %291, %299 : vector<8x32xi1>, vector<8x32xf32>
    %301 = arith.index_cast %257 : i32 to index
    %c0_70 = arith.constant 0 : index
    %c0_71 = arith.constant 0 : index
    %302 = vector.load %arg7[%301, %c0_70, %c0_71] : memref<8x8x32xf32, #tpu.memory_space<vmem>>, vector<1x8x32xf32>
    %303 = vector.shape_cast %302 : vector<1x8x32xf32> to vector<8x32xf32>
    %304 = vector.shape_cast %300 : vector<8x32xf32> to vector<1x8x32xf32>
    tpu.vector_store %arg7[%301, %c0_70, %c0_71], %304 {strides = array<i32>} : memref<8x8x32xf32, #tpu.memory_space<vmem>>, vector<1x8x32xf32>,
    %c3_i32 = arith.constant 3 : i32
    %305 = tpu.concatenate %248, %296 in 1 : vector<8x32xf32>, vector<8x32xf32> -> vector<8x64xf32>
    %cst_72 = arith.constant dense<0.000000e+00> : vector<8x192xf32>
    %306 = tpu.matmul %305, %4, %cst_72 {dimension_numbers = #tpu.dot_dimension_numbers<[1], [0], [0], [1], [0, 0, 1, 1], [], []>} : vector<8x64xf32>, vector<64x192xf32>, vector<8x192xf32> -> vector<8x192xf32>
    %307 = vector.extract_strided_slice %306 {offsets = [0, 0], sizes = [8, 96], strides = [1, 1]} : vector<8x192xf32> to vector<8x96xf32>
    %308 = vector.extract_strided_slice %306 {offsets = [0, 96], sizes = [8, 96], strides = [1, 1]} : vector<8x192xf32> to vector<8x96xf32>
    %c8_i32_73 = arith.constant 8 : i32
    %309 = arith.muli %arg0, %c8_i32_73 : i32
    %310 = arith.addi %309, %c3_i32 : i32
    %311 = arith.index_cast %c3_i32 : i32 to index
    %c0_74 = arith.constant 0 : index
    %c0_75 = arith.constant 0 : index
    %312 = vector.load %arg2[%311, %c0_74, %c0_75] : memref<8x8x96xf32, #tpu.memory_space<vmem>>, vector<1x8x96xf32>
    %313 = vector.shape_cast %312 : vector<1x8x96xf32> to vector<8x96xf32>
    %314 = vector.extract_strided_slice %313 {offsets = [0, 0], sizes = [8, 32], strides = [1, 1]} : vector<8x96xf32> to vector<8x32xf32>
    %315 = vector.extract_strided_slice %307 {offsets = [0, 0], sizes = [8, 32], strides = [1, 1]} : vector<8x96xf32> to vector<8x32xf32>
    %316 = arith.addf %314, %315 : vector<8x32xf32>
    %317 = arith.negf %316 : vector<8x32xf32>
    %318 = math.exp %317 : vector<8x32xf32>
    %cst_76 = arith.constant 1.000000e+00 : f32
    %319 = vector.broadcast %cst_76 : f32 to vector<8x32xf32>
    %320 = arith.addf %319, %318 : vector<8x32xf32>
    %321 = arith.divf %319, %320 : vector<8x32xf32>
    %322 = vector.extract_strided_slice %313 {offsets = [0, 32], sizes = [8, 32], strides = [1, 1]} : vector<8x96xf32> to vector<8x32xf32>
    %323 = vector.extract_strided_slice %307 {offsets = [0, 32], sizes = [8, 32], strides = [1, 1]} : vector<8x96xf32> to vector<8x32xf32>
    %324 = arith.addf %322, %323 : vector<8x32xf32>
    %325 = arith.negf %324 : vector<8x32xf32>
    %326 = math.exp %325 : vector<8x32xf32>
    %cst_77 = arith.constant 1.000000e+00 : f32
    %327 = vector.broadcast %cst_77 : f32 to vector<8x32xf32>
    %328 = arith.addf %327, %326 : vector<8x32xf32>
    %329 = arith.divf %327, %328 : vector<8x32xf32>
    %330 = vector.extract_strided_slice %313 {offsets = [0, 64], sizes = [8, 32], strides = [1, 1]} : vector<8x96xf32> to vector<8x32xf32>
    %331 = vector.extract_strided_slice %307 {offsets = [0, 64], sizes = [8, 32], strides = [1, 1]} : vector<8x96xf32> to vector<8x32xf32>
    %332 = vector.broadcast %5 : vector<1x32xf32> to vector<8x32xf32>
    %333 = arith.addf %331, %332 : vector<8x32xf32>
    %334 = arith.mulf %321, %333 : vector<8x32xf32>
    %335 = arith.addf %330, %334 : vector<8x32xf32>
    %336 = math.tanh %335 : vector<8x32xf32>
    %cst_78 = arith.constant 1.000000e+00 : f32
    %337 = vector.broadcast %cst_78 : f32 to vector<8x32xf32>
    %338 = arith.subf %337, %329 : vector<8x32xf32>
    %339 = arith.mulf %338, %336 : vector<8x32xf32>
    %340 = arith.mulf %329, %248 : vector<8x32xf32>
    %341 = arith.addf %339, %340 : vector<8x32xf32>
    %342 = vector.broadcast %310 : i32 to vector<8x1xi32>
    %343 = arith.cmpi slt, %342, %3 : vector<8x1xi32>
    %344 = vector.shape_cast %343 : vector<8x1xi1> to vector<8x1xi1>
    %345 = vector.broadcast %344 : vector<8x1xi1> to vector<8x32xi1>
    %346 = arith.select %345, %341, %248 : vector<8x32xi1>, vector<8x32xf32>
    %cst_79 = arith.constant 0.000000e+00 : f32
    %347 = vector.shape_cast %343 : vector<8x1xi1> to vector<8x1xi1>
    %348 = vector.broadcast %347 : vector<8x1xi1> to vector<8x32xi1>
    %349 = vector.broadcast %cst_79 : f32 to vector<8x32xf32>
    %350 = arith.select %348, %341, %349 : vector<8x32xi1>, vector<8x32xf32>
    %351 = arith.index_cast %c3_i32 : i32 to index
    %c0_80 = arith.constant 0 : index
    %c0_81 = arith.constant 0 : index
    %352 = vector.load %arg6[%351, %c0_80, %c0_81] : memref<8x8x32xf32, #tpu.memory_space<vmem>>, vector<1x8x32xf32>
    %353 = vector.shape_cast %352 : vector<1x8x32xf32> to vector<8x32xf32>
    %354 = vector.shape_cast %350 : vector<8x32xf32> to vector<1x8x32xf32>
    tpu.vector_store %arg6[%351, %c0_80, %c0_81], %354 {strides = array<i32>} : memref<8x8x32xf32, #tpu.memory_space<vmem>>, vector<1x8x32xf32>,
    %c7_i32_82 = arith.constant 7 : i32
    %355 = arith.subi %c7_i32_82, %c3_i32 : i32
    %c8_i32_83 = arith.constant 8 : i32
    %356 = arith.muli %arg0, %c8_i32_83 : i32
    %357 = arith.addi %356, %c3_i32 : i32
    %c15_i32_84 = arith.constant 15 : i32
    %358 = arith.subi %c15_i32_84, %357 : i32
    %359 = arith.index_cast %355 : i32 to index
    %c0_85 = arith.constant 0 : index
    %c0_86 = arith.constant 0 : index
    %360 = vector.load %arg3[%359, %c0_85, %c0_86] : memref<8x8x96xf32, #tpu.memory_space<vmem>>, vector<1x8x96xf32>
    %361 = vector.shape_cast %360 : vector<1x8x96xf32> to vector<8x96xf32>
    %362 = vector.extract_strided_slice %361 {offsets = [0, 0], sizes = [8, 32], strides = [1, 1]} : vector<8x96xf32> to vector<8x32xf32>
    %363 = vector.extract_strided_slice %308 {offsets = [0, 0], sizes = [8, 32], strides = [1, 1]} : vector<8x96xf32> to vector<8x32xf32>
    %364 = arith.addf %362, %363 : vector<8x32xf32>
    %365 = arith.negf %364 : vector<8x32xf32>
    %366 = math.exp %365 : vector<8x32xf32>
    %cst_87 = arith.constant 1.000000e+00 : f32
    %367 = vector.broadcast %cst_87 : f32 to vector<8x32xf32>
    %368 = arith.addf %367, %366 : vector<8x32xf32>
    %369 = arith.divf %367, %368 : vector<8x32xf32>
    %370 = vector.extract_strided_slice %361 {offsets = [0, 32], sizes = [8, 32], strides = [1, 1]} : vector<8x96xf32> to vector<8x32xf32>
    %371 = vector.extract_strided_slice %308 {offsets = [0, 32], sizes = [8, 32], strides = [1, 1]} : vector<8x96xf32> to vector<8x32xf32>
    %372 = arith.addf %370, %371 : vector<8x32xf32>
    %373 = arith.negf %372 : vector<8x32xf32>
    %374 = math.exp %373 : vector<8x32xf32>
    %cst_88 = arith.constant 1.000000e+00 : f32
    %375 = vector.broadcast %cst_88 : f32 to vector<8x32xf32>
    %376 = arith.addf %375, %374 : vector<8x32xf32>
    %377 = arith.divf %375, %376 : vector<8x32xf32>
    %378 = vector.extract_strided_slice %361 {offsets = [0, 64], sizes = [8, 32], strides = [1, 1]} : vector<8x96xf32> to vector<8x32xf32>
    %379 = vector.extract_strided_slice %308 {offsets = [0, 64], sizes = [8, 32], strides = [1, 1]} : vector<8x96xf32> to vector<8x32xf32>
    %380 = vector.broadcast %6 : vector<1x32xf32> to vector<8x32xf32>
    %381 = arith.addf %379, %380 : vector<8x32xf32>
    %382 = arith.mulf %369, %381 : vector<8x32xf32>
    %383 = arith.addf %378, %382 : vector<8x32xf32>
    %384 = math.tanh %383 : vector<8x32xf32>
    %cst_89 = arith.constant 1.000000e+00 : f32
    %385 = vector.broadcast %cst_89 : f32 to vector<8x32xf32>
    %386 = arith.subf %385, %377 : vector<8x32xf32>
    %387 = arith.mulf %386, %384 : vector<8x32xf32>
    %388 = arith.mulf %377, %296 : vector<8x32xf32>
    %389 = arith.addf %387, %388 : vector<8x32xf32>
    %390 = vector.broadcast %358 : i32 to vector<8x1xi32>
    %391 = arith.cmpi slt, %390, %3 : vector<8x1xi32>
    %392 = vector.shape_cast %391 : vector<8x1xi1> to vector<8x1xi1>
    %393 = vector.broadcast %392 : vector<8x1xi1> to vector<8x32xi1>
    %394 = arith.select %393, %389, %296 : vector<8x32xi1>, vector<8x32xf32>
    %cst_90 = arith.constant 0.000000e+00 : f32
    %395 = vector.shape_cast %391 : vector<8x1xi1> to vector<8x1xi1>
    %396 = vector.broadcast %395 : vector<8x1xi1> to vector<8x32xi1>
    %397 = vector.broadcast %cst_90 : f32 to vector<8x32xf32>
    %398 = arith.select %396, %389, %397 : vector<8x32xi1>, vector<8x32xf32>
    %399 = arith.index_cast %355 : i32 to index
    %c0_91 = arith.constant 0 : index
    %c0_92 = arith.constant 0 : index
    %400 = vector.load %arg7[%399, %c0_91, %c0_92] : memref<8x8x32xf32, #tpu.memory_space<vmem>>, vector<1x8x32xf32>
    %401 = vector.shape_cast %400 : vector<1x8x32xf32> to vector<8x32xf32>
    %402 = vector.shape_cast %398 : vector<8x32xf32> to vector<1x8x32xf32>
    tpu.vector_store %arg7[%399, %c0_91, %c0_92], %402 {strides = array<i32>} : memref<8x8x32xf32, #tpu.memory_space<vmem>>, vector<1x8x32xf32>,
    %c4_i32 = arith.constant 4 : i32
    %403 = tpu.concatenate %346, %394 in 1 : vector<8x32xf32>, vector<8x32xf32> -> vector<8x64xf32>
    %cst_93 = arith.constant dense<0.000000e+00> : vector<8x192xf32>
    %404 = tpu.matmul %403, %4, %cst_93 {dimension_numbers = #tpu.dot_dimension_numbers<[1], [0], [0], [1], [0, 0, 1, 1], [], []>} : vector<8x64xf32>, vector<64x192xf32>, vector<8x192xf32> -> vector<8x192xf32>
    %405 = vector.extract_strided_slice %404 {offsets = [0, 0], sizes = [8, 96], strides = [1, 1]} : vector<8x192xf32> to vector<8x96xf32>
    %406 = vector.extract_strided_slice %404 {offsets = [0, 96], sizes = [8, 96], strides = [1, 1]} : vector<8x192xf32> to vector<8x96xf32>
    %c8_i32_94 = arith.constant 8 : i32
    %407 = arith.muli %arg0, %c8_i32_94 : i32
    %408 = arith.addi %407, %c4_i32 : i32
    %409 = arith.index_cast %c4_i32 : i32 to index
    %c0_95 = arith.constant 0 : index
    %c0_96 = arith.constant 0 : index
    %410 = vector.load %arg2[%409, %c0_95, %c0_96] : memref<8x8x96xf32, #tpu.memory_space<vmem>>, vector<1x8x96xf32>
    %411 = vector.shape_cast %410 : vector<1x8x96xf32> to vector<8x96xf32>
    %412 = vector.extract_strided_slice %411 {offsets = [0, 0], sizes = [8, 32], strides = [1, 1]} : vector<8x96xf32> to vector<8x32xf32>
    %413 = vector.extract_strided_slice %405 {offsets = [0, 0], sizes = [8, 32], strides = [1, 1]} : vector<8x96xf32> to vector<8x32xf32>
    %414 = arith.addf %412, %413 : vector<8x32xf32>
    %415 = arith.negf %414 : vector<8x32xf32>
    %416 = math.exp %415 : vector<8x32xf32>
    %cst_97 = arith.constant 1.000000e+00 : f32
    %417 = vector.broadcast %cst_97 : f32 to vector<8x32xf32>
    %418 = arith.addf %417, %416 : vector<8x32xf32>
    %419 = arith.divf %417, %418 : vector<8x32xf32>
    %420 = vector.extract_strided_slice %411 {offsets = [0, 32], sizes = [8, 32], strides = [1, 1]} : vector<8x96xf32> to vector<8x32xf32>
    %421 = vector.extract_strided_slice %405 {offsets = [0, 32], sizes = [8, 32], strides = [1, 1]} : vector<8x96xf32> to vector<8x32xf32>
    %422 = arith.addf %420, %421 : vector<8x32xf32>
    %423 = arith.negf %422 : vector<8x32xf32>
    %424 = math.exp %423 : vector<8x32xf32>
    %cst_98 = arith.constant 1.000000e+00 : f32
    %425 = vector.broadcast %cst_98 : f32 to vector<8x32xf32>
    %426 = arith.addf %425, %424 : vector<8x32xf32>
    %427 = arith.divf %425, %426 : vector<8x32xf32>
    %428 = vector.extract_strided_slice %411 {offsets = [0, 64], sizes = [8, 32], strides = [1, 1]} : vector<8x96xf32> to vector<8x32xf32>
    %429 = vector.extract_strided_slice %405 {offsets = [0, 64], sizes = [8, 32], strides = [1, 1]} : vector<8x96xf32> to vector<8x32xf32>
    %430 = vector.broadcast %5 : vector<1x32xf32> to vector<8x32xf32>
    %431 = arith.addf %429, %430 : vector<8x32xf32>
    %432 = arith.mulf %419, %431 : vector<8x32xf32>
    %433 = arith.addf %428, %432 : vector<8x32xf32>
    %434 = math.tanh %433 : vector<8x32xf32>
    %cst_99 = arith.constant 1.000000e+00 : f32
    %435 = vector.broadcast %cst_99 : f32 to vector<8x32xf32>
    %436 = arith.subf %435, %427 : vector<8x32xf32>
    %437 = arith.mulf %436, %434 : vector<8x32xf32>
    %438 = arith.mulf %427, %346 : vector<8x32xf32>
    %439 = arith.addf %437, %438 : vector<8x32xf32>
    %440 = vector.broadcast %408 : i32 to vector<8x1xi32>
    %441 = arith.cmpi slt, %440, %3 : vector<8x1xi32>
    %442 = vector.shape_cast %441 : vector<8x1xi1> to vector<8x1xi1>
    %443 = vector.broadcast %442 : vector<8x1xi1> to vector<8x32xi1>
    %444 = arith.select %443, %439, %346 : vector<8x32xi1>, vector<8x32xf32>
    %cst_100 = arith.constant 0.000000e+00 : f32
    %445 = vector.shape_cast %441 : vector<8x1xi1> to vector<8x1xi1>
    %446 = vector.broadcast %445 : vector<8x1xi1> to vector<8x32xi1>
    %447 = vector.broadcast %cst_100 : f32 to vector<8x32xf32>
    %448 = arith.select %446, %439, %447 : vector<8x32xi1>, vector<8x32xf32>
    %449 = arith.index_cast %c4_i32 : i32 to index
    %c0_101 = arith.constant 0 : index
    %c0_102 = arith.constant 0 : index
    %450 = vector.load %arg6[%449, %c0_101, %c0_102] : memref<8x8x32xf32, #tpu.memory_space<vmem>>, vector<1x8x32xf32>
    %451 = vector.shape_cast %450 : vector<1x8x32xf32> to vector<8x32xf32>
    %452 = vector.shape_cast %448 : vector<8x32xf32> to vector<1x8x32xf32>
    tpu.vector_store %arg6[%449, %c0_101, %c0_102], %452 {strides = array<i32>} : memref<8x8x32xf32, #tpu.memory_space<vmem>>, vector<1x8x32xf32>,
    %c7_i32_103 = arith.constant 7 : i32
    %453 = arith.subi %c7_i32_103, %c4_i32 : i32
    %c8_i32_104 = arith.constant 8 : i32
    %454 = arith.muli %arg0, %c8_i32_104 : i32
    %455 = arith.addi %454, %c4_i32 : i32
    %c15_i32_105 = arith.constant 15 : i32
    %456 = arith.subi %c15_i32_105, %455 : i32
    %457 = arith.index_cast %453 : i32 to index
    %c0_106 = arith.constant 0 : index
    %c0_107 = arith.constant 0 : index
    %458 = vector.load %arg3[%457, %c0_106, %c0_107] : memref<8x8x96xf32, #tpu.memory_space<vmem>>, vector<1x8x96xf32>
    %459 = vector.shape_cast %458 : vector<1x8x96xf32> to vector<8x96xf32>
    %460 = vector.extract_strided_slice %459 {offsets = [0, 0], sizes = [8, 32], strides = [1, 1]} : vector<8x96xf32> to vector<8x32xf32>
    %461 = vector.extract_strided_slice %406 {offsets = [0, 0], sizes = [8, 32], strides = [1, 1]} : vector<8x96xf32> to vector<8x32xf32>
    %462 = arith.addf %460, %461 : vector<8x32xf32>
    %463 = arith.negf %462 : vector<8x32xf32>
    %464 = math.exp %463 : vector<8x32xf32>
    %cst_108 = arith.constant 1.000000e+00 : f32
    %465 = vector.broadcast %cst_108 : f32 to vector<8x32xf32>
    %466 = arith.addf %465, %464 : vector<8x32xf32>
    %467 = arith.divf %465, %466 : vector<8x32xf32>
    %468 = vector.extract_strided_slice %459 {offsets = [0, 32], sizes = [8, 32], strides = [1, 1]} : vector<8x96xf32> to vector<8x32xf32>
    %469 = vector.extract_strided_slice %406 {offsets = [0, 32], sizes = [8, 32], strides = [1, 1]} : vector<8x96xf32> to vector<8x32xf32>
    %470 = arith.addf %468, %469 : vector<8x32xf32>
    %471 = arith.negf %470 : vector<8x32xf32>
    %472 = math.exp %471 : vector<8x32xf32>
    %cst_109 = arith.constant 1.000000e+00 : f32
    %473 = vector.broadcast %cst_109 : f32 to vector<8x32xf32>
    %474 = arith.addf %473, %472 : vector<8x32xf32>
    %475 = arith.divf %473, %474 : vector<8x32xf32>
    %476 = vector.extract_strided_slice %459 {offsets = [0, 64], sizes = [8, 32], strides = [1, 1]} : vector<8x96xf32> to vector<8x32xf32>
    %477 = vector.extract_strided_slice %406 {offsets = [0, 64], sizes = [8, 32], strides = [1, 1]} : vector<8x96xf32> to vector<8x32xf32>
    %478 = vector.broadcast %6 : vector<1x32xf32> to vector<8x32xf32>
    %479 = arith.addf %477, %478 : vector<8x32xf32>
    %480 = arith.mulf %467, %479 : vector<8x32xf32>
    %481 = arith.addf %476, %480 : vector<8x32xf32>
    %482 = math.tanh %481 : vector<8x32xf32>
    %cst_110 = arith.constant 1.000000e+00 : f32
    %483 = vector.broadcast %cst_110 : f32 to vector<8x32xf32>
    %484 = arith.subf %483, %475 : vector<8x32xf32>
    %485 = arith.mulf %484, %482 : vector<8x32xf32>
    %486 = arith.mulf %475, %394 : vector<8x32xf32>
    %487 = arith.addf %485, %486 : vector<8x32xf32>
    %488 = vector.broadcast %456 : i32 to vector<8x1xi32>
    %489 = arith.cmpi slt, %488, %3 : vector<8x1xi32>
    %490 = vector.shape_cast %489 : vector<8x1xi1> to vector<8x1xi1>
    %491 = vector.broadcast %490 : vector<8x1xi1> to vector<8x32xi1>
    %492 = arith.select %491, %487, %394 : vector<8x32xi1>, vector<8x32xf32>
    %cst_111 = arith.constant 0.000000e+00 : f32
    %493 = vector.shape_cast %489 : vector<8x1xi1> to vector<8x1xi1>
    %494 = vector.broadcast %493 : vector<8x1xi1> to vector<8x32xi1>
    %495 = vector.broadcast %cst_111 : f32 to vector<8x32xf32>
    %496 = arith.select %494, %487, %495 : vector<8x32xi1>, vector<8x32xf32>
    %497 = arith.index_cast %453 : i32 to index
    %c0_112 = arith.constant 0 : index
    %c0_113 = arith.constant 0 : index
    %498 = vector.load %arg7[%497, %c0_112, %c0_113] : memref<8x8x32xf32, #tpu.memory_space<vmem>>, vector<1x8x32xf32>
    %499 = vector.shape_cast %498 : vector<1x8x32xf32> to vector<8x32xf32>
    %500 = vector.shape_cast %496 : vector<8x32xf32> to vector<1x8x32xf32>
    tpu.vector_store %arg7[%497, %c0_112, %c0_113], %500 {strides = array<i32>} : memref<8x8x32xf32, #tpu.memory_space<vmem>>, vector<1x8x32xf32>,
    %c5_i32 = arith.constant 5 : i32
    %501 = tpu.concatenate %444, %492 in 1 : vector<8x32xf32>, vector<8x32xf32> -> vector<8x64xf32>
    %cst_114 = arith.constant dense<0.000000e+00> : vector<8x192xf32>
    %502 = tpu.matmul %501, %4, %cst_114 {dimension_numbers = #tpu.dot_dimension_numbers<[1], [0], [0], [1], [0, 0, 1, 1], [], []>} : vector<8x64xf32>, vector<64x192xf32>, vector<8x192xf32> -> vector<8x192xf32>
    %503 = vector.extract_strided_slice %502 {offsets = [0, 0], sizes = [8, 96], strides = [1, 1]} : vector<8x192xf32> to vector<8x96xf32>
    %504 = vector.extract_strided_slice %502 {offsets = [0, 96], sizes = [8, 96], strides = [1, 1]} : vector<8x192xf32> to vector<8x96xf32>
    %c8_i32_115 = arith.constant 8 : i32
    %505 = arith.muli %arg0, %c8_i32_115 : i32
    %506 = arith.addi %505, %c5_i32 : i32
    %507 = arith.index_cast %c5_i32 : i32 to index
    %c0_116 = arith.constant 0 : index
    %c0_117 = arith.constant 0 : index
    %508 = vector.load %arg2[%507, %c0_116, %c0_117] : memref<8x8x96xf32, #tpu.memory_space<vmem>>, vector<1x8x96xf32>
    %509 = vector.shape_cast %508 : vector<1x8x96xf32> to vector<8x96xf32>
    %510 = vector.extract_strided_slice %509 {offsets = [0, 0], sizes = [8, 32], strides = [1, 1]} : vector<8x96xf32> to vector<8x32xf32>
    %511 = vector.extract_strided_slice %503 {offsets = [0, 0], sizes = [8, 32], strides = [1, 1]} : vector<8x96xf32> to vector<8x32xf32>
    %512 = arith.addf %510, %511 : vector<8x32xf32>
    %513 = arith.negf %512 : vector<8x32xf32>
    %514 = math.exp %513 : vector<8x32xf32>
    %cst_118 = arith.constant 1.000000e+00 : f32
    %515 = vector.broadcast %cst_118 : f32 to vector<8x32xf32>
    %516 = arith.addf %515, %514 : vector<8x32xf32>
    %517 = arith.divf %515, %516 : vector<8x32xf32>
    %518 = vector.extract_strided_slice %509 {offsets = [0, 32], sizes = [8, 32], strides = [1, 1]} : vector<8x96xf32> to vector<8x32xf32>
    %519 = vector.extract_strided_slice %503 {offsets = [0, 32], sizes = [8, 32], strides = [1, 1]} : vector<8x96xf32> to vector<8x32xf32>
    %520 = arith.addf %518, %519 : vector<8x32xf32>
    %521 = arith.negf %520 : vector<8x32xf32>
    %522 = math.exp %521 : vector<8x32xf32>
    %cst_119 = arith.constant 1.000000e+00 : f32
    %523 = vector.broadcast %cst_119 : f32 to vector<8x32xf32>
    %524 = arith.addf %523, %522 : vector<8x32xf32>
    %525 = arith.divf %523, %524 : vector<8x32xf32>
    %526 = vector.extract_strided_slice %509 {offsets = [0, 64], sizes = [8, 32], strides = [1, 1]} : vector<8x96xf32> to vector<8x32xf32>
    %527 = vector.extract_strided_slice %503 {offsets = [0, 64], sizes = [8, 32], strides = [1, 1]} : vector<8x96xf32> to vector<8x32xf32>
    %528 = vector.broadcast %5 : vector<1x32xf32> to vector<8x32xf32>
    %529 = arith.addf %527, %528 : vector<8x32xf32>
    %530 = arith.mulf %517, %529 : vector<8x32xf32>
    %531 = arith.addf %526, %530 : vector<8x32xf32>
    %532 = math.tanh %531 : vector<8x32xf32>
    %cst_120 = arith.constant 1.000000e+00 : f32
    %533 = vector.broadcast %cst_120 : f32 to vector<8x32xf32>
    %534 = arith.subf %533, %525 : vector<8x32xf32>
    %535 = arith.mulf %534, %532 : vector<8x32xf32>
    %536 = arith.mulf %525, %444 : vector<8x32xf32>
    %537 = arith.addf %535, %536 : vector<8x32xf32>
    %538 = vector.broadcast %506 : i32 to vector<8x1xi32>
    %539 = arith.cmpi slt, %538, %3 : vector<8x1xi32>
    %540 = vector.shape_cast %539 : vector<8x1xi1> to vector<8x1xi1>
    %541 = vector.broadcast %540 : vector<8x1xi1> to vector<8x32xi1>
    %542 = arith.select %541, %537, %444 : vector<8x32xi1>, vector<8x32xf32>
    %cst_121 = arith.constant 0.000000e+00 : f32
    %543 = vector.shape_cast %539 : vector<8x1xi1> to vector<8x1xi1>
    %544 = vector.broadcast %543 : vector<8x1xi1> to vector<8x32xi1>
    %545 = vector.broadcast %cst_121 : f32 to vector<8x32xf32>
    %546 = arith.select %544, %537, %545 : vector<8x32xi1>, vector<8x32xf32>
    %547 = arith.index_cast %c5_i32 : i32 to index
    %c0_122 = arith.constant 0 : index
    %c0_123 = arith.constant 0 : index
    %548 = vector.load %arg6[%547, %c0_122, %c0_123] : memref<8x8x32xf32, #tpu.memory_space<vmem>>, vector<1x8x32xf32>
    %549 = vector.shape_cast %548 : vector<1x8x32xf32> to vector<8x32xf32>
    %550 = vector.shape_cast %546 : vector<8x32xf32> to vector<1x8x32xf32>
    tpu.vector_store %arg6[%547, %c0_122, %c0_123], %550 {strides = array<i32>} : memref<8x8x32xf32, #tpu.memory_space<vmem>>, vector<1x8x32xf32>,
    %c7_i32_124 = arith.constant 7 : i32
    %551 = arith.subi %c7_i32_124, %c5_i32 : i32
    %c8_i32_125 = arith.constant 8 : i32
    %552 = arith.muli %arg0, %c8_i32_125 : i32
    %553 = arith.addi %552, %c5_i32 : i32
    %c15_i32_126 = arith.constant 15 : i32
    %554 = arith.subi %c15_i32_126, %553 : i32
    %555 = arith.index_cast %551 : i32 to index
    %c0_127 = arith.constant 0 : index
    %c0_128 = arith.constant 0 : index
    %556 = vector.load %arg3[%555, %c0_127, %c0_128] : memref<8x8x96xf32, #tpu.memory_space<vmem>>, vector<1x8x96xf32>
    %557 = vector.shape_cast %556 : vector<1x8x96xf32> to vector<8x96xf32>
    %558 = vector.extract_strided_slice %557 {offsets = [0, 0], sizes = [8, 32], strides = [1, 1]} : vector<8x96xf32> to vector<8x32xf32>
    %559 = vector.extract_strided_slice %504 {offsets = [0, 0], sizes = [8, 32], strides = [1, 1]} : vector<8x96xf32> to vector<8x32xf32>
    %560 = arith.addf %558, %559 : vector<8x32xf32>
    %561 = arith.negf %560 : vector<8x32xf32>
    %562 = math.exp %561 : vector<8x32xf32>
    %cst_129 = arith.constant 1.000000e+00 : f32
    %563 = vector.broadcast %cst_129 : f32 to vector<8x32xf32>
    %564 = arith.addf %563, %562 : vector<8x32xf32>
    %565 = arith.divf %563, %564 : vector<8x32xf32>
    %566 = vector.extract_strided_slice %557 {offsets = [0, 32], sizes = [8, 32], strides = [1, 1]} : vector<8x96xf32> to vector<8x32xf32>
    %567 = vector.extract_strided_slice %504 {offsets = [0, 32], sizes = [8, 32], strides = [1, 1]} : vector<8x96xf32> to vector<8x32xf32>
    %568 = arith.addf %566, %567 : vector<8x32xf32>
    %569 = arith.negf %568 : vector<8x32xf32>
    %570 = math.exp %569 : vector<8x32xf32>
    %cst_130 = arith.constant 1.000000e+00 : f32
    %571 = vector.broadcast %cst_130 : f32 to vector<8x32xf32>
    %572 = arith.addf %571, %570 : vector<8x32xf32>
    %573 = arith.divf %571, %572 : vector<8x32xf32>
    %574 = vector.extract_strided_slice %557 {offsets = [0, 64], sizes = [8, 32], strides = [1, 1]} : vector<8x96xf32> to vector<8x32xf32>
    %575 = vector.extract_strided_slice %504 {offsets = [0, 64], sizes = [8, 32], strides = [1, 1]} : vector<8x96xf32> to vector<8x32xf32>
    %576 = vector.broadcast %6 : vector<1x32xf32> to vector<8x32xf32>
    %577 = arith.addf %575, %576 : vector<8x32xf32>
    %578 = arith.mulf %565, %577 : vector<8x32xf32>
    %579 = arith.addf %574, %578 : vector<8x32xf32>
    %580 = math.tanh %579 : vector<8x32xf32>
    %cst_131 = arith.constant 1.000000e+00 : f32
    %581 = vector.broadcast %cst_131 : f32 to vector<8x32xf32>
    %582 = arith.subf %581, %573 : vector<8x32xf32>
    %583 = arith.mulf %582, %580 : vector<8x32xf32>
    %584 = arith.mulf %573, %492 : vector<8x32xf32>
    %585 = arith.addf %583, %584 : vector<8x32xf32>
    %586 = vector.broadcast %554 : i32 to vector<8x1xi32>
    %587 = arith.cmpi slt, %586, %3 : vector<8x1xi32>
    %588 = vector.shape_cast %587 : vector<8x1xi1> to vector<8x1xi1>
    %589 = vector.broadcast %588 : vector<8x1xi1> to vector<8x32xi1>
    %590 = arith.select %589, %585, %492 : vector<8x32xi1>, vector<8x32xf32>
    %cst_132 = arith.constant 0.000000e+00 : f32
    %591 = vector.shape_cast %587 : vector<8x1xi1> to vector<8x1xi1>
    %592 = vector.broadcast %591 : vector<8x1xi1> to vector<8x32xi1>
    %593 = vector.broadcast %cst_132 : f32 to vector<8x32xf32>
    %594 = arith.select %592, %585, %593 : vector<8x32xi1>, vector<8x32xf32>
    %595 = arith.index_cast %551 : i32 to index
    %c0_133 = arith.constant 0 : index
    %c0_134 = arith.constant 0 : index
    %596 = vector.load %arg7[%595, %c0_133, %c0_134] : memref<8x8x32xf32, #tpu.memory_space<vmem>>, vector<1x8x32xf32>
    %597 = vector.shape_cast %596 : vector<1x8x32xf32> to vector<8x32xf32>
    %598 = vector.shape_cast %594 : vector<8x32xf32> to vector<1x8x32xf32>
    tpu.vector_store %arg7[%595, %c0_133, %c0_134], %598 {strides = array<i32>} : memref<8x8x32xf32, #tpu.memory_space<vmem>>, vector<1x8x32xf32>,
    %c6_i32 = arith.constant 6 : i32
    %599 = tpu.concatenate %542, %590 in 1 : vector<8x32xf32>, vector<8x32xf32> -> vector<8x64xf32>
    %cst_135 = arith.constant dense<0.000000e+00> : vector<8x192xf32>
    %600 = tpu.matmul %599, %4, %cst_135 {dimension_numbers = #tpu.dot_dimension_numbers<[1], [0], [0], [1], [0, 0, 1, 1], [], []>} : vector<8x64xf32>, vector<64x192xf32>, vector<8x192xf32> -> vector<8x192xf32>
    %601 = vector.extract_strided_slice %600 {offsets = [0, 0], sizes = [8, 96], strides = [1, 1]} : vector<8x192xf32> to vector<8x96xf32>
    %602 = vector.extract_strided_slice %600 {offsets = [0, 96], sizes = [8, 96], strides = [1, 1]} : vector<8x192xf32> to vector<8x96xf32>
    %c8_i32_136 = arith.constant 8 : i32
    %603 = arith.muli %arg0, %c8_i32_136 : i32
    %604 = arith.addi %603, %c6_i32 : i32
    %605 = arith.index_cast %c6_i32 : i32 to index
    %c0_137 = arith.constant 0 : index
    %c0_138 = arith.constant 0 : index
    %606 = vector.load %arg2[%605, %c0_137, %c0_138] : memref<8x8x96xf32, #tpu.memory_space<vmem>>, vector<1x8x96xf32>
    %607 = vector.shape_cast %606 : vector<1x8x96xf32> to vector<8x96xf32>
    %608 = vector.extract_strided_slice %607 {offsets = [0, 0], sizes = [8, 32], strides = [1, 1]} : vector<8x96xf32> to vector<8x32xf32>
    %609 = vector.extract_strided_slice %601 {offsets = [0, 0], sizes = [8, 32], strides = [1, 1]} : vector<8x96xf32> to vector<8x32xf32>
    %610 = arith.addf %608, %609 : vector<8x32xf32>
    %611 = arith.negf %610 : vector<8x32xf32>
    %612 = math.exp %611 : vector<8x32xf32>
    %cst_139 = arith.constant 1.000000e+00 : f32
    %613 = vector.broadcast %cst_139 : f32 to vector<8x32xf32>
    %614 = arith.addf %613, %612 : vector<8x32xf32>
    %615 = arith.divf %613, %614 : vector<8x32xf32>
    %616 = vector.extract_strided_slice %607 {offsets = [0, 32], sizes = [8, 32], strides = [1, 1]} : vector<8x96xf32> to vector<8x32xf32>
    %617 = vector.extract_strided_slice %601 {offsets = [0, 32], sizes = [8, 32], strides = [1, 1]} : vector<8x96xf32> to vector<8x32xf32>
    %618 = arith.addf %616, %617 : vector<8x32xf32>
    %619 = arith.negf %618 : vector<8x32xf32>
    %620 = math.exp %619 : vector<8x32xf32>
    %cst_140 = arith.constant 1.000000e+00 : f32
    %621 = vector.broadcast %cst_140 : f32 to vector<8x32xf32>
    %622 = arith.addf %621, %620 : vector<8x32xf32>
    %623 = arith.divf %621, %622 : vector<8x32xf32>
    %624 = vector.extract_strided_slice %607 {offsets = [0, 64], sizes = [8, 32], strides = [1, 1]} : vector<8x96xf32> to vector<8x32xf32>
    %625 = vector.extract_strided_slice %601 {offsets = [0, 64], sizes = [8, 32], strides = [1, 1]} : vector<8x96xf32> to vector<8x32xf32>
    %626 = vector.broadcast %5 : vector<1x32xf32> to vector<8x32xf32>
    %627 = arith.addf %625, %626 : vector<8x32xf32>
    %628 = arith.mulf %615, %627 : vector<8x32xf32>
    %629 = arith.addf %624, %628 : vector<8x32xf32>
    %630 = math.tanh %629 : vector<8x32xf32>
    %cst_141 = arith.constant 1.000000e+00 : f32
    %631 = vector.broadcast %cst_141 : f32 to vector<8x32xf32>
    %632 = arith.subf %631, %623 : vector<8x32xf32>
    %633 = arith.mulf %632, %630 : vector<8x32xf32>
    %634 = arith.mulf %623, %542 : vector<8x32xf32>
    %635 = arith.addf %633, %634 : vector<8x32xf32>
    %636 = vector.broadcast %604 : i32 to vector<8x1xi32>
    %637 = arith.cmpi slt, %636, %3 : vector<8x1xi32>
    %638 = vector.shape_cast %637 : vector<8x1xi1> to vector<8x1xi1>
    %639 = vector.broadcast %638 : vector<8x1xi1> to vector<8x32xi1>
    %640 = arith.select %639, %635, %542 : vector<8x32xi1>, vector<8x32xf32>
    %cst_142 = arith.constant 0.000000e+00 : f32
    %641 = vector.shape_cast %637 : vector<8x1xi1> to vector<8x1xi1>
    %642 = vector.broadcast %641 : vector<8x1xi1> to vector<8x32xi1>
    %643 = vector.broadcast %cst_142 : f32 to vector<8x32xf32>
    %644 = arith.select %642, %635, %643 : vector<8x32xi1>, vector<8x32xf32>
    %645 = arith.index_cast %c6_i32 : i32 to index
    %c0_143 = arith.constant 0 : index
    %c0_144 = arith.constant 0 : index
    %646 = vector.load %arg6[%645, %c0_143, %c0_144] : memref<8x8x32xf32, #tpu.memory_space<vmem>>, vector<1x8x32xf32>
    %647 = vector.shape_cast %646 : vector<1x8x32xf32> to vector<8x32xf32>
    %648 = vector.shape_cast %644 : vector<8x32xf32> to vector<1x8x32xf32>
    tpu.vector_store %arg6[%645, %c0_143, %c0_144], %648 {strides = array<i32>} : memref<8x8x32xf32, #tpu.memory_space<vmem>>, vector<1x8x32xf32>,
    %c7_i32_145 = arith.constant 7 : i32
    %649 = arith.subi %c7_i32_145, %c6_i32 : i32
    %c8_i32_146 = arith.constant 8 : i32
    %650 = arith.muli %arg0, %c8_i32_146 : i32
    %651 = arith.addi %650, %c6_i32 : i32
    %c15_i32_147 = arith.constant 15 : i32
    %652 = arith.subi %c15_i32_147, %651 : i32
    %653 = arith.index_cast %649 : i32 to index
    %c0_148 = arith.constant 0 : index
    %c0_149 = arith.constant 0 : index
    %654 = vector.load %arg3[%653, %c0_148, %c0_149] : memref<8x8x96xf32, #tpu.memory_space<vmem>>, vector<1x8x96xf32>
    %655 = vector.shape_cast %654 : vector<1x8x96xf32> to vector<8x96xf32>
    %656 = vector.extract_strided_slice %655 {offsets = [0, 0], sizes = [8, 32], strides = [1, 1]} : vector<8x96xf32> to vector<8x32xf32>
    %657 = vector.extract_strided_slice %602 {offsets = [0, 0], sizes = [8, 32], strides = [1, 1]} : vector<8x96xf32> to vector<8x32xf32>
    %658 = arith.addf %656, %657 : vector<8x32xf32>
    %659 = arith.negf %658 : vector<8x32xf32>
    %660 = math.exp %659 : vector<8x32xf32>
    %cst_150 = arith.constant 1.000000e+00 : f32
    %661 = vector.broadcast %cst_150 : f32 to vector<8x32xf32>
    %662 = arith.addf %661, %660 : vector<8x32xf32>
    %663 = arith.divf %661, %662 : vector<8x32xf32>
    %664 = vector.extract_strided_slice %655 {offsets = [0, 32], sizes = [8, 32], strides = [1, 1]} : vector<8x96xf32> to vector<8x32xf32>
    %665 = vector.extract_strided_slice %602 {offsets = [0, 32], sizes = [8, 32], strides = [1, 1]} : vector<8x96xf32> to vector<8x32xf32>
    %666 = arith.addf %664, %665 : vector<8x32xf32>
    %667 = arith.negf %666 : vector<8x32xf32>
    %668 = math.exp %667 : vector<8x32xf32>
    %cst_151 = arith.constant 1.000000e+00 : f32
    %669 = vector.broadcast %cst_151 : f32 to vector<8x32xf32>
    %670 = arith.addf %669, %668 : vector<8x32xf32>
    %671 = arith.divf %669, %670 : vector<8x32xf32>
    %672 = vector.extract_strided_slice %655 {offsets = [0, 64], sizes = [8, 32], strides = [1, 1]} : vector<8x96xf32> to vector<8x32xf32>
    %673 = vector.extract_strided_slice %602 {offsets = [0, 64], sizes = [8, 32], strides = [1, 1]} : vector<8x96xf32> to vector<8x32xf32>
    %674 = vector.broadcast %6 : vector<1x32xf32> to vector<8x32xf32>
    %675 = arith.addf %673, %674 : vector<8x32xf32>
    %676 = arith.mulf %663, %675 : vector<8x32xf32>
    %677 = arith.addf %672, %676 : vector<8x32xf32>
    %678 = math.tanh %677 : vector<8x32xf32>
    %cst_152 = arith.constant 1.000000e+00 : f32
    %679 = vector.broadcast %cst_152 : f32 to vector<8x32xf32>
    %680 = arith.subf %679, %671 : vector<8x32xf32>
    %681 = arith.mulf %680, %678 : vector<8x32xf32>
    %682 = arith.mulf %671, %590 : vector<8x32xf32>
    %683 = arith.addf %681, %682 : vector<8x32xf32>
    %684 = vector.broadcast %652 : i32 to vector<8x1xi32>
    %685 = arith.cmpi slt, %684, %3 : vector<8x1xi32>
    %686 = vector.shape_cast %685 : vector<8x1xi1> to vector<8x1xi1>
    %687 = vector.broadcast %686 : vector<8x1xi1> to vector<8x32xi1>
    %688 = arith.select %687, %683, %590 : vector<8x32xi1>, vector<8x32xf32>
    %cst_153 = arith.constant 0.000000e+00 : f32
    %689 = vector.shape_cast %685 : vector<8x1xi1> to vector<8x1xi1>
    %690 = vector.broadcast %689 : vector<8x1xi1> to vector<8x32xi1>
    %691 = vector.broadcast %cst_153 : f32 to vector<8x32xf32>
    %692 = arith.select %690, %683, %691 : vector<8x32xi1>, vector<8x32xf32>
    %693 = arith.index_cast %649 : i32 to index
    %c0_154 = arith.constant 0 : index
    %c0_155 = arith.constant 0 : index
    %694 = vector.load %arg7[%693, %c0_154, %c0_155] : memref<8x8x32xf32, #tpu.memory_space<vmem>>, vector<1x8x32xf32>
    %695 = vector.shape_cast %694 : vector<1x8x32xf32> to vector<8x32xf32>
    %696 = vector.shape_cast %692 : vector<8x32xf32> to vector<1x8x32xf32>
    tpu.vector_store %arg7[%693, %c0_154, %c0_155], %696 {strides = array<i32>} : memref<8x8x32xf32, #tpu.memory_space<vmem>>, vector<1x8x32xf32>,
    %c7_i32_156 = arith.constant 7 : i32
    %697 = tpu.concatenate %640, %688 in 1 : vector<8x32xf32>, vector<8x32xf32> -> vector<8x64xf32>
    %cst_157 = arith.constant dense<0.000000e+00> : vector<8x192xf32>
    %698 = tpu.matmul %697, %4, %cst_157 {dimension_numbers = #tpu.dot_dimension_numbers<[1], [0], [0], [1], [0, 0, 1, 1], [], []>} : vector<8x64xf32>, vector<64x192xf32>, vector<8x192xf32> -> vector<8x192xf32>
    %699 = vector.extract_strided_slice %698 {offsets = [0, 0], sizes = [8, 96], strides = [1, 1]} : vector<8x192xf32> to vector<8x96xf32>
    %700 = vector.extract_strided_slice %698 {offsets = [0, 96], sizes = [8, 96], strides = [1, 1]} : vector<8x192xf32> to vector<8x96xf32>
    %c8_i32_158 = arith.constant 8 : i32
    %701 = arith.muli %arg0, %c8_i32_158 : i32
    %702 = arith.addi %701, %c7_i32_156 : i32
    %703 = arith.index_cast %c7_i32_156 : i32 to index
    %c0_159 = arith.constant 0 : index
    %c0_160 = arith.constant 0 : index
    %704 = vector.load %arg2[%703, %c0_159, %c0_160] : memref<8x8x96xf32, #tpu.memory_space<vmem>>, vector<1x8x96xf32>
    %705 = vector.shape_cast %704 : vector<1x8x96xf32> to vector<8x96xf32>
    %706 = vector.extract_strided_slice %705 {offsets = [0, 0], sizes = [8, 32], strides = [1, 1]} : vector<8x96xf32> to vector<8x32xf32>
    %707 = vector.extract_strided_slice %699 {offsets = [0, 0], sizes = [8, 32], strides = [1, 1]} : vector<8x96xf32> to vector<8x32xf32>
    %708 = arith.addf %706, %707 : vector<8x32xf32>
    %709 = arith.negf %708 : vector<8x32xf32>
    %710 = math.exp %709 : vector<8x32xf32>
    %cst_161 = arith.constant 1.000000e+00 : f32
    %711 = vector.broadcast %cst_161 : f32 to vector<8x32xf32>
    %712 = arith.addf %711, %710 : vector<8x32xf32>
    %713 = arith.divf %711, %712 : vector<8x32xf32>
    %714 = vector.extract_strided_slice %705 {offsets = [0, 32], sizes = [8, 32], strides = [1, 1]} : vector<8x96xf32> to vector<8x32xf32>
    %715 = vector.extract_strided_slice %699 {offsets = [0, 32], sizes = [8, 32], strides = [1, 1]} : vector<8x96xf32> to vector<8x32xf32>
    %716 = arith.addf %714, %715 : vector<8x32xf32>
    %717 = arith.negf %716 : vector<8x32xf32>
    %718 = math.exp %717 : vector<8x32xf32>
    %cst_162 = arith.constant 1.000000e+00 : f32
    %719 = vector.broadcast %cst_162 : f32 to vector<8x32xf32>
    %720 = arith.addf %719, %718 : vector<8x32xf32>
    %721 = arith.divf %719, %720 : vector<8x32xf32>
    %722 = vector.extract_strided_slice %705 {offsets = [0, 64], sizes = [8, 32], strides = [1, 1]} : vector<8x96xf32> to vector<8x32xf32>
    %723 = vector.extract_strided_slice %699 {offsets = [0, 64], sizes = [8, 32], strides = [1, 1]} : vector<8x96xf32> to vector<8x32xf32>
    %724 = vector.broadcast %5 : vector<1x32xf32> to vector<8x32xf32>
    %725 = arith.addf %723, %724 : vector<8x32xf32>
    %726 = arith.mulf %713, %725 : vector<8x32xf32>
    %727 = arith.addf %722, %726 : vector<8x32xf32>
    %728 = math.tanh %727 : vector<8x32xf32>
    %cst_163 = arith.constant 1.000000e+00 : f32
    %729 = vector.broadcast %cst_163 : f32 to vector<8x32xf32>
    %730 = arith.subf %729, %721 : vector<8x32xf32>
    %731 = arith.mulf %730, %728 : vector<8x32xf32>
    %732 = arith.mulf %721, %640 : vector<8x32xf32>
    %733 = arith.addf %731, %732 : vector<8x32xf32>
    %734 = vector.broadcast %702 : i32 to vector<8x1xi32>
    %735 = arith.cmpi slt, %734, %3 : vector<8x1xi32>
    %736 = vector.shape_cast %735 : vector<8x1xi1> to vector<8x1xi1>
    %737 = vector.broadcast %736 : vector<8x1xi1> to vector<8x32xi1>
    %738 = arith.select %737, %733, %640 : vector<8x32xi1>, vector<8x32xf32>
    %cst_164 = arith.constant 0.000000e+00 : f32
    %739 = vector.shape_cast %735 : vector<8x1xi1> to vector<8x1xi1>
    %740 = vector.broadcast %739 : vector<8x1xi1> to vector<8x32xi1>
    %741 = vector.broadcast %cst_164 : f32 to vector<8x32xf32>
    %742 = arith.select %740, %733, %741 : vector<8x32xi1>, vector<8x32xf32>
    %743 = arith.index_cast %c7_i32_156 : i32 to index
    %c0_165 = arith.constant 0 : index
    %c0_166 = arith.constant 0 : index
    %744 = vector.load %arg6[%743, %c0_165, %c0_166] : memref<8x8x32xf32, #tpu.memory_space<vmem>>, vector<1x8x32xf32>
    %745 = vector.shape_cast %744 : vector<1x8x32xf32> to vector<8x32xf32>
    %746 = vector.shape_cast %742 : vector<8x32xf32> to vector<1x8x32xf32>
    tpu.vector_store %arg6[%743, %c0_165, %c0_166], %746 {strides = array<i32>} : memref<8x8x32xf32, #tpu.memory_space<vmem>>, vector<1x8x32xf32>,
    %c7_i32_167 = arith.constant 7 : i32
    %747 = arith.subi %c7_i32_167, %c7_i32_156 : i32
    %c8_i32_168 = arith.constant 8 : i32
    %748 = arith.muli %arg0, %c8_i32_168 : i32
    %749 = arith.addi %748, %c7_i32_156 : i32
    %c15_i32_169 = arith.constant 15 : i32
    %750 = arith.subi %c15_i32_169, %749 : i32
    %751 = arith.index_cast %747 : i32 to index
    %c0_170 = arith.constant 0 : index
    %c0_171 = arith.constant 0 : index
    %752 = vector.load %arg3[%751, %c0_170, %c0_171] : memref<8x8x96xf32, #tpu.memory_space<vmem>>, vector<1x8x96xf32>
    %753 = vector.shape_cast %752 : vector<1x8x96xf32> to vector<8x96xf32>
    %754 = vector.extract_strided_slice %753 {offsets = [0, 0], sizes = [8, 32], strides = [1, 1]} : vector<8x96xf32> to vector<8x32xf32>
    %755 = vector.extract_strided_slice %700 {offsets = [0, 0], sizes = [8, 32], strides = [1, 1]} : vector<8x96xf32> to vector<8x32xf32>
    %756 = arith.addf %754, %755 : vector<8x32xf32>
    %757 = arith.negf %756 : vector<8x32xf32>
    %758 = math.exp %757 : vector<8x32xf32>
    %cst_172 = arith.constant 1.000000e+00 : f32
    %759 = vector.broadcast %cst_172 : f32 to vector<8x32xf32>
    %760 = arith.addf %759, %758 : vector<8x32xf32>
    %761 = arith.divf %759, %760 : vector<8x32xf32>
    %762 = vector.extract_strided_slice %753 {offsets = [0, 32], sizes = [8, 32], strides = [1, 1]} : vector<8x96xf32> to vector<8x32xf32>
    %763 = vector.extract_strided_slice %700 {offsets = [0, 32], sizes = [8, 32], strides = [1, 1]} : vector<8x96xf32> to vector<8x32xf32>
    %764 = arith.addf %762, %763 : vector<8x32xf32>
    %765 = arith.negf %764 : vector<8x32xf32>
    %766 = math.exp %765 : vector<8x32xf32>
    %cst_173 = arith.constant 1.000000e+00 : f32
    %767 = vector.broadcast %cst_173 : f32 to vector<8x32xf32>
    %768 = arith.addf %767, %766 : vector<8x32xf32>
    %769 = arith.divf %767, %768 : vector<8x32xf32>
    %770 = vector.extract_strided_slice %753 {offsets = [0, 64], sizes = [8, 32], strides = [1, 1]} : vector<8x96xf32> to vector<8x32xf32>
    %771 = vector.extract_strided_slice %700 {offsets = [0, 64], sizes = [8, 32], strides = [1, 1]} : vector<8x96xf32> to vector<8x32xf32>
    %772 = vector.broadcast %6 : vector<1x32xf32> to vector<8x32xf32>
    %773 = arith.addf %771, %772 : vector<8x32xf32>
    %774 = arith.mulf %761, %773 : vector<8x32xf32>
    %775 = arith.addf %770, %774 : vector<8x32xf32>
    %776 = math.tanh %775 : vector<8x32xf32>
    %cst_174 = arith.constant 1.000000e+00 : f32
    %777 = vector.broadcast %cst_174 : f32 to vector<8x32xf32>
    %778 = arith.subf %777, %769 : vector<8x32xf32>
    %779 = arith.mulf %778, %776 : vector<8x32xf32>
    %780 = arith.mulf %769, %688 : vector<8x32xf32>
    %781 = arith.addf %779, %780 : vector<8x32xf32>
    %782 = vector.broadcast %750 : i32 to vector<8x1xi32>
    %783 = arith.cmpi slt, %782, %3 : vector<8x1xi32>
    %784 = vector.shape_cast %783 : vector<8x1xi1> to vector<8x1xi1>
    %785 = vector.broadcast %784 : vector<8x1xi1> to vector<8x32xi1>
    %786 = arith.select %785, %781, %688 : vector<8x32xi1>, vector<8x32xf32>
    %cst_175 = arith.constant 0.000000e+00 : f32
    %787 = vector.shape_cast %783 : vector<8x1xi1> to vector<8x1xi1>
    %788 = vector.broadcast %787 : vector<8x1xi1> to vector<8x32xi1>
    %789 = vector.broadcast %cst_175 : f32 to vector<8x32xf32>
    %790 = arith.select %788, %781, %789 : vector<8x32xi1>, vector<8x32xf32>
    %791 = arith.index_cast %747 : i32 to index
    %c0_176 = arith.constant 0 : index
    %c0_177 = arith.constant 0 : index
    %792 = vector.load %arg7[%791, %c0_176, %c0_177] : memref<8x8x32xf32, #tpu.memory_space<vmem>>, vector<1x8x32xf32>
    %793 = vector.shape_cast %792 : vector<1x8x32xf32> to vector<8x32xf32>
    %794 = vector.shape_cast %790 : vector<8x32xf32> to vector<1x8x32xf32>
    tpu.vector_store %arg7[%791, %c0_176, %c0_177], %794 {strides = array<i32>} : memref<8x8x32xf32, #tpu.memory_space<vmem>>, vector<1x8x32xf32>,
    %c8_i32_178 = arith.constant 8 : i32
    %c0_179 = arith.constant 0 : index
    %c0_180 = arith.constant 0 : index
    %c0_181 = arith.constant 0 : index
    %795 = vector.load %arg8[%c0_179, %c0_180, %c0_181] : memref<2x8x32xf32, #tpu.memory_space<vmem>>, vector<1x8x32xf32>
    %796 = vector.shape_cast %795 : vector<1x8x32xf32> to vector<8x32xf32>
    %797 = vector.shape_cast %738 : vector<8x32xf32> to vector<1x8x32xf32>
    tpu.vector_store %arg8[%c0_179, %c0_180, %c0_181], %797 {strides = array<i32>} : memref<2x8x32xf32, #tpu.memory_space<vmem>>, vector<1x8x32xf32>,
    %c1_182 = arith.constant 1 : index
    %c0_183 = arith.constant 0 : index
    %c0_184 = arith.constant 0 : index
    %798 = vector.load %arg8[%c1_182, %c0_183, %c0_184] : memref<2x8x32xf32, #tpu.memory_space<vmem>>, vector<1x8x32xf32>
    %799 = vector.shape_cast %798 : vector<1x8x32xf32> to vector<8x32xf32>
    %800 = vector.shape_cast %786 : vector<8x32xf32> to vector<1x8x32xf32>
    tpu.vector_store %arg8[%c1_182, %c0_183, %c0_184], %800 {strides = array<i32>} : memref<2x8x32xf32, #tpu.memory_space<vmem>>, vector<1x8x32xf32>,
    return
  }
  func.func @transform_0(%arg0: i32) -> (i32, i32) {
    %c0_i32 = arith.constant 0 : i32
    %c0_i32_0 = arith.constant 0 : i32
    %c0_i32_1 = arith.constant 0 : i32
    return %c0_i32, %c0_i32_0 : i32, i32
  }
  func.func @transform_1(%arg0: i32) -> (i32, i32, i32) {
    %c0_i32 = arith.constant 0 : i32
    %c0_i32_0 = arith.constant 0 : i32
    %c0_i32_1 = arith.constant 0 : i32
    return %arg0, %c0_i32, %c0_i32_0 : i32, i32, i32
  }
  func.func @transform_2(%arg0: i32) -> (i32, i32, i32) {
    %c1_i32 = arith.constant 1 : i32
    %0 = arith.subi %c1_i32, %arg0 : i32
    %c0_i32 = arith.constant 0 : i32
    %c0_i32_0 = arith.constant 0 : i32
    %c0_i32_1 = arith.constant 0 : i32
    return %0, %c0_i32, %c0_i32_0 : i32, i32, i32
  }
  func.func @transform_3(%arg0: i32) -> (i32, i32) {
    %c0_i32 = arith.constant 0 : i32
    %c0_i32_0 = arith.constant 0 : i32
    %c0_i32_1 = arith.constant 0 : i32
    return %c0_i32, %c0_i32_0 : i32, i32
  }
  func.func @transform_4(%arg0: i32) -> (i32, i32) {
    %c0_i32 = arith.constant 0 : i32
    %c0_i32_0 = arith.constant 0 : i32
    %c0_i32_1 = arith.constant 0 : i32
    return %c0_i32, %c0_i32_0 : i32, i32
  }
  func.func @transform_5(%arg0: i32) -> (i32, i32, i32) {
    %c0_i32 = arith.constant 0 : i32
    %c0_i32_0 = arith.constant 0 : i32
    %c0_i32_1 = arith.constant 0 : i32
    return %arg0, %c0_i32, %c0_i32_0 : i32, i32, i32
  }
  func.func @transform_6(%arg0: i32) -> (i32, i32, i32) {
    %c1_i32 = arith.constant 1 : i32
    %0 = arith.subi %c1_i32, %arg0 : i32
    %c0_i32 = arith.constant 0 : i32
    %c0_i32_0 = arith.constant 0 : i32
    %c0_i32_1 = arith.constant 0 : i32
    return %0, %c0_i32, %c0_i32_0 : i32, i32, i32
  }
}

</mosaic_0001>

<llo_original>
// kernel: path_concatenation_forward.2
$region0: #{path_concatenation_forward.2}
  #allocation0 [shape = 'u32[]', space=smem, size = 0x4, offset = 0x4, fixed_abs, tag = 'smem constant byte address 0x4 - core index']
  #allocation1 [shape = 'u32[72,128]{1,0:T(1,128)}', space=vmem, size = 0x9000, scoped, tag = 'internal scratch']
  #allocation2 [shape = 'f32[2,8,32]{2,1,0:T(8,128)}', space=vmem, size = 0x2000, scoped, tag = 'scratch operand']
  %s0 = inlined_call_operand.vmem [shape: s32[8,1], index: 0, kind: input, shape index: {}]
  %s1 = inlined_call_operand.vmem [shape: f32[16,8,96], index: 1, kind: input, shape index: {}]
  %s2 = inlined_call_operand.vmem [shape: f32[16,8,96], index: 2, kind: input, shape index: {}]
  %s3 = inlined_call_operand.vmem [shape: f32[64,192], index: 3, kind: input, shape index: {}]
  %s4 = inlined_call_operand.vmem [shape: f32[1,64], index: 4, kind: input, shape index: {}]
  %s5 = inlined_call_operand.vmem [shape: f32[16,8,32], index: 5, kind: output, shape index: {0}]
  %s6 = inlined_call_operand.vmem [shape: f32[16,8,32], index: 6, kind: output, shape index: {1}]
  %7 = xla_tuple %s5, %s6
  %s8 = sld [smem:[#allocation0]]
  $region65: #{path_concatenation_forward.2} parent=0
    _
  %s10 = ssub.s32 1, %s8
  %s11 = scalar_select 0, %s10, %s8
  loop: start=0, step=1, limit=4
  $region2: #{path_concatenation_forward.2} parent=0 // loop_pre_header
    _
  $region3: #{path_concatenation_forward.2} parent=0 // loop_header
    %s13 = sphi 0, %s17
    %p14 = scmp.ge.s32.totalorder %s13, 4
    %s21 = sphi 0, %s21
    %s23 = sphi 0, %s21
    %s24 = sphi 0, %s23
    %s38 = sphi 0, %s24
    %s44 = sphi 0, %s46
    %s47 = sphi 0, %s44
    %s48 = sphi 0, %s47
    %s64 = sphi 0, %s48
    %s72 = sphi 0, %s74
    %s75 = sphi 0, %s72
    %s76 = sphi 0, %s75
    %s92 = sphi 0, %s76
    %s96 = sphi 0, %s96
    %s98 = sphi 0, %s96
    %s99 = sphi 0, %s98
    %s113 = sphi 0, %s99
    %s117 = sphi 0, %s117
    %s119 = sphi 0, %s117
    %s120 = sphi 0, %s119
    %s134 = sphi 0, %s120
    %s140 = sphi 0, %s142
    %s143 = sphi 0, %s140
    %s144 = sphi 0, %s143
    %s160 = sphi 0, %s144
    %s168 = sphi 0, %s170
    %s171 = sphi 0, %s168
    %s172 = sphi 0, %s171
    %s188 = sphi 0, %s172
  $region4: #{path_concatenation_forward.2} parent=0 // loop_header_branch
    %16 = sbr.rel (%p14) target = $region8
  $region5: #{path_concatenation_forward.2} parent=0 // loop_body
    %s18 = ssub.s32 %s13, 1
    %s19 = ssub.s32 %s13, 2
    %s20 = sadd.s32 %s13, 1
    %s22 = sadd.s32 %s21, 1
    %p25 = scmp.eq.s32.totalorder %s13, 1
    %p26 = scmp.ne.s32.totalorder %s21, %s23
    %p27 = scmp.eq.s32.totalorder %s13, 0
    %p28 = por %p26, %p27
    %p29 = scmp.ne.s32.totalorder %s21, %s23
    %p30 = scmp.eq.s32.totalorder %s18, 1
    %p31 = por %p29, %p30
    %p32 = scmp.ne.s32.totalorder %s23, %s24
    %p33 = scmp.eq.s32.totalorder %s18, 0
    %p34 = por %p32, %p33
    %p35 = scmp.ne.s32.totalorder %s23, %s24
    %p36 = scmp.eq.s32.totalorder %s19, 1
    %p37 = por %p35, %p36
    %p39 = scmp.ne.s32.totalorder %s24, %s38
    %p40 = scmp.eq.s32.totalorder %s19, 0
    %p41 = por %p39, %p40
    %s42 = ssub.s32 %s13, %s20
    %p43 = scmp.eq.s32.totalorder %s42, 0
    %s45 = sadd.s32 %s44, 1
    %s46 = scalar_select %p43, %s44, %s45
    %p49 = pneg %p43
    %p50 = scmp.eq.s32.totalorder %s13, 1
    %p51 = por %p49, %p50
    %p52 = scmp.ne.s32.totalorder %s44, %s47
    %p53 = scmp.eq.s32.totalorder %s13, 0
    %p54 = por %p52, %p53
    %p55 = scmp.ne.s32.totalorder %s44, %s47
    %p56 = scmp.eq.s32.totalorder %s18, 1
    %p57 = por %p55, %p56
    %p58 = scmp.ne.s32.totalorder %s47, %s48
    %p59 = scmp.eq.s32.totalorder %s18, 0
    %p60 = por %p58, %p59
    %p61 = scmp.ne.s32.totalorder %s47, %s48
    %p62 = scmp.eq.s32.totalorder %s19, 1
    %p63 = por %p61, %p62
    %p65 = scmp.ne.s32.totalorder %s48, %s64
    %p66 = scmp.eq.s32.totalorder %s19, 0
    %p67 = por %p65, %p66
    %s68 = ssub.s32 1, %s13
    %s69 = ssub.s32 1, %s20
    %s70 = ssub.s32 %s68, %s69
    %p71 = scmp.eq.s32.totalorder %s70, 0
    %s73 = sadd.s32 %s72, 1
    %s74 = scalar_select %p71, %s72, %s73
    %p77 = pneg %p71
    %p78 = scmp.eq.s32.totalorder %s13, 1
    %p79 = por %p77, %p78
    %p80 = scmp.ne.s32.totalorder %s72, %s75
    %p81 = scmp.eq.s32.totalorder %s13, 0
    %p82 = por %p80, %p81
    %p83 = scmp.ne.s32.totalorder %s72, %s75
    %p84 = scmp.eq.s32.totalorder %s18, 1
    %p85 = por %p83, %p84
    %p86 = scmp.ne.s32.totalorder %s75, %s76
    %p87 = scmp.eq.s32.totalorder %s18, 0
    %p88 = por %p86, %p87
    %p89 = scmp.ne.s32.totalorder %s75, %s76
    %p90 = scmp.eq.s32.totalorder %s19, 1
    %p91 = por %p89, %p90
    %p93 = scmp.ne.s32.totalorder %s76, %s92
    %p94 = scmp.eq.s32.totalorder %s19, 0
    %p95 = por %p93, %p94
    %s97 = sadd.s32 %s96, 1
    %p100 = scmp.eq.s32.totalorder %s13, 1
    %p101 = scmp.ne.s32.totalorder %s96, %s98
    %p102 = scmp.eq.s32.totalorder %s13, 0
    %p103 = por %p101, %p102
    %p104 = scmp.ne.s32.totalorder %s96, %s98
    %p105 = scmp.eq.s32.totalorder %s18, 1
    %p106 = por %p104, %p105
    %p107 = scmp.ne.s32.totalorder %s98, %s99
    %p108 = scmp.eq.s32.totalorder %s18, 0
    %p109 = por %p107, %p108
    %p110 = scmp.ne.s32.totalorder %s98, %s99
    %p111 = scmp.eq.s32.totalorder %s19, 1
    %p112 = por %p110, %p111
    %p114 = scmp.ne.s32.totalorder %s99, %s113
    %p115 = scmp.eq.s32.totalorder %s19, 0
    %p116 = por %p114, %p115
    %s118 = sadd.s32 %s117, 1
    %p121 = scmp.eq.s32.totalorder %s13, 1
    %p122 = scmp.ne.s32.totalorder %s117, %s119
    %p123 = scmp.eq.s32.totalorder %s13, 0
    %p124 = por %p122, %p123
    %p125 = scmp.ne.s32.totalorder %s117, %s119
    %p126 = scmp.eq.s32.totalorder %s18, 1
    %p127 = por %p125, %p126
    %p128 = scmp.ne.s32.totalorder %s119, %s120
    %p129 = scmp.eq.s32.totalorder %s18, 0
    %p130 = por %p128, %p129
    %p131 = scmp.ne.s32.totalorder %s119, %s120
    %p132 = scmp.eq.s32.totalorder %s19, 1
    %p133 = por %p131, %p132
    %p135 = scmp.ne.s32.totalorder %s120, %s134
    %p136 = scmp.eq.s32.totalorder %s19, 0
    %p137 = por %p135, %p136
    %s138 = ssub.s32 %s13, %s20
    %p139 = scmp.eq.s32.totalorder %s138, 0
    %s141 = sadd.s32 %s140, 1
    %s142 = scalar_select %p139, %s140, %s141
    %p145 = pneg %p139
    %p146 = scmp.eq.s32.totalorder %s13, 1
    %p147 = por %p145, %p146
    %p148 = scmp.ne.s32.totalorder %s140, %s143
    %p149 = scmp.eq.s32.totalorder %s13, 0
    %p150 = por %p148, %p149
    %p151 = scmp.ne.s32.totalorder %s140, %s143
    %p152 = scmp.eq.s32.totalorder %s18, 1
    %p153 = por %p151, %p152
    %p154 = scmp.ne.s32.totalorder %s143, %s144
    %p155 = scmp.eq.s32.totalorder %s18, 0
    %p156 = por %p154, %p155
    %p157 = scmp.ne.s32.totalorder %s143, %s144
    %p158 = scmp.eq.s32.totalorder %s19, 1
    %p159 = por %p157, %p158
    %p161 = scmp.ne.s32.totalorder %s144, %s160
    %p162 = scmp.eq.s32.totalorder %s19, 0
    %p163 = por %p161, %p162
    %s164 = ssub.s32 1, %s13
    %s165 = ssub.s32 1, %s20
    %s166 = ssub.s32 %s164, %s165
    %p167 = scmp.eq.s32.totalorder %s166, 0
    %s169 = sadd.s32 %s168, 1
    %s170 = scalar_select %p167, %s168, %s169
    %p173 = pneg %p167
    %p174 = scmp.eq.s32.totalorder %s13, 1
    %p175 = por %p173, %p174
    %p176 = scmp.ne.s32.totalorder %s168, %s171
    %p177 = scmp.eq.s32.totalorder %s13, 0
    %p178 = por %p176, %p177
    %p179 = scmp.ne.s32.totalorder %s168, %s171
    %p180 = scmp.eq.s32.totalorder %s18, 1
    %p181 = por %p179, %p180
    %p182 = scmp.ne.s32.totalorder %s171, %s172
    %p183 = scmp.eq.s32.totalorder %s18, 0
    %p184 = por %p182, %p183
    %p185 = scmp.ne.s32.totalorder %s171, %s172
    %p186 = scmp.eq.s32.totalorder %s19, 1
    %p187 = por %p185, %p186
    %p189 = scmp.ne.s32.totalorder %s172, %s188
    %p190 = scmp.eq.s32.totalorder %s19, 0
    %p191 = por %p189, %p190
    %p192 = scmp.le.s32.totalorder 1, %s13
    %p193 = scmp.lt.s32.totalorder %s13, 3
    %p194 = pnand %p192, %p193
    %p195 = pneg %p194
    // Predicated region
    $region9: #{path_concatenation_forward.2} parent=5 // pred_check
      _
    $region10: #{path_concatenation_forward.2} parent=5 // pred_check_branch
      %197 = sbr.rel (%p194) target = $region12
    $region11: #{path_concatenation_forward.2} parent=5 // pred_region
      %s198 = ssub.s32 %s13, 1
      // Predicated region
      $region13: #{path_concatenation_forward.2} parent=11 // pred_check
        %p199 = pneg %p34
      $region14: #{path_concatenation_forward.2} parent=11 // pred_check_branch
        %201 = sbr.rel (%p199) target = $region16
      $region15: #{path_concatenation_forward.2} parent=11 // pred_region
        _
      $region16: #{path_concatenation_forward.2} parent=11 // pred_fallthru
        _
      // Predicated region
      $region17: #{path_concatenation_forward.2} parent=11 // pred_check
        %p202 = pneg %p109
      $region18: #{path_concatenation_forward.2} parent=11 // pred_check_branch
        %204 = sbr.rel (%p202) target = $region20
      $region19: #{path_concatenation_forward.2} parent=11 // pred_region
        _
      $region20: #{path_concatenation_forward.2} parent=11 // pred_fallthru
        _
      // Predicated region
      $region21: #{path_concatenation_forward.2} parent=11 // pred_check
        %p205 = pneg %p130
      $region22: #{path_concatenation_forward.2} parent=11 // pred_check_branch
        %207 = sbr.rel (%p205) target = $region24
      $region23: #{path_concatenation_forward.2} parent=11 // pred_region
        _
      $region24: #{path_concatenation_forward.2} parent=11 // pred_fallthru
        _
    $region12: #{path_concatenation_forward.2} parent=5 // pred_fallthru
      _
    %p208 = scmp.lt.s32.totalorder %s13, 2
    // Predicated region
    $region25: #{path_concatenation_forward.2} parent=5 // pred_check
      %p209 = pneg %p208
    $region26: #{path_concatenation_forward.2} parent=5 // pred_check_branch
      %211 = sbr.rel (%p209) target = $region28
    $region27: #{path_concatenation_forward.2} parent=5 // pred_region
      // Predicated region
      $region29: #{path_concatenation_forward.2} parent=27 // pred_check
        %p212 = pneg %p54
      $region30: #{path_concatenation_forward.2} parent=27 // pred_check_branch
        %214 = sbr.rel (%p212) target = $region32
      $region31: #{path_concatenation_forward.2} parent=27 // pred_region
        %s215 = smul.u32 8, %s13
        %p216 = scmp.lt.s32.totalorder %s215, 15
        %s217 = scalar_select %p216, %s215, 15
        %s218 = smul.addr %s217, 8
        %s219 = scalar_lea.vmem %s1, %s218
        %s220 = smul.u32 8, %s13
      $region32: #{path_concatenation_forward.2} parent=27 // pred_fallthru
        _
      // Predicated region
      $region33: #{path_concatenation_forward.2} parent=27 // pred_check
        %p221 = pneg %p82
      $region34: #{path_concatenation_forward.2} parent=27 // pred_check_branch
        %223 = sbr.rel (%p221) target = $region36
      $region35: #{path_concatenation_forward.2} parent=27 // pred_region
        %s224 = ssub.s32 1, %s13
        %s225 = smul.u32 8, %s224
        %p226 = scmp.lt.s32.totalorder %s225, 15
        %s227 = scalar_select %p226, %s225, 15
        %s228 = smul.addr %s227, 8
        %s229 = scalar_lea.vmem %s2, %s228
        %s230 = ssub.s32 1, %s13
        %s231 = smul.u32 8, %s230
      $region36: #{path_concatenation_forward.2} parent=27 // pred_fallthru
        _
    $region28: #{path_concatenation_forward.2} parent=5 // pred_fallthru
      _
    %p232 = scmp.le.s32.totalorder 1, %s13
    %p233 = scmp.lt.s32.totalorder %s13, 3
    %p234 = pnand %p232, %p233
    %p235 = pneg %p234
    // Predicated region
    $region37: #{path_concatenation_forward.2} parent=5 // pred_check
      _
    $region38: #{path_concatenation_forward.2} parent=5 // pred_check_branch
      %237 = sbr.rel (%p234) target = $region40
    $region39: #{path_concatenation_forward.2} parent=5 // pred_region
      %s238 = ssub.s32 %s13, 1
      %p239 = pneg %p34
      %p240 = pneg %p31
      %s241 = smul.u32 8, %s18
      %p242 = scmp.lt.s32.totalorder %s241, 15
      %s243 = scalar_select %p242, %s241, 15
      %s244 = smul.addr %s243, 8
      %s245 = scalar_lea.vmem %s1, %s244
      %p246 = pneg %p60
      %p247 = pneg %p57
      %s248 = ssub.s32 1, %s18
      %s249 = smul.u32 8, %s248
      %p250 = scmp.lt.s32.totalorder %s249, 15
      %s251 = scalar_select %p250, %s249, 15
      %s252 = smul.addr %s251, 8
      %s253 = scalar_lea.vmem %s2, %s252
      %p254 = pneg %p88
      %p255 = pneg %p85
      %p256 = pneg %p109
      %p257 = pneg %p106
      %p258 = pneg %p130
      %p259 = pneg %p127
      %p260 = pneg %p156
      %p261 = pneg %p153
      %s262 = smul.u32 8, %s18
      %p263 = scmp.lt.s32.totalorder %s262, 15
      %s264 = scalar_select %p263, %s262, 15
      %s265 = smul.addr %s264, 8
      %s266 = scalar_lea.vmem %s5, %s265
      %p267 = pneg %p184
      %p268 = pneg %p181
      %s269 = ssub.s32 1, %s18
      %s270 = smul.u32 8, %s269
      %p271 = scmp.lt.s32.totalorder %s270, 15
      %s272 = scalar_select %p271, %s270, 15
      %s273 = smul.addr %s272, 8
      %s274 = scalar_lea.vmem %s6, %s273
      %s275 = smul.u32 8, %s18
      %p276 = scmp.lt.s32.totalorder %s275, 15
      %s277 = scalar_select %p276, %s275, 15
      %s278 = smul.addr %s277, 8
      %s279 = scalar_lea.vmem %s1, %s278
      %s280 = smul.u32 8, %s18
      %s281 = ssub.s32 1, %s18
      %s282 = smul.u32 8, %s281
      %p283 = scmp.lt.s32.totalorder %s282, 15
      %s284 = scalar_select %p283, %s282, 15
      %s285 = smul.addr %s284, 8
      %s286 = scalar_lea.vmem %s2, %s285
      %s287 = ssub.s32 1, %s18
      %s288 = smul.u32 8, %s287
      %s289 = smul.u32 8, %s18
      %p290 = scmp.lt.s32.totalorder %s289, 15
      %s291 = scalar_select %p290, %s289, 15
      %s292 = smul.addr %s291, 8
      %s293 = scalar_lea.vmem %s5, %s292
      %s294 = smul.u32 8, %s18
      %s295 = ssub.s32 1, %s18
      %s296 = smul.u32 8, %s295
      %p297 = scmp.lt.s32.totalorder %s296, 15
      %s298 = scalar_select %p297, %s296, 15
      %s299 = smul.addr %s298, 8
      %s300 = scalar_lea.vmem %s6, %s299
      %s301 = ssub.s32 1, %s18
      %s302 = smul.u32 8, %s301
      %p303 = scmp.eq.s32.totalorder %s18, 0
      // Predicated region
      $region41: #{path_concatenation_forward.2} parent=39 // pred_check
        %p304 = pneg %p303
      $region42: #{path_concatenation_forward.2} parent=39 // pred_check_branch
        %306 = sbr.rel (%p304) target = $region44
      $region43: #{path_concatenation_forward.2} parent=39 // pred_region
        %vm307 = vcmask 261120
        %308 = vst.msk [vmem:[#allocation2] sm:$0xff] %vm307, 0.0
        %309 = vst.msk [vmem:[#allocation2 + $0x8] sm:$0xff] %vm307, 0.0
      $region44: #{path_concatenation_forward.2} parent=39 // pred_fallthru
        _
      %v310 = vld [vmem:[%s0] sm:$0xff]
      %v311 = vld [vmem:[%s3] sm:$0xff]
      %v312 = vld [vmem:[%s3 + $0x8] sm:$0xff]
      %v313 = vld [vmem:[%s3 + $0x10] sm:$0xff]
      %v314 = vld [vmem:[%s3 + $0x18] sm:$0xff]
      %v315 = vld [vmem:[%s3 + $0x20] sm:$0xff]
      %v316 = vld [vmem:[%s3 + $0x28] sm:$0xff]
      %v317 = vld [vmem:[%s3 + $0x30] sm:$0xff]
      %v318 = vld [vmem:[%s3 + $0x38] sm:$0xff]
      %v319 = vld [vmem:[%s3 + $0x40] sm:$0xff]
      %v320 = vld [vmem:[%s3 + $0x48] sm:$0xff]
      %v321 = vld [vmem:[%s3 + $0x50] sm:$0xff]
      %v322 = vld [vmem:[%s3 + $0x58] sm:$0xff]
      %v323 = vld [vmem:[%s3 + $0x60] sm:$0xff]
      %v324 = vld [vmem:[%s3 + $0x68] sm:$0xff]
      %v325 = vld [vmem:[%s3 + $0x70] sm:$0xff]
      %v326 = vld [vmem:[%s3 + $0x78] sm:$0xff]
      %v327 = vld [vmem:[%s4] sm:$0x1]
      %v328 = vld [vmem:[#allocation2] sm:$0xff]
      %s329 = scalar_lea.vmem [#allocation2], 8
      %v330 = vld [vmem:[%s329] sm:$0xff]
      %332 = vrot.lane.b32.xlu0 %v330, 32
      %v333 = vpop.permute.xlu0 %332
      %vm335 = vcmask 261120
      %v336 = vsel %vm335, %v328, %v333
      %vm337 = vcmask 523264
      %v339 = vsel %vm337, %v336, 0
      %341 = vmatpush.msra.mxu0 0.0
      %342 = vmatpush.msra.mxu0 0.0
      %343 = vmatpush.msra.mxu0 0.0
      %344 = vmatpush.msra.mxu0 0.0
      %345 = vmatpush.msra.mxu0 0.0
      %346 = vmatpush.msra.mxu0 0.0
      %347 = vmatpush.msra.mxu0 0.0
      %348 = vmatpush.msra.mxu0 0.0
      %349 = vmatpush.msra.mxu0 %v325
      %350 = vmatpush.msra.mxu0 %v323
      %351 = vmatpush.msra.mxu0 %v321
      %352 = vmatpush.msra.mxu0 %v319
      %353 = vmatpush.msra.mxu0 %v317
      %354 = vmatpush.msra.mxu0 %v315
      %355 = vmatpush.msra.mxu0 %v313
      %356 = vmatpush.msra.mxu0 %v311
      %357 = vmatmul.f32.gmra.mxu0 %v339
      %v358 = vpop.f32.mrf.mxu0
      %v359 = vadd.f32 0.0, %v358
      %360 = vdwg.mxu0
      %361 = vmatpush.msra.mxu0 0.0
      %362 = vmatpush.msra.mxu0 0.0
      %363 = vmatpush.msra.mxu0 0.0
      %364 = vmatpush.msra.mxu0 0.0
      %365 = vmatpush.msra.mxu0 0.0
      %366 = vmatpush.msra.mxu0 0.0
      %367 = vmatpush.msra.mxu0 0.0
      %368 = vmatpush.msra.mxu0 0.0
      %369 = vmatpush.msra.mxu0 %v326
      %370 = vmatpush.msra.mxu0 %v324
      %371 = vmatpush.msra.mxu0 %v322
      %372 = vmatpush.msra.mxu0 %v320
      %373 = vmatpush.msra.mxu0 %v318
      %374 = vmatpush.msra.mxu0 %v316
      %375 = vmatpush.msra.mxu0 %v314
      %376 = vmatpush.msra.mxu0 %v312
      %377 = vmatmul.f32.gmra.mxu0 %v339
      %v378 = vpop.f32.mrf.mxu0
      %v379 = vadd.f32 0.0, %v378
      %380 = vdwg.mxu0
      %s381 = smul.u32 %s18, 8
      %v382 = vld [vmem:[%s279] sm:$0xff]
      %v383 = vadd.f32 %v382, %v359
      %v384 = vxor.u32 %v383, 2147483648
      %v385 = vmul.f32 %v384, 1.442695
      %v386 = vpow.pop %v385
      %v387 = vadd.f32 %v386, 1.0
      %v388 = vrcp.pop %v387
      %v389 = vmul.f32 %v387, %v388
      %v390 = vsub.f32 1.0, %v389
      %v391 = vmul.f32 %v388, %v390
      %v392 = vadd.f32 %v388, %v391
      %vm393 = vweird.f32 %v387
      %vm394 = vweird.f32 %v388
      %vm395 = vmor %vm393, %vm394
      %v396 = vsel %vm395, %v388, %v392
      %v397 = vand.u32 2147483647, %v387
      %vm398 = vcmp.eq.f32.partialorder %v397, 8.507059e+37
      %v399 = vand.u32 %v387, 2147483648
      %v400 = vor.u32 1.1754944e-38, %v399
      %v401 = vsel %vm398, %v400, %v396
      %v402 = vmul.f32 1.0, %v401
      %v404 = vperm.slane %v327, 0
      %405 = vrot.lane.b32.xlu0 %v404, 64
      %v406 = vpop.permute.xlu0 %405
      %v408 = vadd.f32 %v359, %v406
      %410 = vrot.lane.b32.xlu0 %v408, 64
      %v411 = vpop.permute.xlu0 %410
      %v413 = vmul.f32 %v402, %v411
      %415 = vrot.lane.b32.xlu0 %v413, 64
      %v416 = vpop.permute.xlu0 %415
      %v418 = vadd.f32 %v382, %v416
      %v419 = vtanh.pop %v418
      %v420 = vsub.f32 1.0, %v402
      %422 = vrot.lane.b32.xlu0 %v419, 96
      %v423 = vpop.permute.xlu0 %422
      %v425 = vmul.f32 %v420, %v423
      %427 = vrot.lane.b32.xlu0 %v328, 32
      %v428 = vpop.permute.xlu0 %427
      %v430 = vmul.f32 %v402, %v428
      %v431 = vadd.f32 %v425, %v430
      %v432 = vstv %s381
      %vm433 = vcmp.lt.s32.totalorder %v432, %v310
      %v434 = vsel %vm433, 1, 0
      %435 = vset.pattern.permute.xlu0 0
      %436 = vperm.xlu0 %435, %v434
      %v437 = vpop.permute.xlu0 %436
      %vm438 = vcmp.eq.s32.totalorder %v437, 1
      %v439 = vsel %vm438, %v431, %v428
      %v440 = vsel %vm438, %v431, 0.0
      %442 = vrot.lane.b32.xlu0 %v440, 96
      %v443 = vpop.permute.xlu0 %442
      %445 = vst.msk [vmem:[%s293] sm:$0xff] %vm335, %v443
      %s446 = ssub.s32 15, %s381
      %s447 = scalar_lea.vmem %s286, 56
      %v448 = vld [vmem:[%s447] sm:$0xff]
      %450 = vrot.lane.b32.xlu0 %v359, 32
      %v451 = vpop.permute.xlu0 %450
      %v453 = vadd.f32 %v448, %v451
      %v454 = vxor.u32 %v453, 2147483648
      %v455 = vmul.f32 %v454, 1.442695
      %v456 = vpow.pop %v455
      %v457 = vadd.f32 %v456, 1.0
      %v458 = vrcp.pop %v457
      %v459 = vmul.f32 %v457, %v458
      %v460 = vsub.f32 1.0, %v459
      %v461 = vmul.f32 %v458, %v460
      %v462 = vadd.f32 %v458, %v461
      %vm463 = vweird.f32 %v457
      %vm464 = vweird.f32 %v458
      %vm465 = vmor %vm463, %vm464
      %v466 = vsel %vm465, %v458, %v462
      %v467 = vand.u32 2147483647, %v457
      %vm468 = vcmp.eq.f32.partialorder %v467, 8.507059e+37
      %v469 = vand.u32 %v457, 2147483648
      %v470 = vor.u32 1.1754944e-38, %v469
      %v471 = vsel %vm468, %v470, %v466
      %v472 = vmul.f32 1.0, %v471
      %474 = vrot.lane.b32.xlu0 %v379, 32
      %v475 = vpop.permute.xlu0 %474
      %v477 = vadd.f32 %v448, %v475
      %v478 = vxor.u32 %v477, 2147483648
      %v479 = vmul.f32 %v478, 1.442695
      %v480 = vpow.pop %v479
      %v481 = vadd.f32 %v480, 1.0
      %v482 = vrcp.pop %v481
      %v483 = vmul.f32 %v481, %v482
      %v484 = vsub.f32 1.0, %v483
      %v485 = vmul.f32 %v482, %v484
      %v486 = vadd.f32 %v482, %v485
      %vm487 = vweird.f32 %v481
      %vm488 = vweird.f32 %v482
      %vm489 = vmor %vm487, %vm488
      %v490 = vsel %vm489, %v482, %v486
      %v491 = vand.u32 2147483647, %v481
      %vm492 = vcmp.eq.f32.partialorder %v491, 8.507059e+37
      %v493 = vand.u32 %v481, 2147483648
      %v494 = vor.u32 1.1754944e-38, %v493
      %v495 = vsel %vm492, %v494, %v490
      %v496 = vmul.f32 1.0, %v495
      %v498 = vadd.f32 %v379, %v404
      %500 = vrot.lane.b32.xlu0 %v498, 96
      %v501 = vpop.permute.xlu0 %500
      %v503 = vmul.f32 %v472, %v501
      %505 = vrot.lane.b32.xlu0 %v503, 64
      %v506 = vpop.permute.xlu0 %505
      %v508 = vadd.f32 %v448, %v506
      %v509 = vtanh.pop %v508
      %v510 = vsub.f32 1.0, %v496
      %512 = vrot.lane.b32.xlu0 %v509, 96
      %v513 = vpop.permute.xlu0 %512
      %v515 = vmul.f32 %v510, %v513
      %v516 = vmul.f32 %v496, %v333
      %v517 = vadd.f32 %v515, %v516
      %v518 = vstv %s446
      %vm519 = vcmp.lt.s32.totalorder %v518, %v310
      %v520 = vsel %vm519, 1, 0
      %521 = vset.pattern.permute.xlu0 0
      %522 = vperm.xlu0 %521, %v520
      %v523 = vpop.permute.xlu0 %522
      %vm524 = vcmp.eq.s32.totalorder %v523, 1
      %v525 = vsel %vm524, %v517, %v333
      %v526 = vsel %vm524, %v517, 0.0
      %528 = vrot.lane.b32.xlu0 %v526, 96
      %v529 = vpop.permute.xlu0 %528
      %s531 = scalar_lea.vmem %s300, 56
      %532 = vst.msk [vmem:[%s531] sm:$0xff] %vm335, %v529
      %534 = vrot.lane.b32.xlu0 %v439, 96
      %v535 = vpop.permute.xlu0 %534
      %v537 = vsel %vm335, %v535, %v525
      %v539 = vsel %vm337, %v537, 0
      %541 = vmatpush.msra.mxu0 0.0
      %542 = vmatpush.msra.mxu0 0.0
      %543 = vmatpush.msra.mxu0 0.0
      %544 = vmatpush.msra.mxu0 0.0
      %545 = vmatpush.msra.mxu0 0.0
      %546 = vmatpush.msra.mxu0 0.0
      %547 = vmatpush.msra.mxu0 0.0
      %548 = vmatpush.msra.mxu0 0.0
      %549 = vmatpush.msra.mxu0 %v325
      %550 = vmatpush.msra.mxu0 %v323
      %551 = vmatpush.msra.mxu0 %v321
      %552 = vmatpush.msra.mxu0 %v319
      %553 = vmatpush.msra.mxu0 %v317
      %554 = vmatpush.msra.mxu0 %v315
      %555 = vmatpush.msra.mxu0 %v313
      %556 = vmatpush.msra.mxu0 %v311
      %557 = vmatmul.f32.gmra.mxu0 %v539
      %v558 = vpop.f32.mrf.mxu0
      %v559 = vadd.f32 0.0, %v558
      %560 = vdwg.mxu0
      %561 = vmatpush.msra.mxu0 0.0
      %562 = vmatpush.msra.mxu0 0.0
      %563 = vmatpush.msra.mxu0 0.0
      %564 = vmatpush.msra.mxu0 0.0
      %565 = vmatpush.msra.mxu0 0.0
      %566 = vmatpush.msra.mxu0 0.0
      %567 = vmatpush.msra.mxu0 0.0
      %568 = vmatpush.msra.mxu0 0.0
      %569 = vmatpush.msra.mxu0 %v326
      %570 = vmatpush.msra.mxu0 %v324
      %571 = vmatpush.msra.mxu0 %v322
      %572 = vmatpush.msra.mxu0 %v320
      %573 = vmatpush.msra.mxu0 %v318
      %574 = vmatpush.msra.mxu0 %v316
      %575 = vmatpush.msra.mxu0 %v314
      %576 = vmatpush.msra.mxu0 %v312
      %577 = vmatmul.f32.gmra.mxu0 %v539
      %v578 = vpop.f32.mrf.mxu0
      %v579 = vadd.f32 0.0, %v578
      %580 = vdwg.mxu0
      %s581 = sadd.s32 %s381, 1
      %s582 = scalar_lea.vmem %s279, 8
      %v583 = vld [vmem:[%s582] sm:$0xff]
      %v584 = vadd.f32 %v583, %v559
      %v585 = vxor.u32 %v584, 2147483648
      %v586 = vmul.f32 %v585, 1.442695
      %v587 = vpow.pop %v586
      %v588 = vadd.f32 %v587, 1.0
      %v589 = vrcp.pop %v588
      %v590 = vmul.f32 %v588, %v589
      %v591 = vsub.f32 1.0, %v590
      %v592 = vmul.f32 %v589, %v591
      %v593 = vadd.f32 %v589, %v592
      %vm594 = vweird.f32 %v588
      %vm595 = vweird.f32 %v589
      %vm596 = vmor %vm594, %vm595
      %v597 = vsel %vm596, %v589, %v593
      %v598 = vand.u32 2147483647, %v588
      %vm599 = vcmp.eq.f32.partialorder %v598, 8.507059e+37
      %v600 = vand.u32 %v588, 2147483648
      %v601 = vor.u32 1.1754944e-38, %v600
      %v602 = vsel %vm599, %v601, %v597
      %v603 = vmul.f32 1.0, %v602
      %v604 = vadd.f32 %v559, %v406
      %606 = vrot.lane.b32.xlu0 %v604, 64
      %v607 = vpop.permute.xlu0 %606
      %v609 = vmul.f32 %v603, %v607
      %611 = vrot.lane.b32.xlu0 %v609, 64
      %v612 = vpop.permute.xlu0 %611
      %v614 = vadd.f32 %v583, %v612
      %v615 = vtanh.pop %v614
      %v616 = vsub.f32 1.0, %v603
      %618 = vrot.lane.b32.xlu0 %v615, 96
      %v619 = vpop.permute.xlu0 %618
      %v621 = vmul.f32 %v616, %v619
      %v622 = vmul.f32 %v603, %v439
      %v623 = vadd.f32 %v621, %v622
      %v624 = vstv %s581
      %vm625 = vcmp.lt.s32.totalorder %v624, %v310
      %v626 = vsel %vm625, 1, 0
      %627 = vset.pattern.permute.xlu0 0
      %628 = vperm.xlu0 %627, %v626
      %v629 = vpop.permute.xlu0 %628
      %vm630 = vcmp.eq.s32.totalorder %v629, 1
      %v631 = vsel %vm630, %v623, %v439
      %v632 = vsel %vm630, %v623, 0.0
      %634 = vrot.lane.b32.xlu0 %v632, 96
      %v635 = vpop.permute.xlu0 %634
      %s637 = scalar_lea.vmem %s293, 8
      %638 = vst.msk [vmem:[%s637] sm:$0xff] %vm335, %v635
      %s639 = ssub.s32 14, %s381
      %s640 = scalar_lea.vmem %s286, 48
      %v641 = vld [vmem:[%s640] sm:$0xff]
      %643 = vrot.lane.b32.xlu0 %v559, 32
      %v644 = vpop.permute.xlu0 %643
      %v646 = vadd.f32 %v641, %v644
      %v647 = vxor.u32 %v646, 2147483648
      %v648 = vmul.f32 %v647, 1.442695
      %v649 = vpow.pop %v648
      %v650 = vadd.f32 %v649, 1.0
      %v651 = vrcp.pop %v650
      %v652 = vmul.f32 %v650, %v651
      %v653 = vsub.f32 1.0, %v652
      %v654 = vmul.f32 %v651, %v653
      %v655 = vadd.f32 %v651, %v654
      %vm656 = vweird.f32 %v650
      %vm657 = vweird.f32 %v651
      %vm658 = vmor %vm656, %vm657
      %v659 = vsel %vm658, %v651, %v655
      %v660 = vand.u32 2147483647, %v650
      %vm661 = vcmp.eq.f32.partialorder %v660, 8.507059e+37
      %v662 = vand.u32 %v650, 2147483648
      %v663 = vor.u32 1.1754944e-38, %v662
      %v664 = vsel %vm661, %v663, %v659
      %v665 = vmul.f32 1.0, %v664
      %667 = vrot.lane.b32.xlu0 %v579, 32
      %v668 = vpop.permute.xlu0 %667
      %v670 = vadd.f32 %v641, %v668
      %v671 = vxor.u32 %v670, 2147483648
      %v672 = vmul.f32 %v671, 1.442695
      %v673 = vpow.pop %v672
      %v674 = vadd.f32 %v673, 1.0
      %v675 = vrcp.pop %v674
      %v676 = vmul.f32 %v674, %v675
      %v677 = vsub.f32 1.0, %v676
      %v678 = vmul.f32 %v675, %v677
      %v679 = vadd.f32 %v675, %v678
      %vm680 = vweird.f32 %v674
      %vm681 = vweird.f32 %v675
      %vm682 = vmor %vm680, %vm681
      %v683 = vsel %vm682, %v675, %v679
      %v684 = vand.u32 2147483647, %v674
      %vm685 = vcmp.eq.f32.partialorder %v684, 8.507059e+37
      %v686 = vand.u32 %v674, 2147483648
      %v687 = vor.u32 1.1754944e-38, %v686
      %v688 = vsel %vm685, %v687, %v683
      %v689 = vmul.f32 1.0, %v688
      %v690 = vadd.f32 %v579, %v404
      %692 = vrot.lane.b32.xlu0 %v690, 96
      %v693 = vpop.permute.xlu0 %692
      %v695 = vmul.f32 %v665, %v693
      %697 = vrot.lane.b32.xlu0 %v695, 64
      %v698 = vpop.permute.xlu0 %697
      %v700 = vadd.f32 %v641, %v698
      %v701 = vtanh.pop %v700
      %v702 = vsub.f32 1.0, %v689
      %704 = vrot.lane.b32.xlu0 %v701, 96
      %v705 = vpop.permute.xlu0 %704
      %v707 = vmul.f32 %v702, %v705
      %v708 = vmul.f32 %v689, %v525
      %v709 = vadd.f32 %v707, %v708
      %v710 = vstv %s639
      %vm711 = vcmp.lt.s32.totalorder %v710, %v310
      %v712 = vsel %vm711, 1, 0
      %713 = vset.pattern.permute.xlu0 0
      %714 = vperm.xlu0 %713, %v712
      %v715 = vpop.permute.xlu0 %714
      %vm716 = vcmp.eq.s32.totalorder %v715, 1
      %v717 = vsel %vm716, %v709, %v525
      %v718 = vsel %vm716, %v709, 0.0
      %720 = vrot.lane.b32.xlu0 %v718, 96
      %v721 = vpop.permute.xlu0 %720
      %s723 = scalar_lea.vmem %s300, 48
      %724 = vst.msk [vmem:[%s723] sm:$0xff] %vm335, %v721
      %726 = vrot.lane.b32.xlu0 %v631, 96
      %v727 = vpop.permute.xlu0 %726
      %v729 = vsel %vm335, %v727, %v717
      %v731 = vsel %vm337, %v729, 0
      %733 = vmatpush.msra.mxu0 0.0
      %734 = vmatpush.msra.mxu0 0.0
      %735 = vmatpush.msra.mxu0 0.0
      %736 = vmatpush.msra.mxu0 0.0
      %737 = vmatpush.msra.mxu0 0.0
      %738 = vmatpush.msra.mxu0 0.0
      %739 = vmatpush.msra.mxu0 0.0
      %740 = vmatpush.msra.mxu0 0.0
      %741 = vmatpush.msra.mxu0 %v325
      %742 = vmatpush.msra.mxu0 %v323
      %743 = vmatpush.msra.mxu0 %v321
      %744 = vmatpush.msra.mxu0 %v319
      %745 = vmatpush.msra.mxu0 %v317
      %746 = vmatpush.msra.mxu0 %v315
      %747 = vmatpush.msra.mxu0 %v313
      %748 = vmatpush.msra.mxu0 %v311
      %749 = vmatmul.f32.gmra.mxu0 %v731
      %v750 = vpop.f32.mrf.mxu0
      %v751 = vadd.f32 0.0, %v750
      %752 = vdwg.mxu0
      %753 = vmatpush.msra.mxu0 0.0
      %754 = vmatpush.msra.mxu0 0.0
      %755 = vmatpush.msra.mxu0 0.0
      %756 = vmatpush.msra.mxu0 0.0
      %757 = vmatpush.msra.mxu0 0.0
      %758 = vmatpush.msra.mxu0 0.0
      %759 = vmatpush.msra.mxu0 0.0
      %760 = vmatpush.msra.mxu0 0.0
      %761 = vmatpush.msra.mxu0 %v326
      %762 = vmatpush.msra.mxu0 %v324
      %763 = vmatpush.msra.mxu0 %v322
      %764 = vmatpush.msra.mxu0 %v320
      %765 = vmatpush.msra.mxu0 %v318
      %766 = vmatpush.msra.mxu0 %v316
      %767 = vmatpush.msra.mxu0 %v314
      %768 = vmatpush.msra.mxu0 %v312
      %769 = vmatmul.f32.gmra.mxu0 %v731
      %v770 = vpop.f32.mrf.mxu0
      %v771 = vadd.f32 0.0, %v770
      %772 = vdwg.mxu0
      %s773 = sadd.s32 %s381, 2
      %s774 = scalar_lea.vmem %s279, 16
      %v775 = vld [vmem:[%s774] sm:$0xff]
      %v776 = vadd.f32 %v775, %v751
      %v777 = vxor.u32 %v776, 2147483648
      %v778 = vmul.f32 %v777, 1.442695
      %v779 = vpow.pop %v778
      %v780 = vadd.f32 %v779, 1.0
      %v781 = vrcp.pop %v780
      %v782 = vmul.f32 %v780, %v781
      %v783 = vsub.f32 1.0, %v782
      %v784 = vmul.f32 %v781, %v783
      %v785 = vadd.f32 %v781, %v784
      %vm786 = vweird.f32 %v780
      %vm787 = vweird.f32 %v781
      %vm788 = vmor %vm786, %vm787
      %v789 = vsel %vm788, %v781, %v785
      %v790 = vand.u32 2147483647, %v780
      %vm791 = vcmp.eq.f32.partialorder %v790, 8.507059e+37
      %v792 = vand.u32 %v780, 2147483648
      %v793 = vor.u32 1.1754944e-38, %v792
      %v794 = vsel %vm791, %v793, %v789
      %v795 = vmul.f32 1.0, %v794
      %v796 = vadd.f32 %v751, %v406
      %798 = vrot.lane.b32.xlu0 %v796, 64
      %v799 = vpop.permute.xlu0 %798
      %v801 = vmul.f32 %v795, %v799
      %803 = vrot.lane.b32.xlu0 %v801, 64
      %v804 = vpop.permute.xlu0 %803
      %v806 = vadd.f32 %v775, %v804
      %v807 = vtanh.pop %v806
      %v808 = vsub.f32 1.0, %v795
      %810 = vrot.lane.b32.xlu0 %v807, 96
      %v811 = vpop.permute.xlu0 %810
      %v813 = vmul.f32 %v808, %v811
      %v814 = vmul.f32 %v795, %v631
      %v815 = vadd.f32 %v813, %v814
      %v816 = vstv %s773
      %vm817 = vcmp.lt.s32.totalorder %v816, %v310
      %v818 = vsel %vm817, 1, 0
      %819 = vset.pattern.permute.xlu0 0
      %820 = vperm.xlu0 %819, %v818
      %v821 = vpop.permute.xlu0 %820
      %vm822 = vcmp.eq.s32.totalorder %v821, 1
      %v823 = vsel %vm822, %v815, %v631
      %v824 = vsel %vm822, %v815, 0.0
      %826 = vrot.lane.b32.xlu0 %v824, 96
      %v827 = vpop.permute.xlu0 %826
      %s829 = scalar_lea.vmem %s293, 16
      %830 = vst.msk [vmem:[%s829] sm:$0xff] %vm335, %v827
      %s831 = ssub.s32 13, %s381
      %s832 = scalar_lea.vmem %s286, 40
      %v833 = vld [vmem:[%s832] sm:$0xff]
      %835 = vrot.lane.b32.xlu0 %v751, 32
      %v836 = vpop.permute.xlu0 %835
      %v838 = vadd.f32 %v833, %v836
      %v839 = vxor.u32 %v838, 2147483648
      %v840 = vmul.f32 %v839, 1.442695
      %v841 = vpow.pop %v840
      %v842 = vadd.f32 %v841, 1.0
      %v843 = vrcp.pop %v842
      %v844 = vmul.f32 %v842, %v843
      %v845 = vsub.f32 1.0, %v844
      %v846 = vmul.f32 %v843, %v845
      %v847 = vadd.f32 %v843, %v846
      %vm848 = vweird.f32 %v842
      %vm849 = vweird.f32 %v843
      %vm850 = vmor %vm848, %vm849
      %v851 = vsel %vm850, %v843, %v847
      %v852 = vand.u32 2147483647, %v842
      %vm853 = vcmp.eq.f32.partialorder %v852, 8.507059e+37
      %v854 = vand.u32 %v842, 2147483648
      %v855 = vor.u32 1.1754944e-38, %v854
      %v856 = vsel %vm853, %v855, %v851
      %v857 = vmul.f32 1.0, %v856
      %859 = vrot.lane.b32.xlu0 %v771, 32
      %v860 = vpop.permute.xlu0 %859
      %v862 = vadd.f32 %v833, %v860
      %v863 = vxor.u32 %v862, 2147483648
      %v864 = vmul.f32 %v863, 1.442695
      %v865 = vpow.pop %v864
      %v866 = vadd.f32 %v865, 1.0
      %v867 = vrcp.pop %v866
      %v868 = vmul.f32 %v866, %v867
      %v869 = vsub.f32 1.0, %v868
      %v870 = vmul.f32 %v867, %v869
      %v871 = vadd.f32 %v867, %v870
      %vm872 = vweird.f32 %v866
      %vm873 = vweird.f32 %v867
      %vm874 = vmor %vm872, %vm873
      %v875 = vsel %vm874, %v867, %v871
      %v876 = vand.u32 2147483647, %v866
      %vm877 = vcmp.eq.f32.partialorder %v876, 8.507059e+37
      %v878 = vand.u32 %v866, 2147483648
      %v879 = vor.u32 1.1754944e-38, %v878
      %v880 = vsel %vm877, %v879, %v875
      %v881 = vmul.f32 1.0, %v880
      %v882 = vadd.f32 %v771, %v404
      %884 = vrot.lane.b32.xlu0 %v882, 96
      %v885 = vpop.permute.xlu0 %884
      %v887 = vmul.f32 %v857, %v885
      %889 = vrot.lane.b32.xlu0 %v887, 64
      %v890 = vpop.permute.xlu0 %889
      %v892 = vadd.f32 %v833, %v890
      %v893 = vtanh.pop %v892
      %v894 = vsub.f32 1.0, %v881
      %896 = vrot.lane.b32.xlu0 %v893, 96
      %v897 = vpop.permute.xlu0 %896
      %v899 = vmul.f32 %v894, %v897
      %v900 = vmul.f32 %v881, %v717
      %v901 = vadd.f32 %v899, %v900
      %v902 = vstv %s831
      %vm903 = vcmp.lt.s32.totalorder %v902, %v310
      %v904 = vsel %vm903, 1, 0
      %905 = vset.pattern.permute.xlu0 0
      %906 = vperm.xlu0 %905, %v904
      %v907 = vpop.permute.xlu0 %906
      %vm908 = vcmp.eq.s32.totalorder %v907, 1
      %v909 = vsel %vm908, %v901, %v717
      %v910 = vsel %vm908, %v901, 0.0
      %912 = vrot.lane.b32.xlu0 %v910, 96
      %v913 = vpop.permute.xlu0 %912
      %s915 = scalar_lea.vmem %s300, 40
      %916 = vst.msk [vmem:[%s915] sm:$0xff] %vm335, %v913
      %918 = vrot.lane.b32.xlu0 %v823, 96
      %v919 = vpop.permute.xlu0 %918
      %v921 = vsel %vm335, %v919, %v909
      %v923 = vsel %vm337, %v921, 0
      %925 = vmatpush.msra.mxu0 0.0
      %926 = vmatpush.msra.mxu0 0.0
      %927 = vmatpush.msra.mxu0 0.0
      %928 = vmatpush.msra.mxu0 0.0
      %929 = vmatpush.msra.mxu0 0.0
      %930 = vmatpush.msra.mxu0 0.0
      %931 = vmatpush.msra.mxu0 0.0
      %932 = vmatpush.msra.mxu0 0.0
      %933 = vmatpush.msra.mxu0 %v325
      %934 = vmatpush.msra.mxu0 %v323
      %935 = vmatpush.msra.mxu0 %v321
      %936 = vmatpush.msra.mxu0 %v319
      %937 = vmatpush.msra.mxu0 %v317
      %938 = vmatpush.msra.mxu0 %v315
      %939 = vmatpush.msra.mxu0 %v313
      %940 = vmatpush.msra.mxu0 %v311
      %941 = vmatmul.f32.gmra.mxu0 %v923
      %v942 = vpop.f32.mrf.mxu0
      %v943 = vadd.f32 0.0, %v942
      %944 = vdwg.mxu0
      %945 = vmatpush.msra.mxu0 0.0
      %946 = vmatpush.msra.mxu0 0.0
      %947 = vmatpush.msra.mxu0 0.0
      %948 = vmatpush.msra.mxu0 0.0
      %949 = vmatpush.msra.mxu0 0.0
      %950 = vmatpush.msra.mxu0 0.0
      %951 = vmatpush.msra.mxu0 0.0
      %952 = vmatpush.msra.mxu0 0.0
      %953 = vmatpush.msra.mxu0 %v326
      %954 = vmatpush.msra.mxu0 %v324
      %955 = vmatpush.msra.mxu0 %v322
      %956 = vmatpush.msra.mxu0 %v320
      %957 = vmatpush.msra.mxu0 %v318
      %958 = vmatpush.msra.mxu0 %v316
      %959 = vmatpush.msra.mxu0 %v314
      %960 = vmatpush.msra.mxu0 %v312
      %961 = vmatmul.f32.gmra.mxu0 %v923
      %v962 = vpop.f32.mrf.mxu0
      %v963 = vadd.f32 0.0, %v962
      %964 = vdwg.mxu0
      %s965 = sadd.s32 %s381, 3
      %s966 = scalar_lea.vmem %s279, 24
      %v967 = vld [vmem:[%s966] sm:$0xff]
      %v968 = vadd.f32 %v967, %v943
      %v969 = vxor.u32 %v968, 2147483648
      %v970 = vmul.f32 %v969, 1.442695
      %v971 = vpow.pop %v970
      %v972 = vadd.f32 %v971, 1.0
      %v973 = vrcp.pop %v972
      %v974 = vmul.f32 %v972, %v973
      %v975 = vsub.f32 1.0, %v974
      %v976 = vmul.f32 %v973, %v975
      %v977 = vadd.f32 %v973, %v976
      %vm978 = vweird.f32 %v972
      %vm979 = vweird.f32 %v973
      %vm980 = vmor %vm978, %vm979
      %v981 = vsel %vm980, %v973, %v977
      %v982 = vand.u32 2147483647, %v972
      %vm983 = vcmp.eq.f32.partialorder %v982, 8.507059e+37
      %v984 = vand.u32 %v972, 2147483648
      %v985 = vor.u32 1.1754944e-38, %v984
      %v986 = vsel %vm983, %v985, %v981
      %v987 = vmul.f32 1.0, %v986
      %v988 = vadd.f32 %v943, %v406
      %990 = vrot.lane.b32.xlu0 %v988, 64
      %v991 = vpop.permute.xlu0 %990
      %v993 = vmul.f32 %v987, %v991
      %995 = vrot.lane.b32.xlu0 %v993, 64
      %v996 = vpop.permute.xlu0 %995
      %v998 = vadd.f32 %v967, %v996
      %v999 = vtanh.pop %v998
      %v1000 = vsub.f32 1.0, %v987
      %1002 = vrot.lane.b32.xlu0 %v999, 96
      %v1003 = vpop.permute.xlu0 %1002
      %v1005 = vmul.f32 %v1000, %v1003
      %v1006 = vmul.f32 %v987, %v823
      %v1007 = vadd.f32 %v1005, %v1006
      %v1008 = vstv %s965
      %vm1009 = vcmp.lt.s32.totalorder %v1008, %v310
      %v1010 = vsel %vm1009, 1, 0
      %1011 = vset.pattern.permute.xlu0 0
      %1012 = vperm.xlu0 %1011, %v1010
      %v1013 = vpop.permute.xlu0 %1012
      %vm1014 = vcmp.eq.s32.totalorder %v1013, 1
      %v1015 = vsel %vm1014, %v1007, %v823
      %v1016 = vsel %vm1014, %v1007, 0.0
      %1018 = vrot.lane.b32.xlu0 %v1016, 96
      %v1019 = vpop.permute.xlu0 %1018
      %s1021 = scalar_lea.vmem %s293, 24
      %1022 = vst.msk [vmem:[%s1021] sm:$0xff] %vm335, %v1019
      %s1023 = ssub.s32 12, %s381
      %s1024 = scalar_lea.vmem %s286, 32
      %v1025 = vld [vmem:[%s1024] sm:$0xff]
      %1027 = vrot.lane.b32.xlu0 %v943, 32
      %v1028 = vpop.permute.xlu0 %1027
      %v1030 = vadd.f32 %v1025, %v1028
      %v1031 = vxor.u32 %v1030, 2147483648
      %v1032 = vmul.f32 %v1031, 1.442695
      %v1033 = vpow.pop %v1032
      %v1034 = vadd.f32 %v1033, 1.0
      %v1035 = vrcp.pop %v1034
      %v1036 = vmul.f32 %v1034, %v1035
      %v1037 = vsub.f32 1.0, %v1036
      %v1038 = vmul.f32 %v1035, %v1037
      %v1039 = vadd.f32 %v1035, %v1038
      %vm1040 = vweird.f32 %v1034
      %vm1041 = vweird.f32 %v1035
      %vm1042 = vmor %vm1040, %vm1041
      %v1043 = vsel %vm1042, %v1035, %v1039
      %v1044 = vand.u32 2147483647, %v1034
      %vm1045 = vcmp.eq.f32.partialorder %v1044, 8.507059e+37
      %v1046 = vand.u32 %v1034, 2147483648
      %v1047 = vor.u32 1.1754944e-38, %v1046
      %v1048 = vsel %vm1045, %v1047, %v1043
      %v1049 = vmul.f32 1.0, %v1048
      %1051 = vrot.lane.b32.xlu0 %v963, 32
      %v1052 = vpop.permute.xlu0 %1051
      %v1054 = vadd.f32 %v1025, %v1052
      %v1055 = vxor.u32 %v1054, 2147483648
      %v1056 = vmul.f32 %v1055, 1.442695
      %v1057 = vpow.pop %v1056
      %v1058 = vadd.f32 %v1057, 1.0
      %v1059 = vrcp.pop %v1058
      %v1060 = vmul.f32 %v1058, %v1059
      %v1061 = vsub.f32 1.0, %v1060
      %v1062 = vmul.f32 %v1059, %v1061
      %v1063 = vadd.f32 %v1059, %v1062
      %vm1064 = vweird.f32 %v1058
      %vm1065 = vweird.f32 %v1059
      %vm1066 = vmor %vm1064, %vm1065
      %v1067 = vsel %vm1066, %v1059, %v1063
      %v1068 = vand.u32 2147483647, %v1058
      %vm1069 = vcmp.eq.f32.partialorder %v1068, 8.507059e+37
      %v1070 = vand.u32 %v1058, 2147483648
      %v1071 = vor.u32 1.1754944e-38, %v1070
      %v1072 = vsel %vm1069, %v1071, %v1067
      %v1073 = vmul.f32 1.0, %v1072
      %v1074 = vadd.f32 %v963, %v404
      %1076 = vrot.lane.b32.xlu0 %v1074, 96
      %v1077 = vpop.permute.xlu0 %1076
      %v1079 = vmul.f32 %v1049, %v1077
      %1081 = vrot.lane.b32.xlu0 %v1079, 64
      %v1082 = vpop.permute.xlu0 %1081
      %v1084 = vadd.f32 %v1025, %v1082
      %v1085 = vtanh.pop %v1084
      %v1086 = vsub.f32 1.0, %v1073
      %1088 = vrot.lane.b32.xlu0 %v1085, 96
      %v1089 = vpop.permute.xlu0 %1088
      %v1091 = vmul.f32 %v1086, %v1089
      %v1092 = vmul.f32 %v1073, %v909
      %v1093 = vadd.f32 %v1091, %v1092
      %v1094 = vstv %s1023
      %vm1095 = vcmp.lt.s32.totalorder %v1094, %v310
      %v1096 = vsel %vm1095, 1, 0
      %1097 = vset.pattern.permute.xlu0 0
      %1098 = vperm.xlu0 %1097, %v1096
      %v1099 = vpop.permute.xlu0 %1098
      %vm1100 = vcmp.eq.s32.totalorder %v1099, 1
      %v1101 = vsel %vm1100, %v1093, %v909
      %v1102 = vsel %vm1100, %v1093, 0.0
      %1104 = vrot.lane.b32.xlu0 %v1102, 96
      %v1105 = vpop.permute.xlu0 %1104
      %s1107 = scalar_lea.vmem %s300, 32
      %1108 = vst.msk [vmem:[%s1107] sm:$0xff] %vm335, %v1105
      %1110 = vrot.lane.b32.xlu0 %v1015, 96
      %v1111 = vpop.permute.xlu0 %1110
      %v1113 = vsel %vm335, %v1111, %v1101
      %v1115 = vsel %vm337, %v1113, 0
      %1117 = vmatpush.msra.mxu0 0.0
      %1118 = vmatpush.msra.mxu0 0.0
      %1119 = vmatpush.msra.mxu0 0.0
      %1120 = vmatpush.msra.mxu0 0.0
      %1121 = vmatpush.msra.mxu0 0.0
      %1122 = vmatpush.msra.mxu0 0.0
      %1123 = vmatpush.msra.mxu0 0.0
      %1124 = vmatpush.msra.mxu0 0.0
      %1125 = vmatpush.msra.mxu0 %v325
      %1126 = vmatpush.msra.mxu0 %v323
      %1127 = vmatpush.msra.mxu0 %v321
      %1128 = vmatpush.msra.mxu0 %v319
      %1129 = vmatpush.msra.mxu0 %v317
      %1130 = vmatpush.msra.mxu0 %v315
      %1131 = vmatpush.msra.mxu0 %v313
      %1132 = vmatpush.msra.mxu0 %v311
      %1133 = vmatmul.f32.gmra.mxu0 %v1115
      %v1134 = vpop.f32.mrf.mxu0
      %v1135 = vadd.f32 0.0, %v1134
      %1136 = vdwg.mxu0
      %1137 = vmatpush.msra.mxu0 0.0
      %1138 = vmatpush.msra.mxu0 0.0
      %1139 = vmatpush.msra.mxu0 0.0
      %1140 = vmatpush.msra.mxu0 0.0
      %1141 = vmatpush.msra.mxu0 0.0
      %1142 = vmatpush.msra.mxu0 0.0
      %1143 = vmatpush.msra.mxu0 0.0
      %1144 = vmatpush.msra.mxu0 0.0
      %1145 = vmatpush.msra.mxu0 %v326
      %1146 = vmatpush.msra.mxu0 %v324
      %1147 = vmatpush.msra.mxu0 %v322
      %1148 = vmatpush.msra.mxu0 %v320
      %1149 = vmatpush.msra.mxu0 %v318
      %1150 = vmatpush.msra.mxu0 %v316
      %1151 = vmatpush.msra.mxu0 %v314
      %1152 = vmatpush.msra.mxu0 %v312
      %1153 = vmatmul.f32.gmra.mxu0 %v1115
      %v1154 = vpop.f32.mrf.mxu0
      %v1155 = vadd.f32 0.0, %v1154
      %1156 = vdwg.mxu0
      %s1157 = sadd.s32 %s381, 4
      %s1158 = scalar_lea.vmem %s279, 32
      %v1159 = vld [vmem:[%s1158] sm:$0xff]
      %v1160 = vadd.f32 %v1159, %v1135
      %v1161 = vxor.u32 %v1160, 2147483648
      %v1162 = vmul.f32 %v1161, 1.442695
      %v1163 = vpow.pop %v1162
      %v1164 = vadd.f32 %v1163, 1.0
      %v1165 = vrcp.pop %v1164
      %v1166 = vmul.f32 %v1164, %v1165
      %v1167 = vsub.f32 1.0, %v1166
      %v1168 = vmul.f32 %v1165, %v1167
      %v1169 = vadd.f32 %v1165, %v1168
      %vm1170 = vweird.f32 %v1164
      %vm1171 = vweird.f32 %v1165
      %vm1172 = vmor %vm1170, %vm1171
      %v1173 = vsel %vm1172, %v1165, %v1169
      %v1174 = vand.u32 2147483647, %v1164
      %vm1175 = vcmp.eq.f32.partialorder %v1174, 8.507059e+37
      %v1176 = vand.u32 %v1164, 2147483648
      %v1177 = vor.u32 1.1754944e-38, %v1176
      %v1178 = vsel %vm1175, %v1177, %v1173
      %v1179 = vmul.f32 1.0, %v1178
      %v1180 = vadd.f32 %v1135, %v406
      %1182 = vrot.lane.b32.xlu0 %v1180, 64
      %v1183 = vpop.permute.xlu0 %1182
      %v1185 = vmul.f32 %v1179, %v1183
      %1187 = vrot.lane.b32.xlu0 %v1185, 64
      %v1188 = vpop.permute.xlu0 %1187
      %v1190 = vadd.f32 %v1159, %v1188
      %v1191 = vtanh.pop %v1190
      %v1192 = vsub.f32 1.0, %v1179
      %1194 = vrot.lane.b32.xlu0 %v1191, 96
      %v1195 = vpop.permute.xlu0 %1194
      %v1197 = vmul.f32 %v1192, %v1195
      %v1198 = vmul.f32 %v1179, %v1015
      %v1199 = vadd.f32 %v1197, %v1198
      %v1200 = vstv %s1157
      %vm1201 = vcmp.lt.s32.totalorder %v1200, %v310
      %v1202 = vsel %vm1201, 1, 0
      %1203 = vset.pattern.permute.xlu0 0
      %1204 = vperm.xlu0 %1203, %v1202
      %v1205 = vpop.permute.xlu0 %1204
      %vm1206 = vcmp.eq.s32.totalorder %v1205, 1
      %v1207 = vsel %vm1206, %v1199, %v1015
      %v1208 = vsel %vm1206, %v1199, 0.0
      %1210 = vrot.lane.b32.xlu0 %v1208, 96
      %v1211 = vpop.permute.xlu0 %1210
      %s1213 = scalar_lea.vmem %s293, 32
      %1214 = vst.msk [vmem:[%s1213] sm:$0xff] %vm335, %v1211
      %s1215 = ssub.s32 11, %s381
      %s1216 = scalar_lea.vmem %s286, 24
      %v1217 = vld [vmem:[%s1216] sm:$0xff]
      %1219 = vrot.lane.b32.xlu0 %v1135, 32
      %v1220 = vpop.permute.xlu0 %1219
      %v1222 = vadd.f32 %v1217, %v1220
      %v1223 = vxor.u32 %v1222, 2147483648
      %v1224 = vmul.f32 %v1223, 1.442695
      %v1225 = vpow.pop %v1224
      %v1226 = vadd.f32 %v1225, 1.0
      %v1227 = vrcp.pop %v1226
      %v1228 = vmul.f32 %v1226, %v1227
      %v1229 = vsub.f32 1.0, %v1228
      %v1230 = vmul.f32 %v1227, %v1229
      %v1231 = vadd.f32 %v1227, %v1230
      %vm1232 = vweird.f32 %v1226
      %vm1233 = vweird.f32 %v1227
      %vm1234 = vmor %vm1232, %vm1233
      %v1235 = vsel %vm1234, %v1227, %v1231
      %v1236 = vand.u32 2147483647, %v1226
      %vm1237 = vcmp.eq.f32.partialorder %v1236, 8.507059e+37
      %v1238 = vand.u32 %v1226, 2147483648
      %v1239 = vor.u32 1.1754944e-38, %v1238
      %v1240 = vsel %vm1237, %v1239, %v1235
      %v1241 = vmul.f32 1.0, %v1240
      %1243 = vrot.lane.b32.xlu0 %v1155, 32
      %v1244 = vpop.permute.xlu0 %1243
      %v1246 = vadd.f32 %v1217, %v1244
      %v1247 = vxor.u32 %v1246, 2147483648
      %v1248 = vmul.f32 %v1247, 1.442695
      %v1249 = vpow.pop %v1248
      %v1250 = vadd.f32 %v1249, 1.0
      %v1251 = vrcp.pop %v1250
      %v1252 = vmul.f32 %v1250, %v1251
      %v1253 = vsub.f32 1.0, %v1252
      %v1254 = vmul.f32 %v1251, %v1253
      %v1255 = vadd.f32 %v1251, %v1254
      %vm1256 = vweird.f32 %v1250
      %vm1257 = vweird.f32 %v1251
      %vm1258 = vmor %vm1256, %vm1257
      %v1259 = vsel %vm1258, %v1251, %v1255
      %v1260 = vand.u32 2147483647, %v1250
      %vm1261 = vcmp.eq.f32.partialorder %v1260, 8.507059e+37
      %v1262 = vand.u32 %v1250, 2147483648
      %v1263 = vor.u32 1.1754944e-38, %v1262
      %v1264 = vsel %vm1261, %v1263, %v1259
      %v1265 = vmul.f32 1.0, %v1264
      %v1266 = vadd.f32 %v1155, %v404
      %1268 = vrot.lane.b32.xlu0 %v1266, 96
      %v1269 = vpop.permute.xlu0 %1268
      %v1271 = vmul.f32 %v1241, %v1269
      %1273 = vrot.lane.b32.xlu0 %v1271, 64
      %v1274 = vpop.permute.xlu0 %1273
      %v1276 = vadd.f32 %v1217, %v1274
      %v1277 = vtanh.pop %v1276
      %v1278 = vsub.f32 1.0, %v1265
      %1280 = vrot.lane.b32.xlu0 %v1277, 96
      %v1281 = vpop.permute.xlu0 %1280
      %v1283 = vmul.f32 %v1278, %v1281
      %v1284 = vmul.f32 %v1265, %v1101
      %v1285 = vadd.f32 %v1283, %v1284
      %v1286 = vstv %s1215
      %vm1287 = vcmp.lt.s32.totalorder %v1286, %v310
      %v1288 = vsel %vm1287, 1, 0
      %1289 = vset.pattern.permute.xlu0 0
      %1290 = vperm.xlu0 %1289, %v1288
      %v1291 = vpop.permute.xlu0 %1290
      %vm1292 = vcmp.eq.s32.totalorder %v1291, 1
      %v1293 = vsel %vm1292, %v1285, %v1101
      %v1294 = vsel %vm1292, %v1285, 0.0
      %1296 = vrot.lane.b32.xlu0 %v1294, 96
      %v1297 = vpop.permute.xlu0 %1296
      %s1299 = scalar_lea.vmem %s300, 24
      %1300 = vst.msk [vmem:[%s1299] sm:$0xff] %vm335, %v1297
      %1302 = vrot.lane.b32.xlu0 %v1207, 96
      %v1303 = vpop.permute.xlu0 %1302
      %v1305 = vsel %vm335, %v1303, %v1293
      %v1307 = vsel %vm337, %v1305, 0
      %1309 = vmatpush.msra.mxu0 0.0
      %1310 = vmatpush.msra.mxu0 0.0
      %1311 = vmatpush.msra.mxu0 0.0
      %1312 = vmatpush.msra.mxu0 0.0
      %1313 = vmatpush.msra.mxu0 0.0
      %1314 = vmatpush.msra.mxu0 0.0
      %1315 = vmatpush.msra.mxu0 0.0
      %1316 = vmatpush.msra.mxu0 0.0
      %1317 = vmatpush.msra.mxu0 %v325
      %1318 = vmatpush.msra.mxu0 %v323
      %1319 = vmatpush.msra.mxu0 %v321
      %1320 = vmatpush.msra.mxu0 %v319
      %1321 = vmatpush.msra.mxu0 %v317
      %1322 = vmatpush.msra.mxu0 %v315
      %1323 = vmatpush.msra.mxu0 %v313
      %1324 = vmatpush.msra.mxu0 %v311
      %1325 = vmatmul.f32.gmra.mxu0 %v1307
      %v1326 = vpop.f32.mrf.mxu0
      %v1327 = vadd.f32 0.0, %v1326
      %1328 = vdwg.mxu0
      %1329 = vmatpush.msra.mxu0 0.0
      %1330 = vmatpush.msra.mxu0 0.0
      %1331 = vmatpush.msra.mxu0 0.0
      %1332 = vmatpush.msra.mxu0 0.0
      %1333 = vmatpush.msra.mxu0 0.0
      %1334 = vmatpush.msra.mxu0 0.0
      %1335 = vmatpush.msra.mxu0 0.0
      %1336 = vmatpush.msra.mxu0 0.0
      %1337 = vmatpush.msra.mxu0 %v326
      %1338 = vmatpush.msra.mxu0 %v324
      %1339 = vmatpush.msra.mxu0 %v322
      %1340 = vmatpush.msra.mxu0 %v320
      %1341 = vmatpush.msra.mxu0 %v318
      %1342 = vmatpush.msra.mxu0 %v316
      %1343 = vmatpush.msra.mxu0 %v314
      %1344 = vmatpush.msra.mxu0 %v312
      %1345 = vmatmul.f32.gmra.mxu0 %v1307
      %v1346 = vpop.f32.mrf.mxu0
      %v1347 = vadd.f32 0.0, %v1346
      %1348 = vdwg.mxu0
      %s1349 = sadd.s32 %s381, 5
      %s1350 = scalar_lea.vmem %s279, 40
      %v1351 = vld [vmem:[%s1350] sm:$0xff]
      %v1352 = vadd.f32 %v1351, %v1327
      %v1353 = vxor.u32 %v1352, 2147483648
      %v1354 = vmul.f32 %v1353, 1.442695
      %v1355 = vpow.pop %v1354
      %v1356 = vadd.f32 %v1355, 1.0
      %v1357 = vrcp.pop %v1356
      %v1358 = vmul.f32 %v1356, %v1357
      %v1359 = vsub.f32 1.0, %v1358
      %v1360 = vmul.f32 %v1357, %v1359
      %v1361 = vadd.f32 %v1357, %v1360
      %vm1362 = vweird.f32 %v1356
      %vm1363 = vweird.f32 %v1357
      %vm1364 = vmor %vm1362, %vm1363
      %v1365 = vsel %vm1364, %v1357, %v1361
      %v1366 = vand.u32 2147483647, %v1356
      %vm1367 = vcmp.eq.f32.partialorder %v1366, 8.507059e+37
      %v1368 = vand.u32 %v1356, 2147483648
      %v1369 = vor.u32 1.1754944e-38, %v1368
      %v1370 = vsel %vm1367, %v1369, %v1365
      %v1371 = vmul.f32 1.0, %v1370
      %v1372 = vadd.f32 %v1327, %v406
      %1374 = vrot.lane.b32.xlu0 %v1372, 64
      %v1375 = vpop.permute.xlu0 %1374
      %v1377 = vmul.f32 %v1371, %v1375
      %1379 = vrot.lane.b32.xlu0 %v1377, 64
      %v1380 = vpop.permute.xlu0 %1379
      %v1382 = vadd.f32 %v1351, %v1380
      %v1383 = vtanh.pop %v1382
      %v1384 = vsub.f32 1.0, %v1371
      %1386 = vrot.lane.b32.xlu0 %v1383, 96
      %v1387 = vpop.permute.xlu0 %1386
      %v1389 = vmul.f32 %v1384, %v1387
      %v1390 = vmul.f32 %v1371, %v1207
      %v1391 = vadd.f32 %v1389, %v1390
      %v1392 = vstv %s1349
      %vm1393 = vcmp.lt.s32.totalorder %v1392, %v310
      %v1394 = vsel %vm1393, 1, 0
      %1395 = vset.pattern.permute.xlu0 0
      %1396 = vperm.xlu0 %1395, %v1394
      %v1397 = vpop.permute.xlu0 %1396
      %vm1398 = vcmp.eq.s32.totalorder %v1397, 1
      %v1399 = vsel %vm1398, %v1391, %v1207
      %v1400 = vsel %vm1398, %v1391, 0.0
      %1402 = vrot.lane.b32.xlu0 %v1400, 96
      %v1403 = vpop.permute.xlu0 %1402
      %s1405 = scalar_lea.vmem %s293, 40
      %1406 = vst.msk [vmem:[%s1405] sm:$0xff] %vm335, %v1403
      %s1407 = ssub.s32 10, %s381
      %s1408 = scalar_lea.vmem %s286, 16
      %v1409 = vld [vmem:[%s1408] sm:$0xff]
      %1411 = vrot.lane.b32.xlu0 %v1327, 32
      %v1412 = vpop.permute.xlu0 %1411
      %v1414 = vadd.f32 %v1409, %v1412
      %v1415 = vxor.u32 %v1414, 2147483648
      %v1416 = vmul.f32 %v1415, 1.442695
      %v1417 = vpow.pop %v1416
      %v1418 = vadd.f32 %v1417, 1.0
      %v1419 = vrcp.pop %v1418
      %v1420 = vmul.f32 %v1418, %v1419
      %v1421 = vsub.f32 1.0, %v1420
      %v1422 = vmul.f32 %v1419, %v1421
      %v1423 = vadd.f32 %v1419, %v1422
      %vm1424 = vweird.f32 %v1418
      %vm1425 = vweird.f32 %v1419
      %vm1426 = vmor %vm1424, %vm1425
      %v1427 = vsel %vm1426, %v1419, %v1423
      %v1428 = vand.u32 2147483647, %v1418
      %vm1429 = vcmp.eq.f32.partialorder %v1428, 8.507059e+37
      %v1430 = vand.u32 %v1418, 2147483648
      %v1431 = vor.u32 1.1754944e-38, %v1430
      %v1432 = vsel %vm1429, %v1431, %v1427
      %v1433 = vmul.f32 1.0, %v1432
      %1435 = vrot.lane.b32.xlu0 %v1347, 32
      %v1436 = vpop.permute.xlu0 %1435
      %v1438 = vadd.f32 %v1409, %v1436
      %v1439 = vxor.u32 %v1438, 2147483648
      %v1440 = vmul.f32 %v1439, 1.442695
      %v1441 = vpow.pop %v1440
      %v1442 = vadd.f32 %v1441, 1.0
      %v1443 = vrcp.pop %v1442
      %v1444 = vmul.f32 %v1442, %v1443
      %v1445 = vsub.f32 1.0, %v1444
      %v1446 = vmul.f32 %v1443, %v1445
      %v1447 = vadd.f32 %v1443, %v1446
      %vm1448 = vweird.f32 %v1442
      %vm1449 = vweird.f32 %v1443
      %vm1450 = vmor %vm1448, %vm1449
      %v1451 = vsel %vm1450, %v1443, %v1447
      %v1452 = vand.u32 2147483647, %v1442
      %vm1453 = vcmp.eq.f32.partialorder %v1452, 8.507059e+37
      %v1454 = vand.u32 %v1442, 2147483648
      %v1455 = vor.u32 1.1754944e-38, %v1454
      %v1456 = vsel %vm1453, %v1455, %v1451
      %v1457 = vmul.f32 1.0, %v1456
      %v1458 = vadd.f32 %v1347, %v404
      %1460 = vrot.lane.b32.xlu0 %v1458, 96
      %v1461 = vpop.permute.xlu0 %1460
      %v1463 = vmul.f32 %v1433, %v1461
      %1465 = vrot.lane.b32.xlu0 %v1463, 64
      %v1466 = vpop.permute.xlu0 %1465
      %v1468 = vadd.f32 %v1409, %v1466
      %v1469 = vtanh.pop %v1468
      %v1470 = vsub.f32 1.0, %v1457
      %1472 = vrot.lane.b32.xlu0 %v1469, 96
      %v1473 = vpop.permute.xlu0 %1472
      %v1475 = vmul.f32 %v1470, %v1473
      %v1476 = vmul.f32 %v1457, %v1293
      %v1477 = vadd.f32 %v1475, %v1476
      %v1478 = vstv %s1407
      %vm1479 = vcmp.lt.s32.totalorder %v1478, %v310
      %v1480 = vsel %vm1479, 1, 0
      %1481 = vset.pattern.permute.xlu0 0
      %1482 = vperm.xlu0 %1481, %v1480
      %v1483 = vpop.permute.xlu0 %1482
      %vm1484 = vcmp.eq.s32.totalorder %v1483, 1
      %v1485 = vsel %vm1484, %v1477, %v1293
      %v1486 = vsel %vm1484, %v1477, 0.0
      %1488 = vrot.lane.b32.xlu0 %v1486, 96
      %v1489 = vpop.permute.xlu0 %1488
      %s1491 = scalar_lea.vmem %s300, 16
      %1492 = vst.msk [vmem:[%s1491] sm:$0xff] %vm335, %v1489
      %1494 = vrot.lane.b32.xlu0 %v1399, 96
      %v1495 = vpop.permute.xlu0 %1494
      %v1497 = vsel %vm335, %v1495, %v1485
      %v1499 = vsel %vm337, %v1497, 0
      %1501 = vmatpush.msra.mxu0 0.0
      %1502 = vmatpush.msra.mxu0 0.0
      %1503 = vmatpush.msra.mxu0 0.0
      %1504 = vmatpush.msra.mxu0 0.0
      %1505 = vmatpush.msra.mxu0 0.0
      %1506 = vmatpush.msra.mxu0 0.0
      %1507 = vmatpush.msra.mxu0 0.0
      %1508 = vmatpush.msra.mxu0 0.0
      %1509 = vmatpush.msra.mxu0 %v325
      %1510 = vmatpush.msra.mxu0 %v323
      %1511 = vmatpush.msra.mxu0 %v321
      %1512 = vmatpush.msra.mxu0 %v319
      %1513 = vmatpush.msra.mxu0 %v317
      %1514 = vmatpush.msra.mxu0 %v315
      %1515 = vmatpush.msra.mxu0 %v313
      %1516 = vmatpush.msra.mxu0 %v311
      %1517 = vmatmul.f32.gmra.mxu0 %v1499
      %v1518 = vpop.f32.mrf.mxu0
      %v1519 = vadd.f32 0.0, %v1518
      %1520 = vdwg.mxu0
      %1521 = vmatpush.msra.mxu0 0.0
      %1522 = vmatpush.msra.mxu0 0.0
      %1523 = vmatpush.msra.mxu0 0.0
      %1524 = vmatpush.msra.mxu0 0.0
      %1525 = vmatpush.msra.mxu0 0.0
      %1526 = vmatpush.msra.mxu0 0.0
      %1527 = vmatpush.msra.mxu0 0.0
      %1528 = vmatpush.msra.mxu0 0.0
      %1529 = vmatpush.msra.mxu0 %v326
      %1530 = vmatpush.msra.mxu0 %v324
      %1531 = vmatpush.msra.mxu0 %v322
      %1532 = vmatpush.msra.mxu0 %v320
      %1533 = vmatpush.msra.mxu0 %v318
      %1534 = vmatpush.msra.mxu0 %v316
      %1535 = vmatpush.msra.mxu0 %v314
      %1536 = vmatpush.msra.mxu0 %v312
      %1537 = vmatmul.f32.gmra.mxu0 %v1499
      %v1538 = vpop.f32.mrf.mxu0
      %v1539 = vadd.f32 0.0, %v1538
      %1540 = vdwg.mxu0
      %s1541 = sadd.s32 %s381, 6
      %s1542 = scalar_lea.vmem %s279, 48
      %v1543 = vld [vmem:[%s1542] sm:$0xff]
      %v1544 = vadd.f32 %v1543, %v1519
      %v1545 = vxor.u32 %v1544, 2147483648
      %v1546 = vmul.f32 %v1545, 1.442695
      %v1547 = vpow.pop %v1546
      %v1548 = vadd.f32 %v1547, 1.0
      %v1549 = vrcp.pop %v1548
      %v1550 = vmul.f32 %v1548, %v1549
      %v1551 = vsub.f32 1.0, %v1550
      %v1552 = vmul.f32 %v1549, %v1551
      %v1553 = vadd.f32 %v1549, %v1552
      %vm1554 = vweird.f32 %v1548
      %vm1555 = vweird.f32 %v1549
      %vm1556 = vmor %vm1554, %vm1555
      %v1557 = vsel %vm1556, %v1549, %v1553
      %v1558 = vand.u32 2147483647, %v1548
      %vm1559 = vcmp.eq.f32.partialorder %v1558, 8.507059e+37
      %v1560 = vand.u32 %v1548, 2147483648
      %v1561 = vor.u32 1.1754944e-38, %v1560
      %v1562 = vsel %vm1559, %v1561, %v1557
      %v1563 = vmul.f32 1.0, %v1562
      %v1564 = vadd.f32 %v1519, %v406
      %1566 = vrot.lane.b32.xlu0 %v1564, 64
      %v1567 = vpop.permute.xlu0 %1566
      %v1569 = vmul.f32 %v1563, %v1567
      %1571 = vrot.lane.b32.xlu0 %v1569, 64
      %v1572 = vpop.permute.xlu0 %1571
      %v1574 = vadd.f32 %v1543, %v1572
      %v1575 = vtanh.pop %v1574
      %v1576 = vsub.f32 1.0, %v1563
      %1578 = vrot.lane.b32.xlu0 %v1575, 96
      %v1579 = vpop.permute.xlu0 %1578
      %v1581 = vmul.f32 %v1576, %v1579
      %v1582 = vmul.f32 %v1563, %v1399
      %v1583 = vadd.f32 %v1581, %v1582
      %v1584 = vstv %s1541
      %vm1585 = vcmp.lt.s32.totalorder %v1584, %v310
      %v1586 = vsel %vm1585, 1, 0
      %1587 = vset.pattern.permute.xlu0 0
      %1588 = vperm.xlu0 %1587, %v1586
      %v1589 = vpop.permute.xlu0 %1588
      %vm1590 = vcmp.eq.s32.totalorder %v1589, 1
      %v1591 = vsel %vm1590, %v1583, %v1399
      %v1592 = vsel %vm1590, %v1583, 0.0
      %1594 = vrot.lane.b32.xlu0 %v1592, 96
      %v1595 = vpop.permute.xlu0 %1594
      %s1597 = scalar_lea.vmem %s293, 48
      %1598 = vst.msk [vmem:[%s1597] sm:$0xff] %vm335, %v1595
      %s1599 = ssub.s32 9, %s381
      %s1600 = scalar_lea.vmem %s286, 8
      %v1601 = vld [vmem:[%s1600] sm:$0xff]
      %1603 = vrot.lane.b32.xlu0 %v1519, 32
      %v1604 = vpop.permute.xlu0 %1603
      %v1606 = vadd.f32 %v1601, %v1604
      %v1607 = vxor.u32 %v1606, 2147483648
      %v1608 = vmul.f32 %v1607, 1.442695
      %v1609 = vpow.pop %v1608
      %v1610 = vadd.f32 %v1609, 1.0
      %v1611 = vrcp.pop %v1610
      %v1612 = vmul.f32 %v1610, %v1611
      %v1613 = vsub.f32 1.0, %v1612
      %v1614 = vmul.f32 %v1611, %v1613
      %v1615 = vadd.f32 %v1611, %v1614
      %vm1616 = vweird.f32 %v1610
      %vm1617 = vweird.f32 %v1611
      %vm1618 = vmor %vm1616, %vm1617
      %v1619 = vsel %vm1618, %v1611, %v1615
      %v1620 = vand.u32 2147483647, %v1610
      %vm1621 = vcmp.eq.f32.partialorder %v1620, 8.507059e+37
      %v1622 = vand.u32 %v1610, 2147483648
      %v1623 = vor.u32 1.1754944e-38, %v1622
      %v1624 = vsel %vm1621, %v1623, %v1619
      %v1625 = vmul.f32 1.0, %v1624
      %1627 = vrot.lane.b32.xlu0 %v1539, 32
      %v1628 = vpop.permute.xlu0 %1627
      %v1630 = vadd.f32 %v1601, %v1628
      %v1631 = vxor.u32 %v1630, 2147483648
      %v1632 = vmul.f32 %v1631, 1.442695
      %v1633 = vpow.pop %v1632
      %v1634 = vadd.f32 %v1633, 1.0
      %v1635 = vrcp.pop %v1634
      %v1636 = vmul.f32 %v1634, %v1635
      %v1637 = vsub.f32 1.0, %v1636
      %v1638 = vmul.f32 %v1635, %v1637
      %v1639 = vadd.f32 %v1635, %v1638
      %vm1640 = vweird.f32 %v1634
      %vm1641 = vweird.f32 %v1635
      %vm1642 = vmor %vm1640, %vm1641
      %v1643 = vsel %vm1642, %v1635, %v1639
      %v1644 = vand.u32 2147483647, %v1634
      %vm1645 = vcmp.eq.f32.partialorder %v1644, 8.507059e+37
      %v1646 = vand.u32 %v1634, 2147483648
      %v1647 = vor.u32 1.1754944e-38, %v1646
      %v1648 = vsel %vm1645, %v1647, %v1643
      %v1649 = vmul.f32 1.0, %v1648
      %v1650 = vadd.f32 %v1539, %v404
      %1652 = vrot.lane.b32.xlu0 %v1650, 96
      %v1653 = vpop.permute.xlu0 %1652
      %v1655 = vmul.f32 %v1625, %v1653
      %1657 = vrot.lane.b32.xlu0 %v1655, 64
      %v1658 = vpop.permute.xlu0 %1657
      %v1660 = vadd.f32 %v1601, %v1658
      %v1661 = vtanh.pop %v1660
      %v1662 = vsub.f32 1.0, %v1649
      %1664 = vrot.lane.b32.xlu0 %v1661, 96
      %v1665 = vpop.permute.xlu0 %1664
      %v1667 = vmul.f32 %v1662, %v1665
      %v1668 = vmul.f32 %v1649, %v1485
      %v1669 = vadd.f32 %v1667, %v1668
      %v1670 = vstv %s1599
      %vm1671 = vcmp.lt.s32.totalorder %v1670, %v310
      %v1672 = vsel %vm1671, 1, 0
      %1673 = vset.pattern.permute.xlu0 0
      %1674 = vperm.xlu0 %1673, %v1672
      %v1675 = vpop.permute.xlu0 %1674
      %vm1676 = vcmp.eq.s32.totalorder %v1675, 1
      %v1677 = vsel %vm1676, %v1669, %v1485
      %v1678 = vsel %vm1676, %v1669, 0.0
      %1680 = vrot.lane.b32.xlu0 %v1678, 96
      %v1681 = vpop.permute.xlu0 %1680
      %s1683 = scalar_lea.vmem %s300, 8
      %1684 = vst.msk [vmem:[%s1683] sm:$0xff] %vm335, %v1681
      %1686 = vrot.lane.b32.xlu0 %v1591, 96
      %v1687 = vpop.permute.xlu0 %1686
      %v1689 = vsel %vm335, %v1687, %v1677
      %v1691 = vsel %vm337, %v1689, 0
      %1693 = vmatpush.msra.mxu0 0.0
      %1694 = vmatpush.msra.mxu0 0.0
      %1695 = vmatpush.msra.mxu0 0.0
      %1696 = vmatpush.msra.mxu0 0.0
      %1697 = vmatpush.msra.mxu0 0.0
      %1698 = vmatpush.msra.mxu0 0.0
      %1699 = vmatpush.msra.mxu0 0.0
      %1700 = vmatpush.msra.mxu0 0.0
      %1701 = vmatpush.msra.mxu0 %v325
      %1702 = vmatpush.msra.mxu0 %v323
      %1703 = vmatpush.msra.mxu0 %v321
      %1704 = vmatpush.msra.mxu0 %v319
      %1705 = vmatpush.msra.mxu0 %v317
      %1706 = vmatpush.msra.mxu0 %v315
      %1707 = vmatpush.msra.mxu0 %v313
      %1708 = vmatpush.msra.mxu0 %v311
      %1709 = vmatmul.f32.gmra.mxu0 %v1691
      %v1710 = vpop.f32.mrf.mxu0
      %v1711 = vadd.f32 0.0, %v1710
      %1712 = vdwg.mxu0
      %1713 = vmatpush.msra.mxu0 0.0
      %1714 = vmatpush.msra.mxu0 0.0
      %1715 = vmatpush.msra.mxu0 0.0
      %1716 = vmatpush.msra.mxu0 0.0
      %1717 = vmatpush.msra.mxu0 0.0
      %1718 = vmatpush.msra.mxu0 0.0
      %1719 = vmatpush.msra.mxu0 0.0
      %1720 = vmatpush.msra.mxu0 0.0
      %1721 = vmatpush.msra.mxu0 %v326
      %1722 = vmatpush.msra.mxu0 %v324
      %1723 = vmatpush.msra.mxu0 %v322
      %1724 = vmatpush.msra.mxu0 %v320
      %1725 = vmatpush.msra.mxu0 %v318
      %1726 = vmatpush.msra.mxu0 %v316
      %1727 = vmatpush.msra.mxu0 %v314
      %1728 = vmatpush.msra.mxu0 %v312
      %1729 = vmatmul.f32.gmra.mxu0 %v1691
      %v1730 = vpop.f32.mrf.mxu0
      %v1731 = vadd.f32 0.0, %v1730
      %1732 = vdwg.mxu0
      %s1733 = sadd.s32 %s381, 7
      %s1734 = scalar_lea.vmem %s279, 56
      %v1735 = vld [vmem:[%s1734] sm:$0xff]
      %v1736 = vadd.f32 %v1735, %v1711
      %v1737 = vxor.u32 %v1736, 2147483648
      %v1738 = vmul.f32 %v1737, 1.442695
      %v1739 = vpow.pop %v1738
      %v1740 = vadd.f32 %v1739, 1.0
      %v1741 = vrcp.pop %v1740
      %v1742 = vmul.f32 %v1740, %v1741
      %v1743 = vsub.f32 1.0, %v1742
      %v1744 = vmul.f32 %v1741, %v1743
      %v1745 = vadd.f32 %v1741, %v1744
      %vm1746 = vweird.f32 %v1740
      %vm1747 = vweird.f32 %v1741
      %vm1748 = vmor %vm1746, %vm1747
      %v1749 = vsel %vm1748, %v1741, %v1745
      %v1750 = vand.u32 2147483647, %v1740
      %vm1751 = vcmp.eq.f32.partialorder %v1750, 8.507059e+37
      %v1752 = vand.u32 %v1740, 2147483648
      %v1753 = vor.u32 1.1754944e-38, %v1752
      %v1754 = vsel %vm1751, %v1753, %v1749
      %v1755 = vmul.f32 1.0, %v1754
      %v1756 = vadd.f32 %v1711, %v406
      %1758 = vrot.lane.b32.xlu0 %v1756, 64
      %v1759 = vpop.permute.xlu0 %1758
      %v1761 = vmul.f32 %v1755, %v1759
      %1763 = vrot.lane.b32.xlu0 %v1761, 64
      %v1764 = vpop.permute.xlu0 %1763
      %v1766 = vadd.f32 %v1735, %v1764
      %v1767 = vtanh.pop %v1766
      %v1768 = vsub.f32 1.0, %v1755
      %1770 = vrot.lane.b32.xlu0 %v1767, 96
      %v1771 = vpop.permute.xlu0 %1770
      %v1773 = vmul.f32 %v1768, %v1771
      %v1774 = vmul.f32 %v1755, %v1591
      %v1775 = vadd.f32 %v1773, %v1774
      %v1776 = vstv %s1733
      %vm1777 = vcmp.lt.s32.totalorder %v1776, %v310
      %v1778 = vsel %vm1777, 1, 0
      %1779 = vset.pattern.permute.xlu0 0
      %1780 = vperm.xlu0 %1779, %v1778
      %v1781 = vpop.permute.xlu0 %1780
      %vm1782 = vcmp.eq.s32.totalorder %v1781, 1
      %v1783 = vsel %vm1782, %v1775, %v1591
      %v1784 = vsel %vm1782, %v1775, 0.0
      %1786 = vrot.lane.b32.xlu0 %v1784, 96
      %v1787 = vpop.permute.xlu0 %1786
      %s1789 = scalar_lea.vmem %s293, 56
      %1790 = vst.msk [vmem:[%s1789] sm:$0xff] %vm335, %v1787
      %s1791 = ssub.s32 8, %s381
      %v1792 = vld [vmem:[%s286] sm:$0xff]
      %1794 = vrot.lane.b32.xlu0 %v1711, 32
      %v1795 = vpop.permute.xlu0 %1794
      %v1797 = vadd.f32 %v1792, %v1795
      %v1798 = vxor.u32 %v1797, 2147483648
      %v1799 = vmul.f32 %v1798, 1.442695
      %v1800 = vpow.pop %v1799
      %v1801 = vadd.f32 %v1800, 1.0
      %v1802 = vrcp.pop %v1801
      %v1803 = vmul.f32 %v1801, %v1802
      %v1804 = vsub.f32 1.0, %v1803
      %v1805 = vmul.f32 %v1802, %v1804
      %v1806 = vadd.f32 %v1802, %v1805
      %vm1807 = vweird.f32 %v1801
      %vm1808 = vweird.f32 %v1802
      %vm1809 = vmor %vm1807, %vm1808
      %v1810 = vsel %vm1809, %v1802, %v1806
      %v1811 = vand.u32 2147483647, %v1801
      %vm1812 = vcmp.eq.f32.partialorder %v1811, 8.507059e+37
      %v1813 = vand.u32 %v1801, 2147483648
      %v1814 = vor.u32 1.1754944e-38, %v1813
      %v1815 = vsel %vm1812, %v1814, %v1810
      %v1816 = vmul.f32 1.0, %v1815
      %1818 = vrot.lane.b32.xlu0 %v1731, 32
      %v1819 = vpop.permute.xlu0 %1818
      %v1821 = vadd.f32 %v1792, %v1819
      %v1822 = vxor.u32 %v1821, 2147483648
      %v1823 = vmul.f32 %v1822, 1.442695
      %v1824 = vpow.pop %v1823
      %v1825 = vadd.f32 %v1824, 1.0
      %v1826 = vrcp.pop %v1825
      %v1827 = vmul.f32 %v1825, %v1826
      %v1828 = vsub.f32 1.0, %v1827
      %v1829 = vmul.f32 %v1826, %v1828
      %v1830 = vadd.f32 %v1826, %v1829
      %vm1831 = vweird.f32 %v1825
      %vm1832 = vweird.f32 %v1826
      %vm1833 = vmor %vm1831, %vm1832
      %v1834 = vsel %vm1833, %v1826, %v1830
      %v1835 = vand.u32 2147483647, %v1825
      %vm1836 = vcmp.eq.f32.partialorder %v1835, 8.507059e+37
      %v1837 = vand.u32 %v1825, 2147483648
      %v1838 = vor.u32 1.1754944e-38, %v1837
      %v1839 = vsel %vm1836, %v1838, %v1834
      %v1840 = vmul.f32 1.0, %v1839
      %v1841 = vadd.f32 %v1731, %v404
      %1843 = vrot.lane.b32.xlu0 %v1841, 96
      %v1844 = vpop.permute.xlu0 %1843
      %v1846 = vmul.f32 %v1816, %v1844
      %1848 = vrot.lane.b32.xlu0 %v1846, 64
      %v1849 = vpop.permute.xlu0 %1848
      %v1851 = vadd.f32 %v1792, %v1849
      %v1852 = vtanh.pop %v1851
      %v1853 = vsub.f32 1.0, %v1840
      %1855 = vrot.lane.b32.xlu0 %v1852, 96
      %v1856 = vpop.permute.xlu0 %1855
      %v1858 = vmul.f32 %v1853, %v1856
      %v1859 = vmul.f32 %v1840, %v1677
      %v1860 = vadd.f32 %v1858, %v1859
      %v1861 = vstv %s1791
      %vm1862 = vcmp.lt.s32.totalorder %v1861, %v310
      %v1863 = vsel %vm1862, 1, 0
      %1864 = vset.pattern.permute.xlu0 0
      %1865 = vperm.xlu0 %1864, %v1863
      %v1866 = vpop.permute.xlu0 %1865
      %vm1867 = vcmp.eq.s32.totalorder %v1866, 1
      %v1868 = vsel %vm1867, %v1860, %v1677
      %v1869 = vsel %vm1867, %v1860, 0.0
      %1871 = vrot.lane.b32.xlu0 %v1869, 96
      %v1872 = vpop.permute.xlu0 %1871
      %1874 = vst.msk [vmem:[%s300] sm:$0xff] %vm335, %v1872
      %1876 = vrot.lane.b32.xlu0 %v1783, 96
      %v1877 = vpop.permute.xlu0 %1876
      %1879 = vst.msk [vmem:[#allocation2] sm:$0xff] %vm335, %v1877
      %1881 = vrot.lane.b32.xlu0 %v1868, 96
      %v1882 = vpop.permute.xlu0 %1881
      %1884 = vst.msk [vmem:[%s329] sm:$0xff] %vm335, %v1882
      %s1885 = smul.u32 8, %s18
      %p1886 = scmp.lt.s32.totalorder %s1885, 15
      %s1887 = scalar_select %p1886, %s1885, 15
      %s1888 = smul.addr %s1887, 8
      %s1889 = scalar_lea.vmem %s5, %s1888
      %s1890 = ssub.s32 1, %s18
      %s1891 = smul.u32 8, %s1890
      %p1892 = scmp.lt.s32.totalorder %s1891, 15
      %s1893 = scalar_select %p1892, %s1891, 15
      %s1894 = smul.addr %s1893, 8
      %s1895 = scalar_lea.vmem %s6, %s1894
      // Predicated region
      $region45: #{path_concatenation_forward.2} parent=39 // pred_check
        %p1896 = pneg %p153
      $region46: #{path_concatenation_forward.2} parent=39 // pred_check_branch
        %1898 = sbr.rel (%p1896) target = $region48
      $region47: #{path_concatenation_forward.2} parent=39 // pred_region
        %s1899 = smul.u32 8, %s18
      $region48: #{path_concatenation_forward.2} parent=39 // pred_fallthru
        _
      // Predicated region
      $region49: #{path_concatenation_forward.2} parent=39 // pred_check
        %p1900 = pneg %p181
      $region50: #{path_concatenation_forward.2} parent=39 // pred_check_branch
        %1902 = sbr.rel (%p1900) target = $region52
      $region51: #{path_concatenation_forward.2} parent=39 // pred_region
        %s1903 = ssub.s32 1, %s18
        %s1904 = smul.u32 8, %s1903
      $region52: #{path_concatenation_forward.2} parent=39 // pred_fallthru
        _
    $region40: #{path_concatenation_forward.2} parent=5 // pred_fallthru
      _
    %p1905 = scmp.le.s32.totalorder 2, %s13
    // Predicated region
    $region53: #{path_concatenation_forward.2} parent=5 // pred_check
      %p1906 = pneg %p1905
    $region54: #{path_concatenation_forward.2} parent=5 // pred_check_branch
      %1908 = sbr.rel (%p1906) target = $region56
    $region55: #{path_concatenation_forward.2} parent=5 // pred_region
      %s1909 = ssub.s32 %s13, 2
      // Predicated region
      $region57: #{path_concatenation_forward.2} parent=55 // pred_check
        %p1910 = pneg %p159
      $region58: #{path_concatenation_forward.2} parent=55 // pred_check_branch
        %1912 = sbr.rel (%p1910) target = $region60
      $region59: #{path_concatenation_forward.2} parent=55 // pred_region
        %s1913 = smul.u32 8, %s19
        %p1914 = scmp.lt.s32.totalorder %s1913, 15
        %s1915 = scalar_select %p1914, %s1913, 15
        %s1916 = smul.addr %s1915, 8
        %s1917 = scalar_lea.vmem %s5, %s1916
      $region60: #{path_concatenation_forward.2} parent=55 // pred_fallthru
        _
      // Predicated region
      $region61: #{path_concatenation_forward.2} parent=55 // pred_check
        %p1918 = pneg %p187
      $region62: #{path_concatenation_forward.2} parent=55 // pred_check_branch
        %1920 = sbr.rel (%p1918) target = $region64
      $region63: #{path_concatenation_forward.2} parent=55 // pred_region
        %s1921 = ssub.s32 1, %s19
        %s1922 = smul.u32 8, %s1921
        %p1923 = scmp.lt.s32.totalorder %s1922, 15
        %s1924 = scalar_select %p1923, %s1922, 15
        %s1925 = smul.addr %s1924, 8
        %s1926 = scalar_lea.vmem %s6, %s1925
      $region64: #{path_concatenation_forward.2} parent=55 // pred_fallthru
        _
    $region56: #{path_concatenation_forward.2} parent=5 // pred_fallthru
      _
  $region6: #{path_concatenation_forward.2} parent=0 // loop_footer
    %s17 = sadd.s32 1, %s13
  $region7: #{path_concatenation_forward.2} parent=0 // loop_footer_branch
    %12 = sbr.rel target = $region3
  $region8: #{path_concatenation_forward.2} parent=0 // loop_exit
    _

</llo_original>
